<compile_context>
chip_gen: v7x
topology: tpu7x:2x2x1
jax: 0.10.0
libtpu: 0.0.40
codegen_flags: <defaults>
</compile_context>

<pallas_src>
import jax
import jax.numpy as jnp
import numpy as np
from jax.experimental import pallas as pl
from jax.experimental.pallas import tpu as pltpu

EPS = 1e-5     # nn.BatchNorm2d default eps
LANE = 128


def _round_up(x, m):
    return (x + m - 1) // m * m


# ---------------------------------------------------------------------------
# Kernel 1: BN batch statistics -> per-channel (scale, shift)
#   single pass (sum + sum-of-squares), lane-axis reduction, optional validity mask
# ---------------------------------------------------------------------------
def _make_bn_stats_kernel(count, has_mask):
    def kernel(*refs):
        if has_mask:
            x_ref, mask_ref, g_ref, b_ref, scale_ref, shift_ref = refs
            x = x_ref[...]
            m = mask_ref[...]
            s = jnp.sum(x * m, axis=1, keepdims=True)
            sq = jnp.sum(x * x * m, axis=1, keepdims=True)
        else:
            x_ref, g_ref, b_ref, scale_ref, shift_ref = refs
            x = x_ref[...]
            s = jnp.sum(x, axis=1, keepdims=True)
            sq = jnp.sum(x * x, axis=1, keepdims=True)
        inv = 1.0 / count
        mean = s * inv
        var = sq * inv - mean * mean                       # biased var (torch BN fwd)
        scale = g_ref[...] * jax.lax.rsqrt(var + EPS)
        scale_ref[...] = scale
        shift_ref[...] = b_ref[...] - mean * scale
    return kernel


def bn_scale_shift(x_cm, gamma, beta, *, count, mask=None):
    """x_cm: (C, M) channel-major activations.  Returns (scale, shift), each (C, 1),
    so BN(x) = x*scale + shift with training-mode batch stats over `count` elements
    (positions where mask==0 are excluded)."""
    C, M = x_cm.shape
    has_mask = mask is not None
    kern = _make_bn_stats_kernel(float(count), has_mask)
    args = [x_cm]
    in_specs = [pl.BlockSpec((C, M), lambda i: (0, 0))]
    if has_mask:
        args.append(mask)
        in_specs.append(pl.BlockSpec((1, M), lambda i: (0, 0)))
    args += [gamma.reshape(C, 1), beta.reshape(C, 1)]
    in_specs += [pl.BlockSpec((C, 1), lambda i: (0, 0)),
                 pl.BlockSpec((C, 1), lambda i: (0, 0))]
    return pl.pallas_call(
        kern,
        out_shape=(jax.ShapeDtypeStruct((C, 1), jnp.float32),
                   jax.ShapeDtypeStruct((C, 1), jnp.float32)),
        grid=(1,),
        in_specs=in_specs,
        out_specs=(pl.BlockSpec((C, 1), lambda i: (0, 0)),
                   pl.BlockSpec((C, 1), lambda i: (0, 0))),
    )(*args)


# ---------------------------------------------------------------------------
# Kernel 2 (fused): one pass over the padded-input phase slabs producing BOTH
#   y_mid = conv1(relu(bn1(x)))   -- laid out as conv2's zero-padded input slab
#   rx    = rconv(x)              -- laid out as conv2's output/residual slab
# ---------------------------------------------------------------------------
def _make_s2_kernel(tap_main, tap_res, tm_main, tm_res):
    """tap_*: 9 (phase_index, lane_shift) pairs in tap order k = dy*3 + dx."""

    def kernel(s0, s1, s2, s3, m0, m1, m2, m3, scale_ref, shift_ref,
               w1_ref, b1_ref, wr_ref, br_ref, ymid_ref, rx_ref,
               a0, a1, a2, a3):
        slabs = (s0, s1, s2, s3)
        masks = (m0, m1, m2, m3)
        scratch = (a0, a1, a2, a3)

        # Fused BN(batch stats) + ReLU prologue, applied once per resident phase slab;
        # the mask keeps the conv's zero-padding (and slot tail) at exactly zero.
        sc = scale_ref[...]
        sf = shift_ref[...]
        for si in range(4):
            scratch[si][...] = (jnp.maximum(slabs[si][...] * sc + sf, 0.0)
                                * masks[si][...])

        cout = w1_ref.shape[1]

        # conv1(relu(bn1(x))): bias folded into the accumulator init (one broadcast),
        # 9 statically shifted in-VMEM views accumulated with 9 MXU dots.
        acc = jnp.broadcast_to(b1_ref[...], (cout, tm_main)).astype(jnp.float32)
        for k, (si, sh) in enumerate(tap_main):
            acc = acc + jnp.dot(w1_ref[k], scratch[si][:, sh:sh + tm_main],
                                preferred_element_type=jnp.float32)
        ymid_ref[...] = acc.astype(ymid_ref.dtype)

        # rconv(x): same resident slabs, raw (no BN/ReLU), no fake residual stream.
        accr = jnp.broadcast_to(br_ref[...], (cout, tm_res)).astype(jnp.float32)
        for k, (si, sh) in enumerate(tap_res):
            accr = accr + jnp.dot(wr_ref[k], slabs[si][:, sh:sh + tm_res],
                                  preferred_element_type=jnp.float32)
        rx_ref[...] = accr.astype(rx_ref.dtype)

    return kernel


def fused_stride2_convs(x_slabs, x_masks, scale1, shift1, w1, b1, wr, br,
                        *, n_img, slot_in, slot_mid, tm_out, wp, front):
    cin = x_slabs[0].shape[0]
    cout = w1.shape[1]

    tap_main, tap_res = [], []
    for dy in range(3):
        for dx in range(3):
            si = (dy % 2) * 2 + (dx % 2)           # space-to-depth phase index
            base = (dy // 2) * wp + (dx // 2)      # lane shift within the phase slab
            tap_main.append((si, base))            # conv1 output at (i+1)*wp+(j+1)
            tap_res.append((si, base + front))     # rconv output at i*wp+j
    kern = _make_s2_kernel(tap_main, tap_res, slot_mid, tm_out)

    in_specs = ([pl.BlockSpec((cin, slot_in), lambda n: (0, n)) for _ in range(4)]
                + [pl.BlockSpec((1, slot_in), lambda n: (0, 0)) for _ in range(4)]
                + [pl.BlockSpec((cin, 1), lambda n: (0, 0)),
                   pl.BlockSpec((cin, 1), lambda n: (0, 0)),
                   pl.BlockSpec((9, cout, cin), lambda n: (0, 0, 0)),
                   pl.BlockSpec((cout, 1), lambda n: (0, 0)),
                   pl.BlockSpec((9, cout, cin), lambda n: (0, 0, 0)),
                   pl.BlockSpec((cout, 1), lambda n: (0, 0))])
    out_shape = (jax.ShapeDtypeStruct((cout, n_img * slot_mid), jnp.float32),
                 jax.ShapeDtypeStruct((cout, n_img * tm_out), jnp.float32))
    out_specs = (pl.BlockSpec((cout, slot_mid), lambda n: (0, n)),
                 pl.BlockSpec((cout, tm_out), lambda n: (0, n)))
    scratch_shapes = [pltpu.VMEM((cin, slot_in), jnp.float32) for _ in range(4)]

    return pl.pallas_call(
        kern,
        out_shape=out_shape,
        grid=(n_img,),
        in_specs=in_specs,
        out_specs=out_specs,
        scratch_shapes=scratch_shapes,
        compiler_params=pltpu.CompilerParams(dimension_semantics=("parallel",)),
    )(*x_slabs, *x_masks, scale1, shift1,
      w1, b1.reshape(cout, 1), wr, br.reshape(cout, 1))


# ---------------------------------------------------------------------------
# Kernel 3 (fused): out = conv2(relu(bn2(y))) + rx
#   consumes conv1's output slab directly as its padded input; residual + bias
#   folded into the accumulator init.
# ---------------------------------------------------------------------------
def _make_c2_kernel(wp, tm_out):
    taps = [dy * wp + dx for dy in range(3) for dx in range(3)]

    def kernel(y_ref, mask_ref, scale_ref, shift_ref, w_ref, b_ref, r_ref,
               o_ref, scratch):
        # BN2 + ReLU prologue; the mask zeroes the 1-px conv padding border and any
        # junk columns, so the slab becomes exactly conv2's zero-padded input.
        scratch[...] = (jnp.maximum(y_ref[...] * scale_ref[...] + shift_ref[...], 0.0)
                        * mask_ref[...])
        cout = w_ref.shape[1]
        acc = (jnp.broadcast_to(b_ref[...], (cout, tm_out)).astype(jnp.float32)
               + r_ref[...])                                   # bias + fused residual
        for k, sh in enumerate(taps):
            acc = acc + jnp.dot(w_ref[k], scratch[:, sh:sh + tm_out],
                                preferred_element_type=jnp.float32)
        o_ref[...] = acc.astype(o_ref.dtype)

    return kernel


def conv2_residual(y_slab, mask_mid, scale2, shift2, w2, b2, rx_slab,
                   *, n_img, slot_mid, tm_out, wp):
    cout = w2.shape[1]
    kern = _make_c2_kernel(wp, tm_out)
    return pl.pallas_call(
        kern,
        out_shape=jax.ShapeDtypeStruct((cout, n_img * tm_out), jnp.float32),
        grid=(n_img,),
        in_specs=[pl.BlockSpec((cout, slot_mid), lambda n: (0, n)),
                  pl.BlockSpec((1, slot_mid), lambda n: (0, 0)),
                  pl.BlockSpec((cout, 1), lambda n: (0, 0)),
                  pl.BlockSpec((cout, 1), lambda n: (0, 0)),
                  pl.BlockSpec((9, cout, cout), lambda n: (0, 0, 0)),
                  pl.BlockSpec((cout, 1), lambda n: (0, 0)),
                  pl.BlockSpec((cout, tm_out), lambda n: (0, n))],
        out_specs=pl.BlockSpec((cout, tm_out), lambda n: (0, n)),
        scratch_shapes=[pltpu.VMEM((cout, slot_mid), jnp.float32)],
        compiler_params=pltpu.CompilerParams(dimension_semantics=("parallel",)),
    )(y_slab, mask_mid, scale2, shift2, w2, b2.reshape(cout, 1), rx_slab)


# ---------------------------------------------------------------------------
# Layout glue (plain JAX, ~1x data: pad / phase-split / flatten / final extract)
# ---------------------------------------------------------------------------
def _phase_slabs(x_cm, wp, front, slot):
    """Space-to-depth phases of the zero-padded (pad=1) input.
    x_cm: (C, N, H, W).  Phase (a, b) holds padded value at (2p+a, 2q+b), flattened
    row-major with row stride `wp` and a `front` lane offset into a per-image slot."""
    C, N, H, W = x_cm.shape
    xp = jnp.pad(x_cm, ((0, 0), (0, 0), (1, 1), (1, 1)))
    slabs = []
    for a in range(2):
        for b in range(2):
            ph = xp[:, :, a::2, b::2]                       # (C, N, ph_h, ph_w)
            ph_h, ph_w = ph.shape[2], ph.shape[3]
            ph = jnp.pad(ph, ((0, 0), (0, 0), (0, 0), (0, wp - ph_w)))
            ph = ph.reshape(C, N, ph_h * wp)
            ph = jnp.pad(ph, ((0, 0), (0, 0), (front, slot - front - ph_h * wp)))
            slabs.append(ph.reshape(C, N * slot))
    return slabs


def _mid_mask(ho, wo, hp, wp, slot_mid):
    """(1, slot_mid) mask: 1 exactly at the real-y positions (i+1)*wp + (j+1)."""
    m = jnp.pad(jnp.ones((ho, wo), jnp.float32),
                ((1, hp - ho - 1), (1, wp - wo - 1)))       # (hp, wp)
    m = jnp.pad(m.reshape(1, hp * wp), ((0, 0), (0, slot_mid - hp * wp)))
    return m


# ---------------------------------------------------------------------------
# DownSampleBlock forward
# ---------------------------------------------------------------------------
def downsample_block(x_nchw, params):
    N, Cin, H, W = x_nchw.shape
    Cout = params["conv1_w"].shape[0]
    Ho, Wo = H // 2, W // 2
    hp, wp = Ho + 2, Wo + 2                                 # conv2 padded geometry
    front = wp + 1                                          # front lane offset of phases

    tm_out = _round_up(Ho * wp, LANE)                       # conv2 / rconv output slot
    slot_mid = _round_up(max(hp * wp, tm_out + 2 * wp + 2), LANE)   # conv1 out / conv2 in
    max_ph_h = (H + 3) // 2
    slot_in = _round_up(max(front + max_ph_h * wp,          # phase data fits
                            slot_mid + wp + 1,              # conv1 max tap read
                            tm_out + front + wp + 1),       # rconv max tap read
                        LANE)

    x_cm = jnp.transpose(x_nchw, (1, 0, 2, 3))              # (Cin, N, H, W) channel-major

    # zero-padded input as 4 space-to-depth phase slabs (built once, read by ONE kernel)
    x_slabs = _phase_slabs(x_cm, wp, front, slot_in)
    x_masks = _phase_slabs(jnp.ones((1, 1, H, W), jnp.float32), wp, front, slot_in)

    def w9(w):  # torch (Cout, Cin, 3, 3) -> (9, Cout, Cin), tap index k = dy*3 + dx
        return jnp.transpose(w, (2, 3, 0, 1)).reshape(9, w.shape[0], w.shape[1])

    # BN1 statistics (tiny single-pass lane-axis reduction kernel)
    scale1, shift1 = bn_scale_shift(x_cm.reshape(Cin, N * H * W),
                                    params["bn1_g"], params["bn1_b"],
                                    count=N * H * W)

    # fused kernel #1: one pass over the input slabs -> y_mid and rx
    y_mid, rx_slab = fused_stride2_convs(
        x_slabs, x_masks, scale1, shift1,
        w9(params["conv1_w"]), params["conv1_b"],
        w9(params["rconv_w"]), params["rconv_b"],
        n_img=N, slot_in=slot_in, slot_mid=slot_mid, tm_out=tm_out,
        wp=wp, front=front)

    # BN2 statistics directly on the mid slab (masked to the real y positions)
    mask_mid = _mid_mask(Ho, Wo, hp, wp, slot_mid)
    scale2, shift2 = bn_scale_shift(y_mid, params["bn2_g"], params["bn2_b"],
                                    count=N * Ho * Wo,
                                    mask=jnp.tile(mask_mid, (1, N)))

    # fused kernel #2: out = conv2(relu(bn2(y))) + rx
    out_slab = conv2_residual(y_mid, mask_mid, scale2, shift2,
                              w9(params["conv2_w"]), params["conv2_b"], rx_slab,
                              n_img=N, slot_mid=slot_mid, tm_out=tm_out, wp=wp)

    out = out_slab.reshape(Cout, N, tm_out)[:, :, :Ho * wp]
    out = out.reshape(Cout, N, Ho, wp)[:, :, :, :Wo]
    return jnp.transpose(out, (1, 0, 2, 3))                 # back to NCHW


# ---------------------------------------------------------------------------
# Pure-JAX reference (for correctness check)
# ---------------------------------------------------------------------------
def ref_forward(x_nchw, params):
    def conv(x, w, b, stride):
        y = jax.lax.conv_general_dilated(
            x, w, (stride, stride), ((1, 1), (1, 1)),
            dimension_numbers=("NCHW", "OIHW", "NCHW"))
        return y + b.reshape(1, -1, 1, 1)

    def bnr(x, g, b):
        mean = jnp.mean(x, axis=(0, 2, 3), keepdims=True)
        var = jnp.mean((x - mean) ** 2, axis=(0, 2, 3), keepdims=True)
        return jnp.maximum((x - mean) / jnp.sqrt(var + EPS) * g.reshape(1, -1, 1, 1)
                           + b.reshape(1, -1, 1, 1), 0.0)

    rx = conv(x_nchw, params["rconv_w"], params["rconv_b"], 2)
    a = bnr(x_nchw, params["bn1_g"], params["bn1_b"])
    y = conv(a, params["conv1_w"], params["conv1_b"], 2)
    a2 = bnr(y, params["bn2_g"], params["bn2_b"])
    return conv(a2, params["conv2_w"], params["conv2_b"], 1) + rx


if __name__ == "__main__":
    key = jax.random.PRNGKey(0)
    in_c, out_c = 4, 8
    k1, k2, k3, kx = jax.random.split(key, 4)

    # Deterministic synthetic parameters (conv weights ~ N(0, 0.1), biases zero,
    # BN affine = identity, as in a freshly-initialized module).
    params = {
        "conv1_w": jax.random.normal(k1, (out_c, in_c, 3, 3), jnp.float32) * 0.1,
        "conv1_b": jnp.zeros((out_c,), jnp.float32),
        "conv2_w": jax.random.normal(k2, (out_c, out_c, 3, 3), jnp.float32) * 0.1,
        "conv2_b": jnp.zeros((out_c,), jnp.float32),
        "rconv_w": jax.random.normal(k3, (out_c, in_c, 3, 3), jnp.float32) * 0.1,
        "rconv_b": jnp.zeros((out_c,), jnp.float32),
        "bn1_g": jnp.ones((in_c,), jnp.float32),
        "bn1_b": jnp.zeros((in_c,), jnp.float32),
        "bn2_g": jnp.ones((out_c,), jnp.float32),
        "bn2_b": jnp.zeros((out_c,), jnp.float32),
    }

    x = jax.random.normal(kx, (2, in_c, 16, 16), jnp.float32)   # NCHW, like PyTorch

    fwd = jax.jit(downsample_block)
    out = jax.block_until_ready(fwd(x, params))
    assert out.shape == (2, out_c, 8, 8)

    ref = jax.block_until_ready(ref_forward(x, params))
    np.testing.assert_allclose(np.asarray(out), np.asarray(ref), atol=1e-4, rtol=1e-4)

    print("KERNEL_OK")
</pallas_src>

<mosaic_0001>
module attributes {stable_mosaic.version = 11 : i64} {
  func.func @kernel(%arg0: i32, %arg1: memref<4x512xf32, #tpu.memory_space<vmem>>, %arg2: memref<4x1xf32, #tpu.memory_space<vmem>>, %arg3: memref<4x1xf32, #tpu.memory_space<vmem>>, %arg4: memref<4x1xf32, #tpu.memory_space<vmem>>, %arg5: memref<4x1xf32, #tpu.memory_space<vmem>>) attributes {dimension_semantics = [#tpu.dimension_semantics<arbitrary>], iteration_bounds = array<i64: 1>, scalar_prefetch = 0 : i64, scratch_operands = 0 : i64, tpu.core_type = #tpu.core_type<tc>, window_params = [{pipeline_mode = #tpu.pipeline_mode<synchronous>, transform_indices = @transform_0, window_bounds = array<i64: 4, 512>}, {pipeline_mode = #tpu.pipeline_mode<synchronous>, transform_indices = @transform_1, window_bounds = array<i64: 4, 1>}, {pipeline_mode = #tpu.pipeline_mode<synchronous>, transform_indices = @transform_2, window_bounds = array<i64: 4, 1>}, {pipeline_mode = #tpu.pipeline_mode<synchronous>, transform_indices = @transform_3, window_bounds = array<i64: 4, 1>}, {pipeline_mode = #tpu.pipeline_mode<synchronous>, transform_indices = @transform_4, window_bounds = array<i64: 4, 1>}]} {
    %c0 = arith.constant 0 : index
    %c0_0 = arith.constant 0 : index
    %0 = vector.load %arg1[%c0, %c0_0] : memref<4x512xf32, #tpu.memory_space<vmem>>, vector<4x512xf32>
    %cst = arith.constant dense<0.000000e+00> : vector<4xf32>
    %1 = vector.multi_reduction <add>, %0, %cst [1] : vector<4x512xf32> to vector<4xf32>
    %2 = vector.shape_cast %1 : vector<4xf32> to vector<4x1xf32>
    %3 = arith.mulf %0, %0 : vector<4x512xf32>
    %cst_1 = arith.constant dense<0.000000e+00> : vector<4xf32>
    %4 = vector.multi_reduction <add>, %3, %cst_1 [1] : vector<4x512xf32> to vector<4xf32>
    %5 = vector.shape_cast %4 : vector<4xf32> to vector<4x1xf32>
    %cst_2 = arith.constant 0.001953125 : f32
    %6 = vector.broadcast %cst_2 : f32 to vector<4x1xf32>
    %7 = arith.mulf %2, %6 : vector<4x1xf32>
    %cst_3 = arith.constant 0.001953125 : f32
    %8 = vector.broadcast %cst_3 : f32 to vector<4x1xf32>
    %9 = arith.mulf %5, %8 : vector<4x1xf32>
    %10 = arith.mulf %7, %7 : vector<4x1xf32>
    %11 = arith.subf %9, %10 : vector<4x1xf32>
    %c0_4 = arith.constant 0 : index
    %c0_5 = arith.constant 0 : index
    %12 = vector.load %arg2[%c0_4, %c0_5] : memref<4x1xf32, #tpu.memory_space<vmem>>, vector<4x1xf32>
    %cst_6 = arith.constant 9.99999974E-6 : f32
    %13 = vector.broadcast %cst_6 : f32 to vector<4x1xf32>
    %14 = arith.addf %11, %13 : vector<4x1xf32>
    %15 = math.rsqrt %14 : vector<4x1xf32>
    %16 = arith.mulf %12, %15 : vector<4x1xf32>
    %c0_7 = arith.constant 0 : index
    %c0_8 = arith.constant 0 : index
    %17 = vector.load %arg4[%c0_7, %c0_8] : memref<4x1xf32, #tpu.memory_space<vmem>>, vector<4x1xf32>
    tpu.vector_store %arg4[%c0_7, %c0_8], %16 {strides = array<i32>} : memref<4x1xf32, #tpu.memory_space<vmem>>, vector<4x1xf32>,
    %c0_9 = arith.constant 0 : index
    %c0_10 = arith.constant 0 : index
    %18 = vector.load %arg3[%c0_9, %c0_10] : memref<4x1xf32, #tpu.memory_space<vmem>>, vector<4x1xf32>
    %19 = arith.mulf %7, %16 : vector<4x1xf32>
    %20 = arith.subf %18, %19 : vector<4x1xf32>
    %c0_11 = arith.constant 0 : index
    %c0_12 = arith.constant 0 : index
    %21 = vector.load %arg5[%c0_11, %c0_12] : memref<4x1xf32, #tpu.memory_space<vmem>>, vector<4x1xf32>
    tpu.vector_store %arg5[%c0_11, %c0_12], %20 {strides = array<i32>} : memref<4x1xf32, #tpu.memory_space<vmem>>, vector<4x1xf32>,
    return
  }
  func.func @transform_0(%arg0: i32) -> (i32, i32) {
    %c0_i32 = arith.constant 0 : i32
    %c0_i32_0 = arith.constant 0 : i32
    %c0_i32_1 = arith.constant 0 : i32
    return %c0_i32, %c0_i32_0 : i32, i32
  }
  func.func @transform_1(%arg0: i32) -> (i32, i32) {
    %c0_i32 = arith.constant 0 : i32
    %c0_i32_0 = arith.constant 0 : i32
    %c0_i32_1 = arith.constant 0 : i32
    return %c0_i32, %c0_i32_0 : i32, i32
  }
  func.func @transform_2(%arg0: i32) -> (i32, i32) {
    %c0_i32 = arith.constant 0 : i32
    %c0_i32_0 = arith.constant 0 : i32
    %c0_i32_1 = arith.constant 0 : i32
    return %c0_i32, %c0_i32_0 : i32, i32
  }
  func.func @transform_3(%arg0: i32) -> (i32, i32) {
    %c0_i32 = arith.constant 0 : i32
    %c0_i32_0 = arith.constant 0 : i32
    %c0_i32_1 = arith.constant 0 : i32
    return %c0_i32, %c0_i32_0 : i32, i32
  }
  func.func @transform_4(%arg0: i32) -> (i32, i32) {
    %c0_i32 = arith.constant 0 : i32
    %c0_i32_0 = arith.constant 0 : i32
    %c0_i32_1 = arith.constant 0 : i32
    return %c0_i32, %c0_i32_0 : i32, i32
  }
}

module attributes {stable_mosaic.version = 11 : i64} {
  func.func @kernel(%arg0: i32, %arg1: memref<4x384xf32, #tpu.memory_space<vmem>>, %arg2: memref<4x384xf32, #tpu.memory_space<vmem>>, %arg3: memref<4x384xf32, #tpu.memory_space<vmem>>, %arg4: memref<4x384xf32, #tpu.memory_space<vmem>>, %arg5: memref<1x384xf32, #tpu.memory_space<vmem>>, %arg6: memref<1x384xf32, #tpu.memory_space<vmem>>, %arg7: memref<1x384xf32, #tpu.memory_space<vmem>>, %arg8: memref<1x384xf32, #tpu.memory_space<vmem>>, %arg9: memref<4x1xf32, #tpu.memory_space<vmem>>, %arg10: memref<4x1xf32, #tpu.memory_space<vmem>>, %arg11: memref<9x8x4xf32, #tpu.memory_space<vmem>>, %arg12: memref<8x1xf32, #tpu.memory_space<vmem>>, %arg13: memref<9x8x4xf32, #tpu.memory_space<vmem>>, %arg14: memref<8x1xf32, #tpu.memory_space<vmem>>, %arg15: memref<8x256xf32, #tpu.memory_space<vmem>>, %arg16: memref<8x128xf32, #tpu.memory_space<vmem>>, %arg17: memref<4x384xf32, #tpu.memory_space<vmem>>, %arg18: memref<4x384xf32, #tpu.memory_space<vmem>>, %arg19: memref<4x384xf32, #tpu.memory_space<vmem>>, %arg20: memref<4x384xf32, #tpu.memory_space<vmem>>) attributes {dimension_semantics = [#tpu.dimension_semantics<parallel>], iteration_bounds = array<i64: 2>, scalar_prefetch = 0 : i64, scratch_operands = 4 : i64, tpu.core_type = #tpu.core_type<tc>, window_params = [{transform_indices = @transform_0, window_bounds = array<i64: 4, 384>}, {transform_indices = @transform_1, window_bounds = array<i64: 4, 384>}, {transform_indices = @transform_2, window_bounds = array<i64: 4, 384>}, {transform_indices = @transform_3, window_bounds = array<i64: 4, 384>}, {pipeline_mode = #tpu.pipeline_mode<synchronous>, transform_indices = @transform_4, window_bounds = array<i64: 1, 384>}, {pipeline_mode = #tpu.pipeline_mode<synchronous>, transform_indices = @transform_5, window_bounds = array<i64: 1, 384>}, {pipeline_mode = #tpu.pipeline_mode<synchronous>, transform_indices = @transform_6, window_bounds = array<i64: 1, 384>}, {pipeline_mode = #tpu.pipeline_mode<synchronous>, transform_indices = @transform_7, window_bounds = array<i64: 1, 384>}, {pipeline_mode = #tpu.pipeline_mode<synchronous>, transform_indices = @transform_8, window_bounds = array<i64: 4, 1>}, {pipeline_mode = #tpu.pipeline_mode<synchronous>, transform_indices = @transform_9, window_bounds = array<i64: 4, 1>}, {pipeline_mode = #tpu.pipeline_mode<synchronous>, transform_indices = @transform_10, window_bounds = array<i64: 9, 8, 4>}, {pipeline_mode = #tpu.pipeline_mode<synchronous>, transform_indices = @transform_11, window_bounds = array<i64: 8, 1>}, {pipeline_mode = #tpu.pipeline_mode<synchronous>, transform_indices = @transform_12, window_bounds = array<i64: 9, 8, 4>}, {pipeline_mode = #tpu.pipeline_mode<synchronous>, transform_indices = @transform_13, window_bounds = array<i64: 8, 1>}, {transform_indices = @transform_14, window_bounds = array<i64: 8, 256>}, {transform_indices = @transform_15, window_bounds = array<i64: 8, 128>}]} {
    %c0 = arith.constant 0 : index
    %c0_0 = arith.constant 0 : index
    %0 = vector.load %arg9[%c0, %c0_0] : memref<4x1xf32, #tpu.memory_space<vmem>>, vector<4x1xf32>
    %c0_1 = arith.constant 0 : index
    %c0_2 = arith.constant 0 : index
    %1 = vector.load %arg10[%c0_1, %c0_2] : memref<4x1xf32, #tpu.memory_space<vmem>>, vector<4x1xf32>
    %c0_3 = arith.constant 0 : index
    %c0_4 = arith.constant 0 : index
    %2 = vector.load %arg1[%c0_3, %c0_4] : memref<4x384xf32, #tpu.memory_space<vmem>>, vector<4x384xf32>
    %3 = vector.broadcast %0 : vector<4x1xf32> to vector<4x384xf32>
    %4 = arith.mulf %2, %3 : vector<4x384xf32>
    %5 = vector.broadcast %1 : vector<4x1xf32> to vector<4x384xf32>
    %6 = arith.addf %4, %5 : vector<4x384xf32>
    %cst = arith.constant 0.000000e+00 : f32
    %7 = vector.broadcast %cst : f32 to vector<4x384xf32>
    %8 = arith.maximumf %6, %7 : vector<4x384xf32>
    %c0_5 = arith.constant 0 : index
    %c0_6 = arith.constant 0 : index
    %9 = vector.load %arg5[%c0_5, %c0_6] : memref<1x384xf32, #tpu.memory_space<vmem>>, vector<1x384xf32>
    %10 = vector.broadcast %9 : vector<1x384xf32> to vector<4x384xf32>
    %11 = arith.mulf %8, %10 : vector<4x384xf32>
    %c0_7 = arith.constant 0 : index
    %c0_8 = arith.constant 0 : index
    %12 = vector.load %arg17[%c0_7, %c0_8] : memref<4x384xf32, #tpu.memory_space<vmem>>, vector<4x384xf32>
    tpu.vector_store %arg17[%c0_7, %c0_8], %11 {strides = array<i32>} : memref<4x384xf32, #tpu.memory_space<vmem>>, vector<4x384xf32>,
    %c0_9 = arith.constant 0 : index
    %c0_10 = arith.constant 0 : index
    %13 = vector.load %arg2[%c0_9, %c0_10] : memref<4x384xf32, #tpu.memory_space<vmem>>, vector<4x384xf32>
    %14 = vector.broadcast %0 : vector<4x1xf32> to vector<4x384xf32>
    %15 = arith.mulf %13, %14 : vector<4x384xf32>
    %16 = vector.broadcast %1 : vector<4x1xf32> to vector<4x384xf32>
    %17 = arith.addf %15, %16 : vector<4x384xf32>
    %cst_11 = arith.constant 0.000000e+00 : f32
    %18 = vector.broadcast %cst_11 : f32 to vector<4x384xf32>
    %19 = arith.maximumf %17, %18 : vector<4x384xf32>
    %c0_12 = arith.constant 0 : index
    %c0_13 = arith.constant 0 : index
    %20 = vector.load %arg6[%c0_12, %c0_13] : memref<1x384xf32, #tpu.memory_space<vmem>>, vector<1x384xf32>
    %21 = vector.broadcast %20 : vector<1x384xf32> to vector<4x384xf32>
    %22 = arith.mulf %19, %21 : vector<4x384xf32>
    %c0_14 = arith.constant 0 : index
    %c0_15 = arith.constant 0 : index
    %23 = vector.load %arg18[%c0_14, %c0_15] : memref<4x384xf32, #tpu.memory_space<vmem>>, vector<4x384xf32>
    tpu.vector_store %arg18[%c0_14, %c0_15], %22 {strides = array<i32>} : memref<4x384xf32, #tpu.memory_space<vmem>>, vector<4x384xf32>,
    %c0_16 = arith.constant 0 : index
    %c0_17 = arith.constant 0 : index
    %24 = vector.load %arg3[%c0_16, %c0_17] : memref<4x384xf32, #tpu.memory_space<vmem>>, vector<4x384xf32>
    %25 = vector.broadcast %0 : vector<4x1xf32> to vector<4x384xf32>
    %26 = arith.mulf %24, %25 : vector<4x384xf32>
    %27 = vector.broadcast %1 : vector<4x1xf32> to vector<4x384xf32>
    %28 = arith.addf %26, %27 : vector<4x384xf32>
    %cst_18 = arith.constant 0.000000e+00 : f32
    %29 = vector.broadcast %cst_18 : f32 to vector<4x384xf32>
    %30 = arith.maximumf %28, %29 : vector<4x384xf32>
    %c0_19 = arith.constant 0 : index
    %c0_20 = arith.constant 0 : index
    %31 = vector.load %arg7[%c0_19, %c0_20] : memref<1x384xf32, #tpu.memory_space<vmem>>, vector<1x384xf32>
    %32 = vector.broadcast %31 : vector<1x384xf32> to vector<4x384xf32>
    %33 = arith.mulf %30, %32 : vector<4x384xf32>
    %c0_21 = arith.constant 0 : index
    %c0_22 = arith.constant 0 : index
    %34 = vector.load %arg19[%c0_21, %c0_22] : memref<4x384xf32, #tpu.memory_space<vmem>>, vector<4x384xf32>
    tpu.vector_store %arg19[%c0_21, %c0_22], %33 {strides = array<i32>} : memref<4x384xf32, #tpu.memory_space<vmem>>, vector<4x384xf32>,
    %c0_23 = arith.constant 0 : index
    %c0_24 = arith.constant 0 : index
    %35 = vector.load %arg4[%c0_23, %c0_24] : memref<4x384xf32, #tpu.memory_space<vmem>>, vector<4x384xf32>
    %36 = vector.broadcast %0 : vector<4x1xf32> to vector<4x384xf32>
    %37 = arith.mulf %35, %36 : vector<4x384xf32>
    %38 = vector.broadcast %1 : vector<4x1xf32> to vector<4x384xf32>
    %39 = arith.addf %37, %38 : vector<4x384xf32>
    %cst_25 = arith.constant 0.000000e+00 : f32
    %40 = vector.broadcast %cst_25 : f32 to vector<4x384xf32>
    %41 = arith.maximumf %39, %40 : vector<4x384xf32>
    %c0_26 = arith.constant 0 : index
    %c0_27 = arith.constant 0 : index
    %42 = vector.load %arg8[%c0_26, %c0_27] : memref<1x384xf32, #tpu.memory_space<vmem>>, vector<1x384xf32>
    %43 = vector.broadcast %42 : vector<1x384xf32> to vector<4x384xf32>
    %44 = arith.mulf %41, %43 : vector<4x384xf32>
    %c0_28 = arith.constant 0 : index
    %c0_29 = arith.constant 0 : index
    %45 = vector.load %arg20[%c0_28, %c0_29] : memref<4x384xf32, #tpu.memory_space<vmem>>, vector<4x384xf32>
    tpu.vector_store %arg20[%c0_28, %c0_29], %44 {strides = array<i32>} : memref<4x384xf32, #tpu.memory_space<vmem>>, vector<4x384xf32>,
    %c0_30 = arith.constant 0 : index
    %c0_31 = arith.constant 0 : index
    %46 = vector.load %arg12[%c0_30, %c0_31] : memref<8x1xf32, #tpu.memory_space<vmem>>, vector<8x1xf32>
    %47 = vector.shape_cast %46 : vector<8x1xf32> to vector<8x1xf32>
    %48 = vector.broadcast %47 : vector<8x1xf32> to vector<8x256xf32>
    %c0_32 = arith.constant 0 : index
    %c0_33 = arith.constant 0 : index
    %c0_34 = arith.constant 0 : index
    %49 = vector.load %arg11[%c0_32, %c0_33, %c0_34] : memref<9x8x4xf32, #tpu.memory_space<vmem>>, vector<1x8x4xf32>
    %50 = vector.shape_cast %49 : vector<1x8x4xf32> to vector<8x4xf32>
    %c0_35 = arith.constant 0 : index
    %c0_36 = arith.constant 0 : index
    %51 = vector.load %arg17[%c0_35, %c0_36] : memref<4x384xf32, #tpu.memory_space<vmem>>, vector<4x256xf32>
    %cst_37 = arith.constant dense<0.000000e+00> : vector<8x256xf32>
    %52 = tpu.matmul %50, %51, %cst_37 {dimension_numbers = #tpu.dot_dimension_numbers<[1], [0], [0], [1], [0, 0, 1, 1], [], []>} : vector<8x4xf32>, vector<4x256xf32>, vector<8x256xf32> -> vector<8x256xf32>
    %53 = arith.addf %48, %52 : vector<8x256xf32>
    %c1 = arith.constant 1 : index
    %c0_38 = arith.constant 0 : index
    %c0_39 = arith.constant 0 : index
    %54 = vector.load %arg11[%c1, %c0_38, %c0_39] : memref<9x8x4xf32, #tpu.memory_space<vmem>>, vector<1x8x4xf32>
    %55 = vector.shape_cast %54 : vector<1x8x4xf32> to vector<8x4xf32>
    %c0_40 = arith.constant 0 : index
    %c0_41 = arith.constant 0 : index
    %56 = vector.load %arg18[%c0_40, %c0_41] : memref<4x384xf32, #tpu.memory_space<vmem>>, vector<4x256xf32>
    %cst_42 = arith.constant dense<0.000000e+00> : vector<8x256xf32>
    %57 = tpu.matmul %55, %56, %cst_42 {dimension_numbers = #tpu.dot_dimension_numbers<[1], [0], [0], [1], [0, 0, 1, 1], [], []>} : vector<8x4xf32>, vector<4x256xf32>, vector<8x256xf32> -> vector<8x256xf32>
    %58 = arith.addf %53, %57 : vector<8x256xf32>
    %c2 = arith.constant 2 : index
    %c0_43 = arith.constant 0 : index
    %c0_44 = arith.constant 0 : index
    %59 = vector.load %arg11[%c2, %c0_43, %c0_44] : memref<9x8x4xf32, #tpu.memory_space<vmem>>, vector<1x8x4xf32>
    %60 = vector.shape_cast %59 : vector<1x8x4xf32> to vector<8x4xf32>
    %c0_45 = arith.constant 0 : index
    %c1_46 = arith.constant 1 : index
    %61 = vector.load %arg17[%c0_45, %c1_46] : memref<4x384xf32, #tpu.memory_space<vmem>>, vector<4x256xf32>
    %cst_47 = arith.constant dense<0.000000e+00> : vector<8x256xf32>
    %62 = tpu.matmul %60, %61, %cst_47 {dimension_numbers = #tpu.dot_dimension_numbers<[1], [0], [0], [1], [0, 0, 1, 1], [], []>} : vector<8x4xf32>, vector<4x256xf32>, vector<8x256xf32> -> vector<8x256xf32>
    %63 = arith.addf %58, %62 : vector<8x256xf32>
    %c3 = arith.constant 3 : index
    %c0_48 = arith.constant 0 : index
    %c0_49 = arith.constant 0 : index
    %64 = vector.load %arg11[%c3, %c0_48, %c0_49] : memref<9x8x4xf32, #tpu.memory_space<vmem>>, vector<1x8x4xf32>
    %65 = vector.shape_cast %64 : vector<1x8x4xf32> to vector<8x4xf32>
    %c0_50 = arith.constant 0 : index
    %c0_51 = arith.constant 0 : index
    %66 = vector.load %arg19[%c0_50, %c0_51] : memref<4x384xf32, #tpu.memory_space<vmem>>, vector<4x256xf32>
    %cst_52 = arith.constant dense<0.000000e+00> : vector<8x256xf32>
    %67 = tpu.matmul %65, %66, %cst_52 {dimension_numbers = #tpu.dot_dimension_numbers<[1], [0], [0], [1], [0, 0, 1, 1], [], []>} : vector<8x4xf32>, vector<4x256xf32>, vector<8x256xf32> -> vector<8x256xf32>
    %68 = arith.addf %63, %67 : vector<8x256xf32>
    %c4 = arith.constant 4 : index
    %c0_53 = arith.constant 0 : index
    %c0_54 = arith.constant 0 : index
    %69 = vector.load %arg11[%c4, %c0_53, %c0_54] : memref<9x8x4xf32, #tpu.memory_space<vmem>>, vector<1x8x4xf32>
    %70 = vector.shape_cast %69 : vector<1x8x4xf32> to vector<8x4xf32>
    %c0_55 = arith.constant 0 : index
    %c0_56 = arith.constant 0 : index
    %71 = vector.load %arg20[%c0_55, %c0_56] : memref<4x384xf32, #tpu.memory_space<vmem>>, vector<4x256xf32>
    %cst_57 = arith.constant dense<0.000000e+00> : vector<8x256xf32>
    %72 = tpu.matmul %70, %71, %cst_57 {dimension_numbers = #tpu.dot_dimension_numbers<[1], [0], [0], [1], [0, 0, 1, 1], [], []>} : vector<8x4xf32>, vector<4x256xf32>, vector<8x256xf32> -> vector<8x256xf32>
    %73 = arith.addf %68, %72 : vector<8x256xf32>
    %c5 = arith.constant 5 : index
    %c0_58 = arith.constant 0 : index
    %c0_59 = arith.constant 0 : index
    %74 = vector.load %arg11[%c5, %c0_58, %c0_59] : memref<9x8x4xf32, #tpu.memory_space<vmem>>, vector<1x8x4xf32>
    %75 = vector.shape_cast %74 : vector<1x8x4xf32> to vector<8x4xf32>
    %c0_60 = arith.constant 0 : index
    %c1_61 = arith.constant 1 : index
    %76 = vector.load %arg19[%c0_60, %c1_61] : memref<4x384xf32, #tpu.memory_space<vmem>>, vector<4x256xf32>
    %cst_62 = arith.constant dense<0.000000e+00> : vector<8x256xf32>
    %77 = tpu.matmul %75, %76, %cst_62 {dimension_numbers = #tpu.dot_dimension_numbers<[1], [0], [0], [1], [0, 0, 1, 1], [], []>} : vector<8x4xf32>, vector<4x256xf32>, vector<8x256xf32> -> vector<8x256xf32>
    %78 = arith.addf %73, %77 : vector<8x256xf32>
    %c6 = arith.constant 6 : index
    %c0_63 = arith.constant 0 : index
    %c0_64 = arith.constant 0 : index
    %79 = vector.load %arg11[%c6, %c0_63, %c0_64] : memref<9x8x4xf32, #tpu.memory_space<vmem>>, vector<1x8x4xf32>
    %80 = vector.shape_cast %79 : vector<1x8x4xf32> to vector<8x4xf32>
    %c0_65 = arith.constant 0 : index
    %c10 = arith.constant 10 : index
    %81 = vector.load %arg17[%c0_65, %c10] : memref<4x384xf32, #tpu.memory_space<vmem>>, vector<4x256xf32>
    %cst_66 = arith.constant dense<0.000000e+00> : vector<8x256xf32>
    %82 = tpu.matmul %80, %81, %cst_66 {dimension_numbers = #tpu.dot_dimension_numbers<[1], [0], [0], [1], [0, 0, 1, 1], [], []>} : vector<8x4xf32>, vector<4x256xf32>, vector<8x256xf32> -> vector<8x256xf32>
    %83 = arith.addf %78, %82 : vector<8x256xf32>
    %c7 = arith.constant 7 : index
    %c0_67 = arith.constant 0 : index
    %c0_68 = arith.constant 0 : index
    %84 = vector.load %arg11[%c7, %c0_67, %c0_68] : memref<9x8x4xf32, #tpu.memory_space<vmem>>, vector<1x8x4xf32>
    %85 = vector.shape_cast %84 : vector<1x8x4xf32> to vector<8x4xf32>
    %c0_69 = arith.constant 0 : index
    %c10_70 = arith.constant 10 : index
    %86 = vector.load %arg18[%c0_69, %c10_70] : memref<4x384xf32, #tpu.memory_space<vmem>>, vector<4x256xf32>
    %cst_71 = arith.constant dense<0.000000e+00> : vector<8x256xf32>
    %87 = tpu.matmul %85, %86, %cst_71 {dimension_numbers = #tpu.dot_dimension_numbers<[1], [0], [0], [1], [0, 0, 1, 1], [], []>} : vector<8x4xf32>, vector<4x256xf32>, vector<8x256xf32> -> vector<8x256xf32>
    %88 = arith.addf %83, %87 : vector<8x256xf32>
    %c8 = arith.constant 8 : index
    %c0_72 = arith.constant 0 : index
    %c0_73 = arith.constant 0 : index
    %89 = vector.load %arg11[%c8, %c0_72, %c0_73] : memref<9x8x4xf32, #tpu.memory_space<vmem>>, vector<1x8x4xf32>
    %90 = vector.shape_cast %89 : vector<1x8x4xf32> to vector<8x4xf32>
    %c0_74 = arith.constant 0 : index
    %c11 = arith.constant 11 : index
    %91 = vector.load %arg17[%c0_74, %c11] : memref<4x384xf32, #tpu.memory_space<vmem>>, vector<4x256xf32>
    %cst_75 = arith.constant dense<0.000000e+00> : vector<8x256xf32>
    %92 = tpu.matmul %90, %91, %cst_75 {dimension_numbers = #tpu.dot_dimension_numbers<[1], [0], [0], [1], [0, 0, 1, 1], [], []>} : vector<8x4xf32>, vector<4x256xf32>, vector<8x256xf32> -> vector<8x256xf32>
    %93 = arith.addf %88, %92 : vector<8x256xf32>
    %c0_76 = arith.constant 0 : index
    %c0_77 = arith.constant 0 : index
    %94 = vector.load %arg15[%c0_76, %c0_77] : memref<8x256xf32, #tpu.memory_space<vmem>>, vector<8x256xf32>
    tpu.vector_store %arg15[%c0_76, %c0_77], %93 {strides = array<i32>} : memref<8x256xf32, #tpu.memory_space<vmem>>, vector<8x256xf32>,
    %c0_78 = arith.constant 0 : index
    %c0_79 = arith.constant 0 : index
    %95 = vector.load %arg14[%c0_78, %c0_79] : memref<8x1xf32, #tpu.memory_space<vmem>>, vector<8x1xf32>
    %96 = vector.shape_cast %95 : vector<8x1xf32> to vector<8x1xf32>
    %97 = vector.broadcast %96 : vector<8x1xf32> to vector<8x128xf32>
    %c0_80 = arith.constant 0 : index
    %c0_81 = arith.constant 0 : index
    %c0_82 = arith.constant 0 : index
    %98 = vector.load %arg13[%c0_80, %c0_81, %c0_82] : memref<9x8x4xf32, #tpu.memory_space<vmem>>, vector<1x8x4xf32>
    %99 = vector.shape_cast %98 : vector<1x8x4xf32> to vector<8x4xf32>
    %c0_83 = arith.constant 0 : index
    %c11_84 = arith.constant 11 : index
    %100 = vector.load %arg1[%c0_83, %c11_84] : memref<4x384xf32, #tpu.memory_space<vmem>>, vector<4x128xf32>
    %cst_85 = arith.constant dense<0.000000e+00> : vector<8x128xf32>
    %101 = tpu.matmul %99, %100, %cst_85 {dimension_numbers = #tpu.dot_dimension_numbers<[1], [0], [0], [1], [0, 0, 1, 1], [], []>} : vector<8x4xf32>, vector<4x128xf32>, vector<8x128xf32> -> vector<8x128xf32>
    %102 = arith.addf %97, %101 : vector<8x128xf32>
    %c1_86 = arith.constant 1 : index
    %c0_87 = arith.constant 0 : index
    %c0_88 = arith.constant 0 : index
    %103 = vector.load %arg13[%c1_86, %c0_87, %c0_88] : memref<9x8x4xf32, #tpu.memory_space<vmem>>, vector<1x8x4xf32>
    %104 = vector.shape_cast %103 : vector<1x8x4xf32> to vector<8x4xf32>
    %c0_89 = arith.constant 0 : index
    %c11_90 = arith.constant 11 : index
    %105 = vector.load %arg2[%c0_89, %c11_90] : memref<4x384xf32, #tpu.memory_space<vmem>>, vector<4x128xf32>
    %cst_91 = arith.constant dense<0.000000e+00> : vector<8x128xf32>
    %106 = tpu.matmul %104, %105, %cst_91 {dimension_numbers = #tpu.dot_dimension_numbers<[1], [0], [0], [1], [0, 0, 1, 1], [], []>} : vector<8x4xf32>, vector<4x128xf32>, vector<8x128xf32> -> vector<8x128xf32>
    %107 = arith.addf %102, %106 : vector<8x128xf32>
    %c2_92 = arith.constant 2 : index
    %c0_93 = arith.constant 0 : index
    %c0_94 = arith.constant 0 : index
    %108 = vector.load %arg13[%c2_92, %c0_93, %c0_94] : memref<9x8x4xf32, #tpu.memory_space<vmem>>, vector<1x8x4xf32>
    %109 = vector.shape_cast %108 : vector<1x8x4xf32> to vector<8x4xf32>
    %c0_95 = arith.constant 0 : index
    %c12 = arith.constant 12 : index
    %110 = vector.load %arg1[%c0_95, %c12] : memref<4x384xf32, #tpu.memory_space<vmem>>, vector<4x128xf32>
    %cst_96 = arith.constant dense<0.000000e+00> : vector<8x128xf32>
    %111 = tpu.matmul %109, %110, %cst_96 {dimension_numbers = #tpu.dot_dimension_numbers<[1], [0], [0], [1], [0, 0, 1, 1], [], []>} : vector<8x4xf32>, vector<4x128xf32>, vector<8x128xf32> -> vector<8x128xf32>
    %112 = arith.addf %107, %111 : vector<8x128xf32>
    %c3_97 = arith.constant 3 : index
    %c0_98 = arith.constant 0 : index
    %c0_99 = arith.constant 0 : index
    %113 = vector.load %arg13[%c3_97, %c0_98, %c0_99] : memref<9x8x4xf32, #tpu.memory_space<vmem>>, vector<1x8x4xf32>
    %114 = vector.shape_cast %113 : vector<1x8x4xf32> to vector<8x4xf32>
    %c0_100 = arith.constant 0 : index
    %c11_101 = arith.constant 11 : index
    %115 = vector.load %arg3[%c0_100, %c11_101] : memref<4x384xf32, #tpu.memory_space<vmem>>, vector<4x128xf32>
    %cst_102 = arith.constant dense<0.000000e+00> : vector<8x128xf32>
    %116 = tpu.matmul %114, %115, %cst_102 {dimension_numbers = #tpu.dot_dimension_numbers<[1], [0], [0], [1], [0, 0, 1, 1], [], []>} : vector<8x4xf32>, vector<4x128xf32>, vector<8x128xf32> -> vector<8x128xf32>
    %117 = arith.addf %112, %116 : vector<8x128xf32>
    %c4_103 = arith.constant 4 : index
    %c0_104 = arith.constant 0 : index
    %c0_105 = arith.constant 0 : index
    %118 = vector.load %arg13[%c4_103, %c0_104, %c0_105] : memref<9x8x4xf32, #tpu.memory_space<vmem>>, vector<1x8x4xf32>
    %119 = vector.shape_cast %118 : vector<1x8x4xf32> to vector<8x4xf32>
    %c0_106 = arith.constant 0 : index
    %c11_107 = arith.constant 11 : index
    %120 = vector.load %arg4[%c0_106, %c11_107] : memref<4x384xf32, #tpu.memory_space<vmem>>, vector<4x128xf32>
    %cst_108 = arith.constant dense<0.000000e+00> : vector<8x128xf32>
    %121 = tpu.matmul %119, %120, %cst_108 {dimension_numbers = #tpu.dot_dimension_numbers<[1], [0], [0], [1], [0, 0, 1, 1], [], []>} : vector<8x4xf32>, vector<4x128xf32>, vector<8x128xf32> -> vector<8x128xf32>
    %122 = arith.addf %117, %121 : vector<8x128xf32>
    %c5_109 = arith.constant 5 : index
    %c0_110 = arith.constant 0 : index
    %c0_111 = arith.constant 0 : index
    %123 = vector.load %arg13[%c5_109, %c0_110, %c0_111] : memref<9x8x4xf32, #tpu.memory_space<vmem>>, vector<1x8x4xf32>
    %124 = vector.shape_cast %123 : vector<1x8x4xf32> to vector<8x4xf32>
    %c0_112 = arith.constant 0 : index
    %c12_113 = arith.constant 12 : index
    %125 = vector.load %arg3[%c0_112, %c12_113] : memref<4x384xf32, #tpu.memory_space<vmem>>, vector<4x128xf32>
    %cst_114 = arith.constant dense<0.000000e+00> : vector<8x128xf32>
    %126 = tpu.matmul %124, %125, %cst_114 {dimension_numbers = #tpu.dot_dimension_numbers<[1], [0], [0], [1], [0, 0, 1, 1], [], []>} : vector<8x4xf32>, vector<4x128xf32>, vector<8x128xf32> -> vector<8x128xf32>
    %127 = arith.addf %122, %126 : vector<8x128xf32>
    %c6_115 = arith.constant 6 : index
    %c0_116 = arith.constant 0 : index
    %c0_117 = arith.constant 0 : index
    %128 = vector.load %arg13[%c6_115, %c0_116, %c0_117] : memref<9x8x4xf32, #tpu.memory_space<vmem>>, vector<1x8x4xf32>
    %129 = vector.shape_cast %128 : vector<1x8x4xf32> to vector<8x4xf32>
    %c0_118 = arith.constant 0 : index
    %c21 = arith.constant 21 : index
    %130 = vector.load %arg1[%c0_118, %c21] : memref<4x384xf32, #tpu.memory_space<vmem>>, vector<4x128xf32>
    %cst_119 = arith.constant dense<0.000000e+00> : vector<8x128xf32>
    %131 = tpu.matmul %129, %130, %cst_119 {dimension_numbers = #tpu.dot_dimension_numbers<[1], [0], [0], [1], [0, 0, 1, 1], [], []>} : vector<8x4xf32>, vector<4x128xf32>, vector<8x128xf32> -> vector<8x128xf32>
    %132 = arith.addf %127, %131 : vector<8x128xf32>
    %c7_120 = arith.constant 7 : index
    %c0_121 = arith.constant 0 : index
    %c0_122 = arith.constant 0 : index
    %133 = vector.load %arg13[%c7_120, %c0_121, %c0_122] : memref<9x8x4xf32, #tpu.memory_space<vmem>>, vector<1x8x4xf32>
    %134 = vector.shape_cast %133 : vector<1x8x4xf32> to vector<8x4xf32>
    %c0_123 = arith.constant 0 : index
    %c21_124 = arith.constant 21 : index
    %135 = vector.load %arg2[%c0_123, %c21_124] : memref<4x384xf32, #tpu.memory_space<vmem>>, vector<4x128xf32>
    %cst_125 = arith.constant dense<0.000000e+00> : vector<8x128xf32>
    %136 = tpu.matmul %134, %135, %cst_125 {dimension_numbers = #tpu.dot_dimension_numbers<[1], [0], [0], [1], [0, 0, 1, 1], [], []>} : vector<8x4xf32>, vector<4x128xf32>, vector<8x128xf32> -> vector<8x128xf32>
    %137 = arith.addf %132, %136 : vector<8x128xf32>
    %c8_126 = arith.constant 8 : index
    %c0_127 = arith.constant 0 : index
    %c0_128 = arith.constant 0 : index
    %138 = vector.load %arg13[%c8_126, %c0_127, %c0_128] : memref<9x8x4xf32, #tpu.memory_space<vmem>>, vector<1x8x4xf32>
    %139 = vector.shape_cast %138 : vector<1x8x4xf32> to vector<8x4xf32>
    %c0_129 = arith.constant 0 : index
    %c22 = arith.constant 22 : index
    %140 = vector.load %arg1[%c0_129, %c22] : memref<4x384xf32, #tpu.memory_space<vmem>>, vector<4x128xf32>
    %cst_130 = arith.constant dense<0.000000e+00> : vector<8x128xf32>
    %141 = tpu.matmul %139, %140, %cst_130 {dimension_numbers = #tpu.dot_dimension_numbers<[1], [0], [0], [1], [0, 0, 1, 1], [], []>} : vector<8x4xf32>, vector<4x128xf32>, vector<8x128xf32> -> vector<8x128xf32>
    %142 = arith.addf %137, %141 : vector<8x128xf32>
    %c0_131 = arith.constant 0 : index
    %c0_132 = arith.constant 0 : index
    %143 = vector.load %arg16[%c0_131, %c0_132] : memref<8x128xf32, #tpu.memory_space<vmem>>, vector<8x128xf32>
    tpu.vector_store %arg16[%c0_131, %c0_132], %142 {strides = array<i32>} : memref<8x128xf32, #tpu.memory_space<vmem>>, vector<8x128xf32>,
    return
  }
  func.func @transform_0(%arg0: i32) -> (i32, i32) {
    %c0_i32 = arith.constant 0 : i32
    %c0_i32_0 = arith.constant 0 : i32
    return %c0_i32, %arg0 : i32, i32
  }
  func.func @transform_1(%arg0: i32) -> (i32, i32) {
    %c0_i32 = arith.constant 0 : i32
    %c0_i32_0 = arith.constant 0 : i32
    return %c0_i32, %arg0 : i32, i32
  }
  func.func @transform_2(%arg0: i32) -> (i32, i32) {
    %c0_i32 = arith.constant 0 : i32
    %c0_i32_0 = arith.constant 0 : i32
    return %c0_i32, %arg0 : i32, i32
  }
  func.func @transform_3(%arg0: i32) -> (i32, i32) {
    %c0_i32 = arith.constant 0 : i32
    %c0_i32_0 = arith.constant 0 : i32
    return %c0_i32, %arg0 : i32, i32
  }
  func.func @transform_4(%arg0: i32) -> (i32, i32) {
    %c0_i32 = arith.constant 0 : i32
    %c0_i32_0 = arith.constant 0 : i32
    %c0_i32_1 = arith.constant 0 : i32
    return %c0_i32, %c0_i32_0 : i32, i32
  }
  func.func @transform_5(%arg0: i32) -> (i32, i32) {
    %c0_i32 = arith.constant 0 : i32
    %c0_i32_0 = arith.constant 0 : i32
    %c0_i32_1 = arith.constant 0 : i32
    return %c0_i32, %c0_i32_0 : i32, i32
  }
  func.func @transform_6(%arg0: i32) -> (i32, i32) {
    %c0_i32 = arith.constant 0 : i32
    %c0_i32_0 = arith.constant 0 : i32
    %c0_i32_1 = arith.constant 0 : i32
    return %c0_i32, %c0_i32_0 : i32, i32
  }
  func.func @transform_7(%arg0: i32) -> (i32, i32) {
    %c0_i32 = arith.constant 0 : i32
    %c0_i32_0 = arith.constant 0 : i32
    %c0_i32_1 = arith.constant 0 : i32
    return %c0_i32, %c0_i32_0 : i32, i32
  }
  func.func @transform_8(%arg0: i32) -> (i32, i32) {
    %c0_i32 = arith.constant 0 : i32
    %c0_i32_0 = arith.constant 0 : i32
    %c0_i32_1 = arith.constant 0 : i32
    return %c0_i32, %c0_i32_0 : i32, i32
  }
  func.func @transform_9(%arg0: i32) -> (i32, i32) {
    %c0_i32 = arith.constant 0 : i32
    %c0_i32_0 = arith.constant 0 : i32
    %c0_i32_1 = arith.constant 0 : i32
    return %c0_i32, %c0_i32_0 : i32, i32
  }
  func.func @transform_10(%arg0: i32) -> (i32, i32, i32) {
    %c0_i32 = arith.constant 0 : i32
    %c0_i32_0 = arith.constant 0 : i32
    %c0_i32_1 = arith.constant 0 : i32
    %c0_i32_2 = arith.constant 0 : i32
    return %c0_i32, %c0_i32_0, %c0_i32_1 : i32, i32, i32
  }
  func.func @transform_11(%arg0: i32) -> (i32, i32) {
    %c0_i32 = arith.constant 0 : i32
    %c0_i32_0 = arith.constant 0 : i32
    %c0_i32_1 = arith.constant 0 : i32
    return %c0_i32, %c0_i32_0 : i32, i32
  }
  func.func @transform_12(%arg0: i32) -> (i32, i32, i32) {
    %c0_i32 = arith.constant 0 : i32
    %c0_i32_0 = arith.constant 0 : i32
    %c0_i32_1 = arith.constant 0 : i32
    %c0_i32_2 = arith.constant 0 : i32
    return %c0_i32, %c0_i32_0, %c0_i32_1 : i32, i32, i32
  }
  func.func @transform_13(%arg0: i32) -> (i32, i32) {
    %c0_i32 = arith.constant 0 : i32
    %c0_i32_0 = arith.constant 0 : i32
    %c0_i32_1 = arith.constant 0 : i32
    return %c0_i32, %c0_i32_0 : i32, i32
  }
  func.func @transform_14(%arg0: i32) -> (i32, i32) {
    %c0_i32 = arith.constant 0 : i32
    %c0_i32_0 = arith.constant 0 : i32
    return %c0_i32, %arg0 : i32, i32
  }
  func.func @transform_15(%arg0: i32) -> (i32, i32) {
    %c0_i32 = arith.constant 0 : i32
    %c0_i32_0 = arith.constant 0 : i32
    return %c0_i32, %arg0 : i32, i32
  }
}

module attributes {stable_mosaic.version = 11 : i64} {
  func.func @kernel(%arg0: i32, %arg1: memref<8x512xf32, #tpu.memory_space<vmem>>, %arg2: memref<1x512xf32, #tpu.memory_space<vmem>>, %arg3: memref<8x1xf32, #tpu.memory_space<vmem>>, %arg4: memref<8x1xf32, #tpu.memory_space<vmem>>, %arg5: memref<8x1xf32, #tpu.memory_space<vmem>>, %arg6: memref<8x1xf32, #tpu.memory_space<vmem>>) attributes {dimension_semantics = [#tpu.dimension_semantics<arbitrary>], iteration_bounds = array<i64: 1>, scalar_prefetch = 0 : i64, scratch_operands = 0 : i64, tpu.core_type = #tpu.core_type<tc>, window_params = [{pipeline_mode = #tpu.pipeline_mode<synchronous>, transform_indices = @transform_0, window_bounds = array<i64: 8, 512>}, {pipeline_mode = #tpu.pipeline_mode<synchronous>, transform_indices = @transform_1, window_bounds = array<i64: 1, 512>}, {pipeline_mode = #tpu.pipeline_mode<synchronous>, transform_indices = @transform_2, window_bounds = array<i64: 8, 1>}, {pipeline_mode = #tpu.pipeline_mode<synchronous>, transform_indices = @transform_3, window_bounds = array<i64: 8, 1>}, {pipeline_mode = #tpu.pipeline_mode<synchronous>, transform_indices = @transform_4, window_bounds = array<i64: 8, 1>}, {pipeline_mode = #tpu.pipeline_mode<synchronous>, transform_indices = @transform_5, window_bounds = array<i64: 8, 1>}]} {
    %c0 = arith.constant 0 : index
    %c0_0 = arith.constant 0 : index
    %0 = vector.load %arg1[%c0, %c0_0] : memref<8x512xf32, #tpu.memory_space<vmem>>, vector<8x512xf32>
    %c0_1 = arith.constant 0 : index
    %c0_2 = arith.constant 0 : index
    %1 = vector.load %arg2[%c0_1, %c0_2] : memref<1x512xf32, #tpu.memory_space<vmem>>, vector<1x512xf32>
    %2 = vector.broadcast %1 : vector<1x512xf32> to vector<8x512xf32>
    %3 = arith.mulf %0, %2 : vector<8x512xf32>
    %cst = arith.constant dense<0.000000e+00> : vector<8xf32>
    %4 = vector.multi_reduction <add>, %3, %cst [1] : vector<8x512xf32> to vector<8xf32>
    %5 = vector.shape_cast %4 : vector<8xf32> to vector<8x1xf32>
    %6 = arith.mulf %0, %0 : vector<8x512xf32>
    %7 = vector.broadcast %1 : vector<1x512xf32> to vector<8x512xf32>
    %8 = arith.mulf %6, %7 : vector<8x512xf32>
    %cst_3 = arith.constant dense<0.000000e+00> : vector<8xf32>
    %9 = vector.multi_reduction <add>, %8, %cst_3 [1] : vector<8x512xf32> to vector<8xf32>
    %10 = vector.shape_cast %9 : vector<8xf32> to vector<8x1xf32>
    %cst_4 = arith.constant 7.812500e-03 : f32
    %11 = vector.broadcast %cst_4 : f32 to vector<8x1xf32>
    %12 = arith.mulf %5, %11 : vector<8x1xf32>
    %cst_5 = arith.constant 7.812500e-03 : f32
    %13 = vector.broadcast %cst_5 : f32 to vector<8x1xf32>
    %14 = arith.mulf %10, %13 : vector<8x1xf32>
    %15 = arith.mulf %12, %12 : vector<8x1xf32>
    %16 = arith.subf %14, %15 : vector<8x1xf32>
    %c0_6 = arith.constant 0 : index
    %c0_7 = arith.constant 0 : index
    %17 = vector.load %arg3[%c0_6, %c0_7] : memref<8x1xf32, #tpu.memory_space<vmem>>, vector<8x1xf32>
    %cst_8 = arith.constant 9.99999974E-6 : f32
    %18 = vector.broadcast %cst_8 : f32 to vector<8x1xf32>
    %19 = arith.addf %16, %18 : vector<8x1xf32>
    %20 = math.rsqrt %19 : vector<8x1xf32>
    %21 = arith.mulf %17, %20 : vector<8x1xf32>
    %c0_9 = arith.constant 0 : index
    %c0_10 = arith.constant 0 : index
    %22 = vector.load %arg5[%c0_9, %c0_10] : memref<8x1xf32, #tpu.memory_space<vmem>>, vector<8x1xf32>
    tpu.vector_store %arg5[%c0_9, %c0_10], %21 {strides = array<i32>} : memref<8x1xf32, #tpu.memory_space<vmem>>, vector<8x1xf32>,
    %c0_11 = arith.constant 0 : index
    %c0_12 = arith.constant 0 : index
    %23 = vector.load %arg4[%c0_11, %c0_12] : memref<8x1xf32, #tpu.memory_space<vmem>>, vector<8x1xf32>
    %24 = arith.mulf %12, %21 : vector<8x1xf32>
    %25 = arith.subf %23, %24 : vector<8x1xf32>
    %c0_13 = arith.constant 0 : index
    %c0_14 = arith.constant 0 : index
    %26 = vector.load %arg6[%c0_13, %c0_14] : memref<8x1xf32, #tpu.memory_space<vmem>>, vector<8x1xf32>
    tpu.vector_store %arg6[%c0_13, %c0_14], %25 {strides = array<i32>} : memref<8x1xf32, #tpu.memory_space<vmem>>, vector<8x1xf32>,
    return
  }
  func.func @transform_0(%arg0: i32) -> (i32, i32) {
    %c0_i32 = arith.constant 0 : i32
    %c0_i32_0 = arith.constant 0 : i32
    %c0_i32_1 = arith.constant 0 : i32
    return %c0_i32, %c0_i32_0 : i32, i32
  }
  func.func @transform_1(%arg0: i32) -> (i32, i32) {
    %c0_i32 = arith.constant 0 : i32
    %c0_i32_0 = arith.constant 0 : i32
    %c0_i32_1 = arith.constant 0 : i32
    return %c0_i32, %c0_i32_0 : i32, i32
  }
  func.func @transform_2(%arg0: i32) -> (i32, i32) {
    %c0_i32 = arith.constant 0 : i32
    %c0_i32_0 = arith.constant 0 : i32
    %c0_i32_1 = arith.constant 0 : i32
    return %c0_i32, %c0_i32_0 : i32, i32
  }
  func.func @transform_3(%arg0: i32) -> (i32, i32) {
    %c0_i32 = arith.constant 0 : i32
    %c0_i32_0 = arith.constant 0 : i32
    %c0_i32_1 = arith.constant 0 : i32
    return %c0_i32, %c0_i32_0 : i32, i32
  }
  func.func @transform_4(%arg0: i32) -> (i32, i32) {
    %c0_i32 = arith.constant 0 : i32
    %c0_i32_0 = arith.constant 0 : i32
    %c0_i32_1 = arith.constant 0 : i32
    return %c0_i32, %c0_i32_0 : i32, i32
  }
  func.func @transform_5(%arg0: i32) -> (i32, i32) {
    %c0_i32 = arith.constant 0 : i32
    %c0_i32_0 = arith.constant 0 : i32
    %c0_i32_1 = arith.constant 0 : i32
    return %c0_i32, %c0_i32_0 : i32, i32
  }
}

module attributes {stable_mosaic.version = 11 : i64} {
  func.func @kernel(%arg0: i32, %arg1: memref<8x256xf32, #tpu.memory_space<vmem>>, %arg2: memref<1x256xf32, #tpu.memory_space<vmem>>, %arg3: memref<8x1xf32, #tpu.memory_space<vmem>>, %arg4: memref<8x1xf32, #tpu.memory_space<vmem>>, %arg5: memref<9x8x8xf32, #tpu.memory_space<vmem>>, %arg6: memref<8x1xf32, #tpu.memory_space<vmem>>, %arg7: memref<8x128xf32, #tpu.memory_space<vmem>>, %arg8: memref<8x128xf32, #tpu.memory_space<vmem>>, %arg9: memref<8x256xf32, #tpu.memory_space<vmem>>) attributes {dimension_semantics = [#tpu.dimension_semantics<parallel>], iteration_bounds = array<i64: 2>, scalar_prefetch = 0 : i64, scratch_operands = 1 : i64, tpu.core_type = #tpu.core_type<tc>, window_params = [{transform_indices = @transform_0, window_bounds = array<i64: 8, 256>}, {pipeline_mode = #tpu.pipeline_mode<synchronous>, transform_indices = @transform_1, window_bounds = array<i64: 1, 256>}, {pipeline_mode = #tpu.pipeline_mode<synchronous>, transform_indices = @transform_2, window_bounds = array<i64: 8, 1>}, {pipeline_mode = #tpu.pipeline_mode<synchronous>, transform_indices = @transform_3, window_bounds = array<i64: 8, 1>}, {pipeline_mode = #tpu.pipeline_mode<synchronous>, transform_indices = @transform_4, window_bounds = array<i64: 9, 8, 8>}, {pipeline_mode = #tpu.pipeline_mode<synchronous>, transform_indices = @transform_5, window_bounds = array<i64: 8, 1>}, {transform_indices = @transform_6, window_bounds = array<i64: 8, 128>}, {transform_indices = @transform_7, window_bounds = array<i64: 8, 128>}]} {
    %c0 = arith.constant 0 : index
    %c0_0 = arith.constant 0 : index
    %0 = vector.load %arg1[%c0, %c0_0] : memref<8x256xf32, #tpu.memory_space<vmem>>, vector<8x256xf32>
    %c0_1 = arith.constant 0 : index
    %c0_2 = arith.constant 0 : index
    %1 = vector.load %arg3[%c0_1, %c0_2] : memref<8x1xf32, #tpu.memory_space<vmem>>, vector<8x1xf32>
    %2 = vector.broadcast %1 : vector<8x1xf32> to vector<8x256xf32>
    %3 = arith.mulf %0, %2 : vector<8x256xf32>
    %c0_3 = arith.constant 0 : index
    %c0_4 = arith.constant 0 : index
    %4 = vector.load %arg4[%c0_3, %c0_4] : memref<8x1xf32, #tpu.memory_space<vmem>>, vector<8x1xf32>
    %5 = vector.broadcast %4 : vector<8x1xf32> to vector<8x256xf32>
    %6 = arith.addf %3, %5 : vector<8x256xf32>
    %cst = arith.constant 0.000000e+00 : f32
    %7 = vector.broadcast %cst : f32 to vector<8x256xf32>
    %8 = arith.maximumf %6, %7 : vector<8x256xf32>
    %c0_5 = arith.constant 0 : index
    %c0_6 = arith.constant 0 : index
    %9 = vector.load %arg2[%c0_5, %c0_6] : memref<1x256xf32, #tpu.memory_space<vmem>>, vector<1x256xf32>
    %10 = vector.broadcast %9 : vector<1x256xf32> to vector<8x256xf32>
    %11 = arith.mulf %8, %10 : vector<8x256xf32>
    %c0_7 = arith.constant 0 : index
    %c0_8 = arith.constant 0 : index
    %12 = vector.load %arg9[%c0_7, %c0_8] : memref<8x256xf32, #tpu.memory_space<vmem>>, vector<8x256xf32>
    tpu.vector_store %arg9[%c0_7, %c0_8], %11 {strides = array<i32>} : memref<8x256xf32, #tpu.memory_space<vmem>>, vector<8x256xf32>,
    %c0_9 = arith.constant 0 : index
    %c0_10 = arith.constant 0 : index
    %13 = vector.load %arg6[%c0_9, %c0_10] : memref<8x1xf32, #tpu.memory_space<vmem>>, vector<8x1xf32>
    %14 = vector.shape_cast %13 : vector<8x1xf32> to vector<8x1xf32>
    %15 = vector.broadcast %14 : vector<8x1xf32> to vector<8x128xf32>
    %c0_11 = arith.constant 0 : index
    %c0_12 = arith.constant 0 : index
    %16 = vector.load %arg7[%c0_11, %c0_12] : memref<8x128xf32, #tpu.memory_space<vmem>>, vector<8x128xf32>
    %17 = arith.addf %15, %16 : vector<8x128xf32>
    %c0_13 = arith.constant 0 : index
    %c0_14 = arith.constant 0 : index
    %c0_15 = arith.constant 0 : index
    %18 = vector.load %arg5[%c0_13, %c0_14, %c0_15] : memref<9x8x8xf32, #tpu.memory_space<vmem>>, vector<1x8x8xf32>
    %19 = vector.shape_cast %18 : vector<1x8x8xf32> to vector<8x8xf32>
    %c0_16 = arith.constant 0 : index
    %c0_17 = arith.constant 0 : index
    %20 = vector.load %arg9[%c0_16, %c0_17] : memref<8x256xf32, #tpu.memory_space<vmem>>, vector<8x128xf32>
    %cst_18 = arith.constant dense<0.000000e+00> : vector<8x128xf32>
    %21 = tpu.matmul %19, %20, %cst_18 {dimension_numbers = #tpu.dot_dimension_numbers<[1], [0], [0], [1], [0, 0, 1, 1], [], []>} : vector<8x8xf32>, vector<8x128xf32>, vector<8x128xf32> -> vector<8x128xf32>
    %22 = arith.addf %17, %21 : vector<8x128xf32>
    %c1 = arith.constant 1 : index
    %c0_19 = arith.constant 0 : index
    %c0_20 = arith.constant 0 : index
    %23 = vector.load %arg5[%c1, %c0_19, %c0_20] : memref<9x8x8xf32, #tpu.memory_space<vmem>>, vector<1x8x8xf32>
    %24 = vector.shape_cast %23 : vector<1x8x8xf32> to vector<8x8xf32>
    %c0_21 = arith.constant 0 : index
    %c1_22 = arith.constant 1 : index
    %25 = vector.load %arg9[%c0_21, %c1_22] : memref<8x256xf32, #tpu.memory_space<vmem>>, vector<8x128xf32>
    %cst_23 = arith.constant dense<0.000000e+00> : vector<8x128xf32>
    %26 = tpu.matmul %24, %25, %cst_23 {dimension_numbers = #tpu.dot_dimension_numbers<[1], [0], [0], [1], [0, 0, 1, 1], [], []>} : vector<8x8xf32>, vector<8x128xf32>, vector<8x128xf32> -> vector<8x128xf32>
    %27 = arith.addf %22, %26 : vector<8x128xf32>
    %c2 = arith.constant 2 : index
    %c0_24 = arith.constant 0 : index
    %c0_25 = arith.constant 0 : index
    %28 = vector.load %arg5[%c2, %c0_24, %c0_25] : memref<9x8x8xf32, #tpu.memory_space<vmem>>, vector<1x8x8xf32>
    %29 = vector.shape_cast %28 : vector<1x8x8xf32> to vector<8x8xf32>
    %c0_26 = arith.constant 0 : index
    %c2_27 = arith.constant 2 : index
    %30 = vector.load %arg9[%c0_26, %c2_27] : memref<8x256xf32, #tpu.memory_space<vmem>>, vector<8x128xf32>
    %cst_28 = arith.constant dense<0.000000e+00> : vector<8x128xf32>
    %31 = tpu.matmul %29, %30, %cst_28 {dimension_numbers = #tpu.dot_dimension_numbers<[1], [0], [0], [1], [0, 0, 1, 1], [], []>} : vector<8x8xf32>, vector<8x128xf32>, vector<8x128xf32> -> vector<8x128xf32>
    %32 = arith.addf %27, %31 : vector<8x128xf32>
    %c3 = arith.constant 3 : index
    %c0_29 = arith.constant 0 : index
    %c0_30 = arith.constant 0 : index
    %33 = vector.load %arg5[%c3, %c0_29, %c0_30] : memref<9x8x8xf32, #tpu.memory_space<vmem>>, vector<1x8x8xf32>
    %34 = vector.shape_cast %33 : vector<1x8x8xf32> to vector<8x8xf32>
    %c0_31 = arith.constant 0 : index
    %c10 = arith.constant 10 : index
    %35 = vector.load %arg9[%c0_31, %c10] : memref<8x256xf32, #tpu.memory_space<vmem>>, vector<8x128xf32>
    %cst_32 = arith.constant dense<0.000000e+00> : vector<8x128xf32>
    %36 = tpu.matmul %34, %35, %cst_32 {dimension_numbers = #tpu.dot_dimension_numbers<[1], [0], [0], [1], [0, 0, 1, 1], [], []>} : vector<8x8xf32>, vector<8x128xf32>, vector<8x128xf32> -> vector<8x128xf32>
    %37 = arith.addf %32, %36 : vector<8x128xf32>
    %c4 = arith.constant 4 : index
    %c0_33 = arith.constant 0 : index
    %c0_34 = arith.constant 0 : index
    %38 = vector.load %arg5[%c4, %c0_33, %c0_34] : memref<9x8x8xf32, #tpu.memory_space<vmem>>, vector<1x8x8xf32>
    %39 = vector.shape_cast %38 : vector<1x8x8xf32> to vector<8x8xf32>
    %c0_35 = arith.constant 0 : index
    %c11 = arith.constant 11 : index
    %40 = vector.load %arg9[%c0_35, %c11] : memref<8x256xf32, #tpu.memory_space<vmem>>, vector<8x128xf32>
    %cst_36 = arith.constant dense<0.000000e+00> : vector<8x128xf32>
    %41 = tpu.matmul %39, %40, %cst_36 {dimension_numbers = #tpu.dot_dimension_numbers<[1], [0], [0], [1], [0, 0, 1, 1], [], []>} : vector<8x8xf32>, vector<8x128xf32>, vector<8x128xf32> -> vector<8x128xf32>
    %42 = arith.addf %37, %41 : vector<8x128xf32>
    %c5 = arith.constant 5 : index
    %c0_37 = arith.constant 0 : index
    %c0_38 = arith.constant 0 : index
    %43 = vector.load %arg5[%c5, %c0_37, %c0_38] : memref<9x8x8xf32, #tpu.memory_space<vmem>>, vector<1x8x8xf32>
    %44 = vector.shape_cast %43 : vector<1x8x8xf32> to vector<8x8xf32>
    %c0_39 = arith.constant 0 : index
    %c12 = arith.constant 12 : index
    %45 = vector.load %arg9[%c0_39, %c12] : memref<8x256xf32, #tpu.memory_space<vmem>>, vector<8x128xf32>
    %cst_40 = arith.constant dense<0.000000e+00> : vector<8x128xf32>
    %46 = tpu.matmul %44, %45, %cst_40 {dimension_numbers = #tpu.dot_dimension_numbers<[1], [0], [0], [1], [0, 0, 1, 1], [], []>} : vector<8x8xf32>, vector<8x128xf32>, vector<8x128xf32> -> vector<8x128xf32>
    %47 = arith.addf %42, %46 : vector<8x128xf32>
    %c6 = arith.constant 6 : index
    %c0_41 = arith.constant 0 : index
    %c0_42 = arith.constant 0 : index
    %48 = vector.load %arg5[%c6, %c0_41, %c0_42] : memref<9x8x8xf32, #tpu.memory_space<vmem>>, vector<1x8x8xf32>
    %49 = vector.shape_cast %48 : vector<1x8x8xf32> to vector<8x8xf32>
    %c0_43 = arith.constant 0 : index
    %c20 = arith.constant 20 : index
    %50 = vector.load %arg9[%c0_43, %c20] : memref<8x256xf32, #tpu.memory_space<vmem>>, vector<8x128xf32>
    %cst_44 = arith.constant dense<0.000000e+00> : vector<8x128xf32>
    %51 = tpu.matmul %49, %50, %cst_44 {dimension_numbers = #tpu.dot_dimension_numbers<[1], [0], [0], [1], [0, 0, 1, 1], [], []>} : vector<8x8xf32>, vector<8x128xf32>, vector<8x128xf32> -> vector<8x128xf32>
    %52 = arith.addf %47, %51 : vector<8x128xf32>
    %c7 = arith.constant 7 : index
    %c0_45 = arith.constant 0 : index
    %c0_46 = arith.constant 0 : index
    %53 = vector.load %arg5[%c7, %c0_45, %c0_46] : memref<9x8x8xf32, #tpu.memory_space<vmem>>, vector<1x8x8xf32>
    %54 = vector.shape_cast %53 : vector<1x8x8xf32> to vector<8x8xf32>
    %c0_47 = arith.constant 0 : index
    %c21 = arith.constant 21 : index
    %55 = vector.load %arg9[%c0_47, %c21] : memref<8x256xf32, #tpu.memory_space<vmem>>, vector<8x128xf32>
    %cst_48 = arith.constant dense<0.000000e+00> : vector<8x128xf32>
    %56 = tpu.matmul %54, %55, %cst_48 {dimension_numbers = #tpu.dot_dimension_numbers<[1], [0], [0], [1], [0, 0, 1, 1], [], []>} : vector<8x8xf32>, vector<8x128xf32>, vector<8x128xf32> -> vector<8x128xf32>
    %57 = arith.addf %52, %56 : vector<8x128xf32>
    %c8 = arith.constant 8 : index
    %c0_49 = arith.constant 0 : index
    %c0_50 = arith.constant 0 : index
    %58 = vector.load %arg5[%c8, %c0_49, %c0_50] : memref<9x8x8xf32, #tpu.memory_space<vmem>>, vector<1x8x8xf32>
    %59 = vector.shape_cast %58 : vector<1x8x8xf32> to vector<8x8xf32>
    %c0_51 = arith.constant 0 : index
    %c22 = arith.constant 22 : index
    %60 = vector.load %arg9[%c0_51, %c22] : memref<8x256xf32, #tpu.memory_space<vmem>>, vector<8x128xf32>
    %cst_52 = arith.constant dense<0.000000e+00> : vector<8x128xf32>
    %61 = tpu.matmul %59, %60, %cst_52 {dimension_numbers = #tpu.dot_dimension_numbers<[1], [0], [0], [1], [0, 0, 1, 1], [], []>} : vector<8x8xf32>, vector<8x128xf32>, vector<8x128xf32> -> vector<8x128xf32>
    %62 = arith.addf %57, %61 : vector<8x128xf32>
    %c0_53 = arith.constant 0 : index
    %c0_54 = arith.constant 0 : index
    %63 = vector.load %arg8[%c0_53, %c0_54] : memref<8x128xf32, #tpu.memory_space<vmem>>, vector<8x128xf32>
    tpu.vector_store %arg8[%c0_53, %c0_54], %62 {strides = array<i32>} : memref<8x128xf32, #tpu.memory_space<vmem>>, vector<8x128xf32>,
    return
  }
  func.func @transform_0(%arg0: i32) -> (i32, i32) {
    %c0_i32 = arith.constant 0 : i32
    %c0_i32_0 = arith.constant 0 : i32
    return %c0_i32, %arg0 : i32, i32
  }
  func.func @transform_1(%arg0: i32) -> (i32, i32) {
    %c0_i32 = arith.constant 0 : i32
    %c0_i32_0 = arith.constant 0 : i32
    %c0_i32_1 = arith.constant 0 : i32
    return %c0_i32, %c0_i32_0 : i32, i32
  }
  func.func @transform_2(%arg0: i32) -> (i32, i32) {
    %c0_i32 = arith.constant 0 : i32
    %c0_i32_0 = arith.constant 0 : i32
    %c0_i32_1 = arith.constant 0 : i32
    return %c0_i32, %c0_i32_0 : i32, i32
  }
  func.func @transform_3(%arg0: i32) -> (i32, i32) {
    %c0_i32 = arith.constant 0 : i32
    %c0_i32_0 = arith.constant 0 : i32
    %c0_i32_1 = arith.constant 0 : i32
    return %c0_i32, %c0_i32_0 : i32, i32
  }
  func.func @transform_4(%arg0: i32) -> (i32, i32, i32) {
    %c0_i32 = arith.constant 0 : i32
    %c0_i32_0 = arith.constant 0 : i32
    %c0_i32_1 = arith.constant 0 : i32
    %c0_i32_2 = arith.constant 0 : i32
    return %c0_i32, %c0_i32_0, %c0_i32_1 : i32, i32, i32
  }
  func.func @transform_5(%arg0: i32) -> (i32, i32) {
    %c0_i32 = arith.constant 0 : i32
    %c0_i32_0 = arith.constant 0 : i32
    %c0_i32_1 = arith.constant 0 : i32
    return %c0_i32, %c0_i32_0 : i32, i32
  }
  func.func @transform_6(%arg0: i32) -> (i32, i32) {
    %c0_i32 = arith.constant 0 : i32
    %c0_i32_0 = arith.constant 0 : i32
    return %c0_i32, %arg0 : i32, i32
  }
  func.func @transform_7(%arg0: i32) -> (i32, i32) {
    %c0_i32 = arith.constant 0 : i32
    %c0_i32_0 = arith.constant 0 : i32
    return %c0_i32, %arg0 : i32, i32
  }
}

</mosaic_0001>

<llo_original>
// kernel: downsample_block.4
$region0: #{downsample_block.4}
  #allocation0 [shape = 'u32[]', space=smem, size = 0x4, offset = 0x4, fixed_abs, tag = 'smem constant byte address 0x4 - core index']
  #allocation1 [shape = 'u32[144,128]{1,0:T(1,128)}', space=vmem, size = 0x12000, scoped, tag = 'internal scratch']
  %s0 = inlined_call_operand.vmem [shape: f32[4,512], index: 0, kind: input, shape index: {}]
  %s1 = inlined_call_operand.vmem [shape: f32[4,1], index: 1, kind: input, shape index: {}]
  %s2 = inlined_call_operand.vmem [shape: f32[4,1], index: 2, kind: input, shape index: {}]
  %s3 = inlined_call_operand.vmem [shape: f32[4,1], index: 3, kind: output, shape index: {0}]
  %s4 = inlined_call_operand.vmem [shape: f32[4,1], index: 4, kind: output, shape index: {1}]
  %5 = xla_tuple %s3, %s4
  %s6 = sld [smem:[#allocation0]]
  $region30: #{downsample_block.4} parent=0
    _
  %s8 = ssub.s32 1, %s6
  %s9 = scalar_select 0, %s8, %s6
  // Predicated region
  $region2: #{downsample_block.4} parent=0 // pred_check
    _
  $region3: #{downsample_block.4} parent=0 // pred_check_branch
    %11 = sbr.rel (0) target = $region5
  $region4: #{downsample_block.4} parent=0 // pred_region
    _
  $region5: #{downsample_block.4} parent=0 // pred_fallthru
    _
  // Predicated region
  $region6: #{downsample_block.4} parent=0 // pred_check
    _
  $region7: #{downsample_block.4} parent=0 // pred_check_branch
    %13 = sbr.rel (0) target = $region9
  $region8: #{downsample_block.4} parent=0 // pred_region
    _
  $region9: #{downsample_block.4} parent=0 // pred_fallthru
    _
  // Predicated region
  $region10: #{downsample_block.4} parent=0 // pred_check
    _
  $region11: #{downsample_block.4} parent=0 // pred_check_branch
    %15 = sbr.rel (0) target = $region13
  $region12: #{downsample_block.4} parent=0 // pred_region
    _
  $region13: #{downsample_block.4} parent=0 // pred_fallthru
    _
  %v16 = vld [vmem:[%s0] sm:$0xff]
  %v17 = vld [vmem:[%s0 + $0x8] sm:$0xff]
  %v20 = vcombine.high %v16, %v16
  %v21 = vcombine.high %v17, %v17
  %vm24 = vcmask 1043456
  %v25 = vsel %vm24, %v16, 0.0
  %v26 = vsel %vm24, %v20, 0.0
  %v27 = vadd.f32 %v25, %v26
  %v28 = vsel %vm24, %v17, 0.0
  %v29 = vadd.f32 %v27, %v28
  %v30 = vsel %vm24, %v21, 0.0
  %v31 = vadd.f32 %v29, %v30
  %32 = vadd.xlane.f32.xlu0 %v31
  %v33 = vpop.xlane.xlu0 %32
  %v34 = vmul.f32 %v16, %v16
  %v35 = vmul.f32 %v17, %v17
  %v38 = vcombine.high %v34, %v34
  %v39 = vcombine.high %v35, %v35
  %v42 = vsel %vm24, %v34, 0.0
  %v43 = vsel %vm24, %v38, 0.0
  %v44 = vadd.f32 %v42, %v43
  %v45 = vsel %vm24, %v35, 0.0
  %v46 = vadd.f32 %v44, %v45
  %v47 = vsel %vm24, %v39, 0.0
  %v48 = vadd.f32 %v46, %v47
  %49 = vadd.xlane.f32.xlu0 %v48
  %v50 = vpop.xlane.xlu0 %49
  %v51 = vmul.f32 %v33, 0.001953125
  %v52 = vmul.f32 %v50, 0.001953125
  %v53 = vmul.f32 %v51, %v51
  %v54 = vsub.f32 %v52, %v53
  %v55 = vld [vmem:[%s1] sm:$0xf]
  %v56 = vadd.f32 %v54, 1e-05
  %v57 = vrsqrt.pop %v56
  %v58 = vmul.f32 %v55, %v57
  %vm59 = vcmask 3072
  %60 = vst.msk [vmem:[%s3] sm:$0xf] %vm59, %v58
  %v61 = vld [vmem:[%s2] sm:$0xf]
  %v62 = vmul.f32 %v51, %v58
  %v63 = vsub.f32 %v61, %v62
  %64 = vst.msk [vmem:[%s4] sm:$0xf] %vm59, %v63
  // Predicated region
  $region14: #{downsample_block.4} parent=0 // pred_check
    _
  $region15: #{downsample_block.4} parent=0 // pred_check_branch
    %66 = sbr.rel (0) target = $region17
  $region16: #{downsample_block.4} parent=0 // pred_region
    _
  $region17: #{downsample_block.4} parent=0 // pred_fallthru
    _
  // Predicated region
  $region18: #{downsample_block.4} parent=0 // pred_check
    _
  $region19: #{downsample_block.4} parent=0 // pred_check_branch
    %68 = sbr.rel (0) target = $region21
  $region20: #{downsample_block.4} parent=0 // pred_region
    _
  $region21: #{downsample_block.4} parent=0 // pred_fallthru
    _
  // Predicated region
  $region22: #{downsample_block.4} parent=0 // pred_check
    _
  $region23: #{downsample_block.4} parent=0 // pred_check_branch
    %70 = sbr.rel (0) target = $region25
  $region24: #{downsample_block.4} parent=0 // pred_region
    _
  $region25: #{downsample_block.4} parent=0 // pred_fallthru
    _
  // Predicated region
  $region26: #{downsample_block.4} parent=0 // pred_check
    _
  $region27: #{downsample_block.4} parent=0 // pred_check_branch
    %72 = sbr.rel (0) target = $region29
  $region28: #{downsample_block.4} parent=0 // pred_region
    _
  $region29: #{downsample_block.4} parent=0 // pred_fallthru
    _

// kernel: downsample_block.6
$region0: #{downsample_block.6}
  #allocation0 [shape = 'u32[]', space=smem, size = 0x4, offset = 0x4, fixed_abs, tag = 'smem constant byte address 0x4 - core index']
  #allocation1 [shape = 'u32[144,128]{1,0:T(1,128)}', space=vmem, size = 0x12000, scoped, tag = 'internal scratch']
  %s0 = inlined_call_operand.vmem [shape: f32[8,512], index: 0, kind: input, shape index: {}]
  %s1 = inlined_call_operand.vmem [shape: f32[1,512], index: 1, kind: input, shape index: {}]
  %s2 = inlined_call_operand.vmem [shape: f32[8,1], index: 2, kind: input, shape index: {}]
  %s3 = inlined_call_operand.vmem [shape: f32[8,1], index: 3, kind: input, shape index: {}]
  %s4 = inlined_call_operand.vmem [shape: f32[8,1], index: 4, kind: output, shape index: {0}]
  %s5 = inlined_call_operand.vmem [shape: f32[8,1], index: 5, kind: output, shape index: {1}]
  %6 = xla_tuple %s4, %s5
  %s7 = sld [smem:[#allocation0]]
  $region34: #{downsample_block.6} parent=0
    _
  %s9 = ssub.s32 1, %s7
  %s10 = scalar_select 0, %s9, %s7
  // Predicated region
  $region2: #{downsample_block.6} parent=0 // pred_check
    _
  $region3: #{downsample_block.6} parent=0 // pred_check_branch
    %12 = sbr.rel (0) target = $region5
  $region4: #{downsample_block.6} parent=0 // pred_region
    _
  $region5: #{downsample_block.6} parent=0 // pred_fallthru
    _
  // Predicated region
  $region6: #{downsample_block.6} parent=0 // pred_check
    _
  $region7: #{downsample_block.6} parent=0 // pred_check_branch
    %14 = sbr.rel (0) target = $region9
  $region8: #{downsample_block.6} parent=0 // pred_region
    _
  $region9: #{downsample_block.6} parent=0 // pred_fallthru
    _
  // Predicated region
  $region10: #{downsample_block.6} parent=0 // pred_check
    _
  $region11: #{downsample_block.6} parent=0 // pred_check_branch
    %16 = sbr.rel (0) target = $region13
  $region12: #{downsample_block.6} parent=0 // pred_region
    _
  $region13: #{downsample_block.6} parent=0 // pred_fallthru
    _
  // Predicated region
  $region14: #{downsample_block.6} parent=0 // pred_check
    _
  $region15: #{downsample_block.6} parent=0 // pred_check_branch
    %18 = sbr.rel (0) target = $region17
  $region16: #{downsample_block.6} parent=0 // pred_region
    _
  $region17: #{downsample_block.6} parent=0 // pred_fallthru
    _
  %v19 = vld [vmem:[%s0] sm:$0xff]
  %v20 = vld [vmem:[%s0 + $0x8] sm:$0xff]
  %v21 = vld [vmem:[%s0 + $0x10] sm:$0xff]
  %v22 = vld [vmem:[%s0 + $0x18] sm:$0xff]
  %v23 = vld [vmem:[%s1] sm:$0xf]
  %v25 = vlaneseq
  %v26 = vshrl.u32 %v25, 7
  %v27 = vsub.s32 0, %v26
  %v28 = vrot.slane %v23, %v27
  %v29 = vlaneseq
  %v30 = vshrl.u32 %v29, 7
  %v31 = vsub.s32 1, %v30
  %v32 = vrot.slane %v23, %v31
  %v33 = vlaneseq
  %v34 = vshrl.u32 %v33, 7
  %v35 = vsub.s32 2, %v34
  %v36 = vrot.slane %v23, %v35
  %v37 = vlaneseq
  %v38 = vshrl.u32 %v37, 7
  %v39 = vsub.s32 3, %v38
  %v40 = vrot.slane %v23, %v39
  %v45 = vmul.f32 %v19, %v28
  %v46 = vmul.f32 %v20, %v32
  %v47 = vmul.f32 %v21, %v36
  %v48 = vmul.f32 %v22, %v40
  %v49 = vadd.f32 %v45, %v46
  %v50 = vadd.f32 %v49, %v47
  %v51 = vadd.f32 %v50, %v48
  %52 = vadd.xlane.f32.xlu0 %v51
  %v53 = vpop.xlane.xlu0 %52
  %v54 = vmul.f32 %v19, %v19
  %v55 = vmul.f32 %v20, %v20
  %v56 = vmul.f32 %v21, %v21
  %v57 = vmul.f32 %v22, %v22
  %v58 = vmul.f32 %v54, %v28
  %v59 = vmul.f32 %v55, %v32
  %v60 = vmul.f32 %v56, %v36
  %v61 = vmul.f32 %v57, %v40
  %v62 = vadd.f32 %v58, %v59
  %v63 = vadd.f32 %v62, %v60
  %v64 = vadd.f32 %v63, %v61
  %65 = vadd.xlane.f32.xlu0 %v64
  %v66 = vpop.xlane.xlu0 %65
  %v67 = vmul.f32 %v53, 0.0078125
  %v68 = vmul.f32 %v66, 0.0078125
  %v69 = vmul.f32 %v67, %v67
  %v70 = vsub.f32 %v68, %v69
  %v71 = vld [vmem:[%s2] sm:$0xff]
  %v72 = vadd.f32 %v70, 1e-05
  %v73 = vrsqrt.pop %v72
  %v74 = vmul.f32 %v71, %v73
  %vm75 = vcmask 7168
  %76 = vst.msk [vmem:[%s4] sm:$0xff] %vm75, %v74
  %v77 = vld [vmem:[%s3] sm:$0xff]
  %v78 = vmul.f32 %v67, %v74
  %v79 = vsub.f32 %v77, %v78
  %80 = vst.msk [vmem:[%s5] sm:$0xff] %vm75, %v79
  // Predicated region
  $region18: #{downsample_block.6} parent=0 // pred_check
    _
  $region19: #{downsample_block.6} parent=0 // pred_check_branch
    %82 = sbr.rel (0) target = $region21
  $region20: #{downsample_block.6} parent=0 // pred_region
    _
  $region21: #{downsample_block.6} parent=0 // pred_fallthru
    _
  // Predicated region
  $region22: #{downsample_block.6} parent=0 // pred_check
    _
  $region23: #{downsample_block.6} parent=0 // pred_check_branch
    %84 = sbr.rel (0) target = $region25
  $region24: #{downsample_block.6} parent=0 // pred_region
    _
  $region25: #{downsample_block.6} parent=0 // pred_fallthru
    _
  // Predicated region
  $region26: #{downsample_block.6} parent=0 // pred_check
    _
  $region27: #{downsample_block.6} parent=0 // pred_check_branch
    %86 = sbr.rel (0) target = $region29
  $region28: #{downsample_block.6} parent=0 // pred_region
    _
  $region29: #{downsample_block.6} parent=0 // pred_fallthru
    _
  // Predicated region
  $region30: #{downsample_block.6} parent=0 // pred_check
    _
  $region31: #{downsample_block.6} parent=0 // pred_check_branch
    %88 = sbr.rel (0) target = $region33
  $region32: #{downsample_block.6} parent=0 // pred_region
    _
  $region33: #{downsample_block.6} parent=0 // pred_fallthru
    _

// kernel: downsample_block.7
$region0: #{downsample_block.7}
  #allocation0 [shape = 'u32[]', space=smem, size = 0x4, offset = 0x4, fixed_abs, tag = 'smem constant byte address 0x4 - core index']
  #allocation1 [shape = 'u32[144,128]{1,0:T(1,128)}', space=vmem, size = 0x12000, scoped, tag = 'internal scratch']
  #allocation2 [shape = 'f32[8,256]{1,0:T(8,128)}', space=vmem, size = 0x2000, scoped, tag = 'scratch operand']
  %s0 = inlined_call_operand.vmem [shape: f32[8,512], index: 0, kind: input, shape index: {}]
  %s1 = inlined_call_operand.vmem [shape: f32[1,256], index: 1, kind: input, shape index: {}]
  %s2 = inlined_call_operand.vmem [shape: f32[8,1], index: 2, kind: input, shape index: {}]
  %s3 = inlined_call_operand.vmem [shape: f32[8,1], index: 3, kind: input, shape index: {}]
  %s4 = inlined_call_operand.vmem [shape: f32[9,8,8], index: 4, kind: input, shape index: {}]
  %s5 = inlined_call_operand.vmem [shape: f32[8,1], index: 5, kind: input, shape index: {}]
  %s6 = inlined_call_operand.vmem [shape: f32[8,256], index: 6, kind: input, shape index: {}]
  %s7 = inlined_call_operand.vmem [shape: f32[8,256], index: 7, kind: output, shape index: {}]
  %s8 = sld [smem:[#allocation0]]
  $region61: #{downsample_block.7} parent=0
    _
  %s10 = ssub.s32 1, %s8
  %s11 = scalar_select 0, %s10, %s8
  loop: start=0, step=1, limit=4
  $region2: #{downsample_block.7} parent=0 // loop_pre_header
    _
  $region3: #{downsample_block.7} parent=0 // loop_header
    %s13 = sphi 0, %s17
    %p14 = scmp.ge.s32.totalorder %s13, 4
    %s23 = sphi 0, %s25
    %s26 = sphi 0, %s23
    %s27 = sphi 0, %s26
    %s43 = sphi 0, %s27
    %s47 = sphi 0, %s47
    %s49 = sphi 0, %s47
    %s50 = sphi 0, %s49
    %s64 = sphi 0, %s50
    %s68 = sphi 0, %s68
    %s70 = sphi 0, %s68
    %s71 = sphi 0, %s70
    %s85 = sphi 0, %s71
    %s89 = sphi 0, %s89
    %s91 = sphi 0, %s89
    %s92 = sphi 0, %s91
    %s106 = sphi 0, %s92
    %s110 = sphi 0, %s110
    %s112 = sphi 0, %s110
    %s113 = sphi 0, %s112
    %s127 = sphi 0, %s113
    %s131 = sphi 0, %s131
    %s133 = sphi 0, %s131
    %s134 = sphi 0, %s133
    %s148 = sphi 0, %s134
    %s154 = sphi 0, %s156
    %s157 = sphi 0, %s154
    %s158 = sphi 0, %s157
    %s174 = sphi 0, %s158
    %s180 = sphi 0, %s182
    %s183 = sphi 0, %s180
    %s184 = sphi 0, %s183
    %s200 = sphi 0, %s184
  $region4: #{downsample_block.7} parent=0 // loop_header_branch
    %16 = sbr.rel (%p14) target = $region8
  $region5: #{downsample_block.7} parent=0 // loop_body
    %s18 = ssub.s32 %s13, 1
    %s19 = ssub.s32 %s13, 2
    %s20 = sadd.s32 %s13, 1
    %s21 = ssub.s32 %s13, %s20
    %p22 = scmp.eq.s32.totalorder %s21, 0
    %s24 = sadd.s32 %s23, 1
    %s25 = scalar_select %p22, %s23, %s24
    %p28 = pneg %p22
    %p29 = scmp.eq.s32.totalorder %s13, 1
    %p30 = por %p28, %p29
    %p31 = scmp.ne.s32.totalorder %s23, %s26
    %p32 = scmp.eq.s32.totalorder %s13, 0
    %p33 = por %p31, %p32
    %p34 = scmp.ne.s32.totalorder %s23, %s26
    %p35 = scmp.eq.s32.totalorder %s18, 1
    %p36 = por %p34, %p35
    %p37 = scmp.ne.s32.totalorder %s26, %s27
    %p38 = scmp.eq.s32.totalorder %s18, 0
    %p39 = por %p37, %p38
    %p40 = scmp.ne.s32.totalorder %s26, %s27
    %p41 = scmp.eq.s32.totalorder %s19, 1
    %p42 = por %p40, %p41
    %p44 = scmp.ne.s32.totalorder %s27, %s43
    %p45 = scmp.eq.s32.totalorder %s19, 0
    %p46 = por %p44, %p45
    %s48 = sadd.s32 %s47, 1
    %p51 = scmp.eq.s32.totalorder %s13, 1
    %p52 = scmp.ne.s32.totalorder %s47, %s49
    %p53 = scmp.eq.s32.totalorder %s13, 0
    %p54 = por %p52, %p53
    %p55 = scmp.ne.s32.totalorder %s47, %s49
    %p56 = scmp.eq.s32.totalorder %s18, 1
    %p57 = por %p55, %p56
    %p58 = scmp.ne.s32.totalorder %s49, %s50
    %p59 = scmp.eq.s32.totalorder %s18, 0
    %p60 = por %p58, %p59
    %p61 = scmp.ne.s32.totalorder %s49, %s50
    %p62 = scmp.eq.s32.totalorder %s19, 1
    %p63 = por %p61, %p62
    %p65 = scmp.ne.s32.totalorder %s50, %s64
    %p66 = scmp.eq.s32.totalorder %s19, 0
    %p67 = por %p65, %p66
    %s69 = sadd.s32 %s68, 1
    %p72 = scmp.eq.s32.totalorder %s13, 1
    %p73 = scmp.ne.s32.totalorder %s68, %s70
    %p74 = scmp.eq.s32.totalorder %s13, 0
    %p75 = por %p73, %p74
    %p76 = scmp.ne.s32.totalorder %s68, %s70
    %p77 = scmp.eq.s32.totalorder %s18, 1
    %p78 = por %p76, %p77
    %p79 = scmp.ne.s32.totalorder %s70, %s71
    %p80 = scmp.eq.s32.totalorder %s18, 0
    %p81 = por %p79, %p80
    %p82 = scmp.ne.s32.totalorder %s70, %s71
    %p83 = scmp.eq.s32.totalorder %s19, 1
    %p84 = por %p82, %p83
    %p86 = scmp.ne.s32.totalorder %s71, %s85
    %p87 = scmp.eq.s32.totalorder %s19, 0
    %p88 = por %p86, %p87
    %s90 = sadd.s32 %s89, 1
    %p93 = scmp.eq.s32.totalorder %s13, 1
    %p94 = scmp.ne.s32.totalorder %s89, %s91
    %p95 = scmp.eq.s32.totalorder %s13, 0
    %p96 = por %p94, %p95
    %p97 = scmp.ne.s32.totalorder %s89, %s91
    %p98 = scmp.eq.s32.totalorder %s18, 1
    %p99 = por %p97, %p98
    %p100 = scmp.ne.s32.totalorder %s91, %s92
    %p101 = scmp.eq.s32.totalorder %s18, 0
    %p102 = por %p100, %p101
    %p103 = scmp.ne.s32.totalorder %s91, %s92
    %p104 = scmp.eq.s32.totalorder %s19, 1
    %p105 = por %p103, %p104
    %p107 = scmp.ne.s32.totalorder %s92, %s106
    %p108 = scmp.eq.s32.totalorder %s19, 0
    %p109 = por %p107, %p108
    %s111 = sadd.s32 %s110, 1
    %p114 = scmp.eq.s32.totalorder %s13, 1
    %p115 = scmp.ne.s32.totalorder %s110, %s112
    %p116 = scmp.eq.s32.totalorder %s13, 0
    %p117 = por %p115, %p116
    %p118 = scmp.ne.s32.totalorder %s110, %s112
    %p119 = scmp.eq.s32.totalorder %s18, 1
    %p120 = por %p118, %p119
    %p121 = scmp.ne.s32.totalorder %s112, %s113
    %p122 = scmp.eq.s32.totalorder %s18, 0
    %p123 = por %p121, %p122
    %p124 = scmp.ne.s32.totalorder %s112, %s113
    %p125 = scmp.eq.s32.totalorder %s19, 1
    %p126 = por %p124, %p125
    %p128 = scmp.ne.s32.totalorder %s113, %s127
    %p129 = scmp.eq.s32.totalorder %s19, 0
    %p130 = por %p128, %p129
    %s132 = sadd.s32 %s131, 1
    %p135 = scmp.eq.s32.totalorder %s13, 1
    %p136 = scmp.ne.s32.totalorder %s131, %s133
    %p137 = scmp.eq.s32.totalorder %s13, 0
    %p138 = por %p136, %p137
    %p139 = scmp.ne.s32.totalorder %s131, %s133
    %p140 = scmp.eq.s32.totalorder %s18, 1
    %p141 = por %p139, %p140
    %p142 = scmp.ne.s32.totalorder %s133, %s134
    %p143 = scmp.eq.s32.totalorder %s18, 0
    %p144 = por %p142, %p143
    %p145 = scmp.ne.s32.totalorder %s133, %s134
    %p146 = scmp.eq.s32.totalorder %s19, 1
    %p147 = por %p145, %p146
    %p149 = scmp.ne.s32.totalorder %s134, %s148
    %p150 = scmp.eq.s32.totalorder %s19, 0
    %p151 = por %p149, %p150
    %s152 = ssub.s32 %s13, %s20
    %p153 = scmp.eq.s32.totalorder %s152, 0
    %s155 = sadd.s32 %s154, 1
    %s156 = scalar_select %p153, %s154, %s155
    %p159 = pneg %p153
    %p160 = scmp.eq.s32.totalorder %s13, 1
    %p161 = por %p159, %p160
    %p162 = scmp.ne.s32.totalorder %s154, %s157
    %p163 = scmp.eq.s32.totalorder %s13, 0
    %p164 = por %p162, %p163
    %p165 = scmp.ne.s32.totalorder %s154, %s157
    %p166 = scmp.eq.s32.totalorder %s18, 1
    %p167 = por %p165, %p166
    %p168 = scmp.ne.s32.totalorder %s157, %s158
    %p169 = scmp.eq.s32.totalorder %s18, 0
    %p170 = por %p168, %p169
    %p171 = scmp.ne.s32.totalorder %s157, %s158
    %p172 = scmp.eq.s32.totalorder %s19, 1
    %p173 = por %p171, %p172
    %p175 = scmp.ne.s32.totalorder %s158, %s174
    %p176 = scmp.eq.s32.totalorder %s19, 0
    %p177 = por %p175, %p176
    %s178 = ssub.s32 %s13, %s20
    %p179 = scmp.eq.s32.totalorder %s178, 0
    %s181 = sadd.s32 %s180, 1
    %s182 = scalar_select %p179, %s180, %s181
    %p185 = pneg %p179
    %p186 = scmp.eq.s32.totalorder %s13, 1
    %p187 = por %p185, %p186
    %p188 = scmp.ne.s32.totalorder %s180, %s183
    %p189 = scmp.eq.s32.totalorder %s13, 0
    %p190 = por %p188, %p189
    %p191 = scmp.ne.s32.totalorder %s180, %s183
    %p192 = scmp.eq.s32.totalorder %s18, 1
    %p193 = por %p191, %p192
    %p194 = scmp.ne.s32.totalorder %s183, %s184
    %p195 = scmp.eq.s32.totalorder %s18, 0
    %p196 = por %p194, %p195
    %p197 = scmp.ne.s32.totalorder %s183, %s184
    %p198 = scmp.eq.s32.totalorder %s19, 1
    %p199 = por %p197, %p198
    %p201 = scmp.ne.s32.totalorder %s184, %s200
    %p202 = scmp.eq.s32.totalorder %s19, 0
    %p203 = por %p201, %p202
    %p204 = scmp.le.s32.totalorder 1, %s13
    %p205 = scmp.lt.s32.totalorder %s13, 3
    %p206 = pnand %p204, %p205
    %p207 = pneg %p206
    // Predicated region
    $region9: #{downsample_block.7} parent=5 // pred_check
      _
    $region10: #{downsample_block.7} parent=5 // pred_check_branch
      %209 = sbr.rel (%p206) target = $region12
    $region11: #{downsample_block.7} parent=5 // pred_region
      %s210 = ssub.s32 %s13, 1
      // Predicated region
      $region13: #{downsample_block.7} parent=11 // pred_check
        %p211 = pneg %p60
      $region14: #{downsample_block.7} parent=11 // pred_check_branch
        %213 = sbr.rel (%p211) target = $region16
      $region15: #{downsample_block.7} parent=11 // pred_region
        _
      $region16: #{downsample_block.7} parent=11 // pred_fallthru
        _
      // Predicated region
      $region17: #{downsample_block.7} parent=11 // pred_check
        %p214 = pneg %p81
      $region18: #{downsample_block.7} parent=11 // pred_check_branch
        %216 = sbr.rel (%p214) target = $region20
      $region19: #{downsample_block.7} parent=11 // pred_region
        _
      $region20: #{downsample_block.7} parent=11 // pred_fallthru
        _
      // Predicated region
      $region21: #{downsample_block.7} parent=11 // pred_check
        %p217 = pneg %p102
      $region22: #{downsample_block.7} parent=11 // pred_check_branch
        %219 = sbr.rel (%p217) target = $region24
      $region23: #{downsample_block.7} parent=11 // pred_region
        _
      $region24: #{downsample_block.7} parent=11 // pred_fallthru
        _
      // Predicated region
      $region25: #{downsample_block.7} parent=11 // pred_check
        %p220 = pneg %p123
      $region26: #{downsample_block.7} parent=11 // pred_check_branch
        %222 = sbr.rel (%p220) target = $region28
      $region27: #{downsample_block.7} parent=11 // pred_region
        _
      $region28: #{downsample_block.7} parent=11 // pred_fallthru
        _
      // Predicated region
      $region29: #{downsample_block.7} parent=11 // pred_check
        %p223 = pneg %p144
      $region30: #{downsample_block.7} parent=11 // pred_check_branch
        %225 = sbr.rel (%p223) target = $region32
      $region31: #{downsample_block.7} parent=11 // pred_region
        _
      $region32: #{downsample_block.7} parent=11 // pred_fallthru
        _
    $region12: #{downsample_block.7} parent=5 // pred_fallthru
      _
    %p226 = scmp.lt.s32.totalorder %s13, 2
    // Predicated region
    $region33: #{downsample_block.7} parent=5 // pred_check
      %p227 = pneg %p226
    $region34: #{downsample_block.7} parent=5 // pred_check_branch
      %229 = sbr.rel (%p227) target = $region36
    $region35: #{downsample_block.7} parent=5 // pred_region
      // Predicated region
      $region37: #{downsample_block.7} parent=35 // pred_check
        %p230 = pneg %p33
      $region38: #{downsample_block.7} parent=35 // pred_check_branch
        %232 = sbr.rel (%p230) target = $region40
      $region39: #{downsample_block.7} parent=35 // pred_region
        %s233 = smul.u32 2, %s13
        %p234 = scmp.lt.s32.totalorder %s233, 3
        %s235 = scalar_select %p234, %s233, 3
        %s236 = smul.addr %s235, 8
        %s237 = scalar_lea.vmem %s0, %s236
        %s238 = smul.u32 2, %s13
      $region40: #{downsample_block.7} parent=35 // pred_fallthru
        _
      // Predicated region
      $region41: #{downsample_block.7} parent=35 // pred_check
        %p239 = pneg %p164
      $region42: #{downsample_block.7} parent=35 // pred_check_branch
        %241 = sbr.rel (%p239) target = $region44
      $region43: #{downsample_block.7} parent=35 // pred_region
        %p242 = scmp.lt.s32.totalorder %s13, 1
        %s243 = scalar_select %p242, %s13, 1
        %s244 = smul.addr %s243, 8
        %s245 = scalar_lea.vmem %s6, %s244
      $region44: #{downsample_block.7} parent=35 // pred_fallthru
        _
    $region36: #{downsample_block.7} parent=5 // pred_fallthru
      _
    %p246 = scmp.le.s32.totalorder 1, %s13
    %p247 = scmp.lt.s32.totalorder %s13, 3
    %p248 = pnand %p246, %p247
    %p249 = pneg %p248
    // Predicated region
    $region45: #{downsample_block.7} parent=5 // pred_check
      _
    $region46: #{downsample_block.7} parent=5 // pred_check_branch
      %251 = sbr.rel (%p248) target = $region48
    $region47: #{downsample_block.7} parent=5 // pred_region
      %s252 = ssub.s32 %s13, 1
      %s253 = smul.u32 2, %s18
      %p254 = scmp.lt.s32.totalorder %s253, 3
      %s255 = scalar_select %p254, %s253, 3
      %s256 = smul.addr %s255, 8
      %s257 = scalar_lea.vmem %s0, %s256
      %p258 = pneg %p39
      %p259 = pneg %p36
      %p260 = pneg %p60
      %p261 = pneg %p57
      %p262 = pneg %p81
      %p263 = pneg %p78
      %p264 = pneg %p102
      %p265 = pneg %p99
      %p266 = pneg %p123
      %p267 = pneg %p120
      %p268 = pneg %p144
      %p269 = pneg %p141
      %p270 = scmp.lt.s32.totalorder %s18, 1
      %s271 = scalar_select %p270, %s18, 1
      %s272 = smul.addr %s271, 8
      %s273 = scalar_lea.vmem %s6, %s272
      %p274 = pneg %p170
      %p275 = pneg %p167
      %p276 = pneg %p196
      %p277 = pneg %p193
      %p278 = scmp.lt.s32.totalorder %s18, 1
      %s279 = scalar_select %p278, %s18, 1
      %s280 = smul.addr %s279, 8
      %s281 = scalar_lea.vmem %s7, %s280
      %s282 = smul.u32 2, %s18
      %p283 = scmp.lt.s32.totalorder %s282, 3
      %s284 = scalar_select %p283, %s282, 3
      %s285 = smul.addr %s284, 8
      %s286 = scalar_lea.vmem %s0, %s285
      %s287 = smul.u32 2, %s18
      %p288 = scmp.lt.s32.totalorder %s18, 1
      %s289 = scalar_select %p288, %s18, 1
      %s290 = smul.addr %s289, 8
      %s291 = scalar_lea.vmem %s6, %s290
      %p292 = scmp.lt.s32.totalorder %s18, 1
      %s293 = scalar_select %p292, %s18, 1
      %s294 = smul.addr %s293, 8
      %s295 = scalar_lea.vmem %s7, %s294
      %v296 = vld [vmem:[%s286] sm:$0xff]
      %v297 = vld [vmem:[%s286 + $0x8] sm:$0xff]
      %v298 = vld [vmem:[%s2] sm:$0xff]
      %300 = vset.pattern.permute.xlu0 0
      %301 = vperm.xlu0 %300, %v298
      %v302 = vpop.permute.xlu0 %301
      %v304 = vmul.f32 %v296, %v302
      %v305 = vmul.f32 %v297, %v302
      %v306 = vld [vmem:[%s3] sm:$0xff]
      %308 = vset.pattern.permute.xlu0 0
      %309 = vperm.xlu0 %308, %v306
      %v310 = vpop.permute.xlu0 %309
      %v312 = vadd.f32 %v304, %v310
      %v313 = vadd.f32 %v305, %v310
      %v314 = vmax.f32 %v312, 0.0
      %v315 = vmax.f32 %v313, 0.0
      %v316 = vld [vmem:[%s1] sm:$0x3]
      %v318 = vlaneseq
      %v319 = vshrl.u32 %v318, 7
      %v320 = vsub.s32 0, %v319
      %v321 = vrot.slane %v316, %v320
      %v322 = vlaneseq
      %v323 = vshrl.u32 %v322, 7
      %v324 = vsub.s32 1, %v323
      %v325 = vrot.slane %v316, %v324
      %v328 = vmul.f32 %v314, %v321
      %v329 = vmul.f32 %v315, %v325
      %330 = vst [vmem:[#allocation2] sm:$0xff] %v328
      %331 = vst [vmem:[#allocation2 + $0x8] sm:$0xff] %v329
      %v332 = vld [vmem:[%s5] sm:$0xff]
      %334 = vset.pattern.permute.xlu0 0
      %335 = vperm.xlu0 %334, %v332
      %v336 = vpop.permute.xlu0 %335
      %v338 = vld [vmem:[%s291] sm:$0xff]
      %v339 = vadd.f32 %v336, %v338
      %v340 = vld [vmem:[%s4] sm:$0xff]
      %v341 = vld [vmem:[#allocation2] sm:$0xff]
      %vm342 = vcmask 64512
      %v344 = vsel %vm342, %v340, 0
      %346 = vmatprep.subr.mxu0 0.0
      %347 = vmatpush1.msra.mxu0 %v341
      %348 = vmatprep.subr.mxu0 0.0
      %349 = vmatpush1.msra.mxu0 0.0
      %350 = vmatprep.subr.mxu0 0.0
      %351 = vmatpush1.msra.mxu0 0.0
      %352 = vmatprep.subr.mxu0 0.0
      %353 = vmatpush1.msra.mxu0 0.0
      %354 = vmatprep.subr.mxu0 0.0
      %355 = vmatpush1.msra.mxu0 0.0
      %356 = vmatprep.subr.mxu0 0.0
      %357 = vmatpush1.msra.mxu0 0.0
      %358 = vmatprep.subr.mxu0 0.0
      %359 = vmatpush1.msra.mxu0 0.0
      %360 = vmatprep.subr.mxu0 0.0
      %361 = vmatpush1.msra.mxu0 0.0
      %362 = vmatprep.subr.mxu0 0.0
      %363 = vmatpush1.msra.mxu0 0.0
      %364 = vmatprep.subr.mxu0 0.0
      %365 = vmatpush1.msra.mxu0 0.0
      %366 = vmatprep.subr.mxu0 0.0
      %367 = vmatpush1.msra.mxu0 0.0
      %368 = vmatprep.subr.mxu0 0.0
      %369 = vmatpush1.msra.mxu0 0.0
      %370 = vmatprep.subr.mxu0 0.0
      %371 = vmatpush1.msra.mxu0 0.0
      %372 = vmatprep.subr.mxu0 0.0
      %373 = vmatpush1.msra.mxu0 0.0
      %374 = vmatprep.subr.mxu0 0.0
      %375 = vmatpush1.msra.mxu0 0.0
      %376 = vmatprep.subr.mxu0 0.0
      %377 = vmatpush1.msra.mxu0 0.0
      %378 = vmatprep.subr.mxu0 0.0
      %379 = vmatpush1.msra.mxu0 0.0
      %380 = vmatprep.subr.mxu0 0.0
      %381 = vmatpush1.msra.mxu0 0.0
      %382 = vmatprep.subr.mxu0 0.0
      %383 = vmatpush1.msra.mxu0 0.0
      %384 = vmatprep.subr.mxu0 0.0
      %385 = vmatpush1.msra.mxu0 0.0
      %386 = vmatprep.subr.mxu0 0.0
      %387 = vmatpush1.msra.mxu0 0.0
      %388 = vmatprep.subr.mxu0 0.0
      %389 = vmatpush1.msra.mxu0 0.0
      %390 = vmatprep.subr.mxu0 0.0
      %391 = vmatpush1.msra.mxu0 0.0
      %392 = vmatprep.subr.mxu0 0.0
      %393 = vmatpush1.msra.mxu0 0.0
      %394 = vmatprep.subr.mxu0 0.0
      %395 = vmatpush1.msra.mxu0 0.0
      %396 = vmatprep.subr.mxu0 0.0
      %397 = vmatpush1.msra.mxu0 0.0
      %398 = vmatprep.subr.mxu0 0.0
      %399 = vmatpush1.msra.mxu0 0.0
      %400 = vmatprep.subr.mxu0 0.0
      %401 = vmatpush1.msra.mxu0 0.0
      %402 = vmatprep.subr.mxu0 0.0
      %403 = vmatpush1.msra.mxu0 0.0
      %404 = vmatprep.subr.mxu0 0.0
      %405 = vmatpush1.msra.mxu0 0.0
      %406 = vmatprep.subr.mxu0 0.0
      %407 = vmatpush1.msra.mxu0 0.0
      %408 = vmatprep.subr.mxu0 0.0
      %409 = vmatpush1.msra.mxu0 0.0
      %410 = vmatprep.mubr.f32.mxu0 0.0
      %411 = vmatmul.mubr.f32.gmra.mrb[0].mxu0 %v344
      %v412 = vpop.f32.mrb[0].mxu0
      %v413 = vadd.f32 0.0, %v412
      %v414 = vpop.f32.mrb[0].mxu0
      %415 = vdwg.mxu0
      %v416 = vadd.f32 %v339, %v413
      %s417 = scalar_lea.vmem %s4, 8
      %v418 = vld [vmem:[%s417] sm:$0xff]
      %v419 = vld [vmem:[#allocation2] sm:$0xff]
      %v420 = vld [vmem:[#allocation2 + $0x8] sm:$0xff]
      %423 = vrot.lane.b32.xlu0 %v419, 127
      %v424 = vpop.permute.xlu0 %423
      %425 = vrot.lane.b32.xlu0 %v420, 127
      %v426 = vpop.permute.xlu0 %425
      %vm427 = vcmask 1039360
      %v428 = vsel %vm427, %v424, %v426
      %v431 = vsel %vm342, %v418, 0
      %433 = vmatprep.subr.mxu0 0.0
      %434 = vmatpush1.msra.mxu0 %v428
      %435 = vmatprep.subr.mxu0 0.0
      %436 = vmatpush1.msra.mxu0 0.0
      %437 = vmatprep.subr.mxu0 0.0
      %438 = vmatpush1.msra.mxu0 0.0
      %439 = vmatprep.subr.mxu0 0.0
      %440 = vmatpush1.msra.mxu0 0.0
      %441 = vmatprep.subr.mxu0 0.0
      %442 = vmatpush1.msra.mxu0 0.0
      %443 = vmatprep.subr.mxu0 0.0
      %444 = vmatpush1.msra.mxu0 0.0
      %445 = vmatprep.subr.mxu0 0.0
      %446 = vmatpush1.msra.mxu0 0.0
      %447 = vmatprep.subr.mxu0 0.0
      %448 = vmatpush1.msra.mxu0 0.0
      %449 = vmatprep.subr.mxu0 0.0
      %450 = vmatpush1.msra.mxu0 0.0
      %451 = vmatprep.subr.mxu0 0.0
      %452 = vmatpush1.msra.mxu0 0.0
      %453 = vmatprep.subr.mxu0 0.0
      %454 = vmatpush1.msra.mxu0 0.0
      %455 = vmatprep.subr.mxu0 0.0
      %456 = vmatpush1.msra.mxu0 0.0
      %457 = vmatprep.subr.mxu0 0.0
      %458 = vmatpush1.msra.mxu0 0.0
      %459 = vmatprep.subr.mxu0 0.0
      %460 = vmatpush1.msra.mxu0 0.0
      %461 = vmatprep.subr.mxu0 0.0
      %462 = vmatpush1.msra.mxu0 0.0
      %463 = vmatprep.subr.mxu0 0.0
      %464 = vmatpush1.msra.mxu0 0.0
      %465 = vmatprep.subr.mxu0 0.0
      %466 = vmatpush1.msra.mxu0 0.0
      %467 = vmatprep.subr.mxu0 0.0
      %468 = vmatpush1.msra.mxu0 0.0
      %469 = vmatprep.subr.mxu0 0.0
      %470 = vmatpush1.msra.mxu0 0.0
      %471 = vmatprep.subr.mxu0 0.0
      %472 = vmatpush1.msra.mxu0 0.0
      %473 = vmatprep.subr.mxu0 0.0
      %474 = vmatpush1.msra.mxu0 0.0
      %475 = vmatprep.subr.mxu0 0.0
      %476 = vmatpush1.msra.mxu0 0.0
      %477 = vmatprep.subr.mxu0 0.0
      %478 = vmatpush1.msra.mxu0 0.0
      %479 = vmatprep.subr.mxu0 0.0
      %480 = vmatpush1.msra.mxu0 0.0
      %481 = vmatprep.subr.mxu0 0.0
      %482 = vmatpush1.msra.mxu0 0.0
      %483 = vmatprep.subr.mxu0 0.0
      %484 = vmatpush1.msra.mxu0 0.0
      %485 = vmatprep.subr.mxu0 0.0
      %486 = vmatpush1.msra.mxu0 0.0
      %487 = vmatprep.subr.mxu0 0.0
      %488 = vmatpush1.msra.mxu0 0.0
      %489 = vmatprep.subr.mxu0 0.0
      %490 = vmatpush1.msra.mxu0 0.0
      %491 = vmatprep.subr.mxu0 0.0
      %492 = vmatpush1.msra.mxu0 0.0
      %493 = vmatprep.subr.mxu0 0.0
      %494 = vmatpush1.msra.mxu0 0.0
      %495 = vmatprep.subr.mxu0 0.0
      %496 = vmatpush1.msra.mxu0 0.0
      %497 = vmatprep.mubr.f32.mxu0 0.0
      %498 = vmatmul.mubr.f32.gmra.mrb[0].mxu0 %v431
      %v499 = vpop.f32.mrb[0].mxu0
      %v500 = vadd.f32 0.0, %v499
      %v501 = vpop.f32.mrb[0].mxu0
      %502 = vdwg.mxu0
      %v503 = vadd.f32 %v416, %v500
      %s504 = scalar_lea.vmem %s4, 16
      %v505 = vld [vmem:[%s504] sm:$0xff]
      %506 = vrot.lane.b32.xlu0 %v419, 126
      %v507 = vpop.permute.xlu0 %506
      %508 = vrot.lane.b32.xlu0 %v420, 126
      %v509 = vpop.permute.xlu0 %508
      %vm510 = vcmask 1031168
      %v511 = vsel %vm510, %v507, %v509
      %v514 = vsel %vm342, %v505, 0
      %516 = vmatprep.subr.mxu0 0.0
      %517 = vmatpush1.msra.mxu0 %v511
      %518 = vmatprep.subr.mxu0 0.0
      %519 = vmatpush1.msra.mxu0 0.0
      %520 = vmatprep.subr.mxu0 0.0
      %521 = vmatpush1.msra.mxu0 0.0
      %522 = vmatprep.subr.mxu0 0.0
      %523 = vmatpush1.msra.mxu0 0.0
      %524 = vmatprep.subr.mxu0 0.0
      %525 = vmatpush1.msra.mxu0 0.0
      %526 = vmatprep.subr.mxu0 0.0
      %527 = vmatpush1.msra.mxu0 0.0
      %528 = vmatprep.subr.mxu0 0.0
      %529 = vmatpush1.msra.mxu0 0.0
      %530 = vmatprep.subr.mxu0 0.0
      %531 = vmatpush1.msra.mxu0 0.0
      %532 = vmatprep.subr.mxu0 0.0
      %533 = vmatpush1.msra.mxu0 0.0
      %534 = vmatprep.subr.mxu0 0.0
      %535 = vmatpush1.msra.mxu0 0.0
      %536 = vmatprep.subr.mxu0 0.0
      %537 = vmatpush1.msra.mxu0 0.0
      %538 = vmatprep.subr.mxu0 0.0
      %539 = vmatpush1.msra.mxu0 0.0
      %540 = vmatprep.subr.mxu0 0.0
      %541 = vmatpush1.msra.mxu0 0.0
      %542 = vmatprep.subr.mxu0 0.0
      %543 = vmatpush1.msra.mxu0 0.0
      %544 = vmatprep.subr.mxu0 0.0
      %545 = vmatpush1.msra.mxu0 0.0
      %546 = vmatprep.subr.mxu0 0.0
      %547 = vmatpush1.msra.mxu0 0.0
      %548 = vmatprep.subr.mxu0 0.0
      %549 = vmatpush1.msra.mxu0 0.0
      %550 = vmatprep.subr.mxu0 0.0
      %551 = vmatpush1.msra.mxu0 0.0
      %552 = vmatprep.subr.mxu0 0.0
      %553 = vmatpush1.msra.mxu0 0.0
      %554 = vmatprep.subr.mxu0 0.0
      %555 = vmatpush1.msra.mxu0 0.0
      %556 = vmatprep.subr.mxu0 0.0
      %557 = vmatpush1.msra.mxu0 0.0
      %558 = vmatprep.subr.mxu0 0.0
      %559 = vmatpush1.msra.mxu0 0.0
      %560 = vmatprep.subr.mxu0 0.0
      %561 = vmatpush1.msra.mxu0 0.0
      %562 = vmatprep.subr.mxu0 0.0
      %563 = vmatpush1.msra.mxu0 0.0
      %564 = vmatprep.subr.mxu0 0.0
      %565 = vmatpush1.msra.mxu0 0.0
      %566 = vmatprep.subr.mxu0 0.0
      %567 = vmatpush1.msra.mxu0 0.0
      %568 = vmatprep.subr.mxu0 0.0
      %569 = vmatpush1.msra.mxu0 0.0
      %570 = vmatprep.subr.mxu0 0.0
      %571 = vmatpush1.msra.mxu0 0.0
      %572 = vmatprep.subr.mxu0 0.0
      %573 = vmatpush1.msra.mxu0 0.0
      %574 = vmatprep.subr.mxu0 0.0
      %575 = vmatpush1.msra.mxu0 0.0
      %576 = vmatprep.subr.mxu0 0.0
      %577 = vmatpush1.msra.mxu0 0.0
      %578 = vmatprep.subr.mxu0 0.0
      %579 = vmatpush1.msra.mxu0 0.0
      %580 = vmatprep.mubr.f32.mxu0 0.0
      %581 = vmatmul.mubr.f32.gmra.mrb[0].mxu0 %v514
      %v582 = vpop.f32.mrb[0].mxu0
      %v583 = vadd.f32 0.0, %v582
      %v584 = vpop.f32.mrb[0].mxu0
      %585 = vdwg.mxu0
      %v586 = vadd.f32 %v503, %v583
      %s587 = scalar_lea.vmem %s4, 24
      %v588 = vld [vmem:[%s587] sm:$0xff]
      %589 = vrot.lane.b32.xlu0 %v419, 118
      %v590 = vpop.permute.xlu0 %589
      %591 = vrot.lane.b32.xlu0 %v420, 118
      %v592 = vpop.permute.xlu0 %591
      %vm593 = vcmask 965632
      %v594 = vsel %vm593, %v590, %v592
      %v597 = vsel %vm342, %v588, 0
      %599 = vmatprep.subr.mxu0 0.0
      %600 = vmatpush1.msra.mxu0 %v594
      %601 = vmatprep.subr.mxu0 0.0
      %602 = vmatpush1.msra.mxu0 0.0
      %603 = vmatprep.subr.mxu0 0.0
      %604 = vmatpush1.msra.mxu0 0.0
      %605 = vmatprep.subr.mxu0 0.0
      %606 = vmatpush1.msra.mxu0 0.0
      %607 = vmatprep.subr.mxu0 0.0
      %608 = vmatpush1.msra.mxu0 0.0
      %609 = vmatprep.subr.mxu0 0.0
      %610 = vmatpush1.msra.mxu0 0.0
      %611 = vmatprep.subr.mxu0 0.0
      %612 = vmatpush1.msra.mxu0 0.0
      %613 = vmatprep.subr.mxu0 0.0
      %614 = vmatpush1.msra.mxu0 0.0
      %615 = vmatprep.subr.mxu0 0.0
      %616 = vmatpush1.msra.mxu0 0.0
      %617 = vmatprep.subr.mxu0 0.0
      %618 = vmatpush1.msra.mxu0 0.0
      %619 = vmatprep.subr.mxu0 0.0
      %620 = vmatpush1.msra.mxu0 0.0
      %621 = vmatprep.subr.mxu0 0.0
      %622 = vmatpush1.msra.mxu0 0.0
      %623 = vmatprep.subr.mxu0 0.0
      %624 = vmatpush1.msra.mxu0 0.0
      %625 = vmatprep.subr.mxu0 0.0
      %626 = vmatpush1.msra.mxu0 0.0
      %627 = vmatprep.subr.mxu0 0.0
      %628 = vmatpush1.msra.mxu0 0.0
      %629 = vmatprep.subr.mxu0 0.0
      %630 = vmatpush1.msra.mxu0 0.0
      %631 = vmatprep.subr.mxu0 0.0
      %632 = vmatpush1.msra.mxu0 0.0
      %633 = vmatprep.subr.mxu0 0.0
      %634 = vmatpush1.msra.mxu0 0.0
      %635 = vmatprep.subr.mxu0 0.0
      %636 = vmatpush1.msra.mxu0 0.0
      %637 = vmatprep.subr.mxu0 0.0
      %638 = vmatpush1.msra.mxu0 0.0
      %639 = vmatprep.subr.mxu0 0.0
      %640 = vmatpush1.msra.mxu0 0.0
      %641 = vmatprep.subr.mxu0 0.0
      %642 = vmatpush1.msra.mxu0 0.0
      %643 = vmatprep.subr.mxu0 0.0
      %644 = vmatpush1.msra.mxu0 0.0
      %645 = vmatprep.subr.mxu0 0.0
      %646 = vmatpush1.msra.mxu0 0.0
      %647 = vmatprep.subr.mxu0 0.0
      %648 = vmatpush1.msra.mxu0 0.0
      %649 = vmatprep.subr.mxu0 0.0
      %650 = vmatpush1.msra.mxu0 0.0
      %651 = vmatprep.subr.mxu0 0.0
      %652 = vmatpush1.msra.mxu0 0.0
      %653 = vmatprep.subr.mxu0 0.0
      %654 = vmatpush1.msra.mxu0 0.0
      %655 = vmatprep.subr.mxu0 0.0
      %656 = vmatpush1.msra.mxu0 0.0
      %657 = vmatprep.subr.mxu0 0.0
      %658 = vmatpush1.msra.mxu0 0.0
      %659 = vmatprep.subr.mxu0 0.0
      %660 = vmatpush1.msra.mxu0 0.0
      %661 = vmatprep.subr.mxu0 0.0
      %662 = vmatpush1.msra.mxu0 0.0
      %663 = vmatprep.mubr.f32.mxu0 0.0
      %664 = vmatmul.mubr.f32.gmra.mrb[0].mxu0 %v597
      %v665 = vpop.f32.mrb[0].mxu0
      %v666 = vadd.f32 0.0, %v665
      %v667 = vpop.f32.mrb[0].mxu0
      %668 = vdwg.mxu0
      %v669 = vadd.f32 %v586, %v666
      %s670 = scalar_lea.vmem %s4, 32
      %v671 = vld [vmem:[%s670] sm:$0xff]
      %672 = vrot.lane.b32.xlu0 %v419, 117
      %v673 = vpop.permute.xlu0 %672
      %674 = vrot.lane.b32.xlu0 %v420, 117
      %v675 = vpop.permute.xlu0 %674
      %vm676 = vcmask 957440
      %v677 = vsel %vm676, %v673, %v675
      %v680 = vsel %vm342, %v671, 0
      %682 = vmatprep.subr.mxu0 0.0
      %683 = vmatpush1.msra.mxu0 %v677
      %684 = vmatprep.subr.mxu0 0.0
      %685 = vmatpush1.msra.mxu0 0.0
      %686 = vmatprep.subr.mxu0 0.0
      %687 = vmatpush1.msra.mxu0 0.0
      %688 = vmatprep.subr.mxu0 0.0
      %689 = vmatpush1.msra.mxu0 0.0
      %690 = vmatprep.subr.mxu0 0.0
      %691 = vmatpush1.msra.mxu0 0.0
      %692 = vmatprep.subr.mxu0 0.0
      %693 = vmatpush1.msra.mxu0 0.0
      %694 = vmatprep.subr.mxu0 0.0
      %695 = vmatpush1.msra.mxu0 0.0
      %696 = vmatprep.subr.mxu0 0.0
      %697 = vmatpush1.msra.mxu0 0.0
      %698 = vmatprep.subr.mxu0 0.0
      %699 = vmatpush1.msra.mxu0 0.0
      %700 = vmatprep.subr.mxu0 0.0
      %701 = vmatpush1.msra.mxu0 0.0
      %702 = vmatprep.subr.mxu0 0.0
      %703 = vmatpush1.msra.mxu0 0.0
      %704 = vmatprep.subr.mxu0 0.0
      %705 = vmatpush1.msra.mxu0 0.0
      %706 = vmatprep.subr.mxu0 0.0
      %707 = vmatpush1.msra.mxu0 0.0
      %708 = vmatprep.subr.mxu0 0.0
      %709 = vmatpush1.msra.mxu0 0.0
      %710 = vmatprep.subr.mxu0 0.0
      %711 = vmatpush1.msra.mxu0 0.0
      %712 = vmatprep.subr.mxu0 0.0
      %713 = vmatpush1.msra.mxu0 0.0
      %714 = vmatprep.subr.mxu0 0.0
      %715 = vmatpush1.msra.mxu0 0.0
      %716 = vmatprep.subr.mxu0 0.0
      %717 = vmatpush1.msra.mxu0 0.0
      %718 = vmatprep.subr.mxu0 0.0
      %719 = vmatpush1.msra.mxu0 0.0
      %720 = vmatprep.subr.mxu0 0.0
      %721 = vmatpush1.msra.mxu0 0.0
      %722 = vmatprep.subr.mxu0 0.0
      %723 = vmatpush1.msra.mxu0 0.0
      %724 = vmatprep.subr.mxu0 0.0
      %725 = vmatpush1.msra.mxu0 0.0
      %726 = vmatprep.subr.mxu0 0.0
      %727 = vmatpush1.msra.mxu0 0.0
      %728 = vmatprep.subr.mxu0 0.0
      %729 = vmatpush1.msra.mxu0 0.0
      %730 = vmatprep.subr.mxu0 0.0
      %731 = vmatpush1.msra.mxu0 0.0
      %732 = vmatprep.subr.mxu0 0.0
      %733 = vmatpush1.msra.mxu0 0.0
      %734 = vmatprep.subr.mxu0 0.0
      %735 = vmatpush1.msra.mxu0 0.0
      %736 = vmatprep.subr.mxu0 0.0
      %737 = vmatpush1.msra.mxu0 0.0
      %738 = vmatprep.subr.mxu0 0.0
      %739 = vmatpush1.msra.mxu0 0.0
      %740 = vmatprep.subr.mxu0 0.0
      %741 = vmatpush1.msra.mxu0 0.0
      %742 = vmatprep.subr.mxu0 0.0
      %743 = vmatpush1.msra.mxu0 0.0
      %744 = vmatprep.subr.mxu0 0.0
      %745 = vmatpush1.msra.mxu0 0.0
      %746 = vmatprep.mubr.f32.mxu0 0.0
      %747 = vmatmul.mubr.f32.gmra.mrb[0].mxu0 %v680
      %v748 = vpop.f32.mrb[0].mxu0
      %v749 = vadd.f32 0.0, %v748
      %v750 = vpop.f32.mrb[0].mxu0
      %751 = vdwg.mxu0
      %v752 = vadd.f32 %v669, %v749
      %s753 = scalar_lea.vmem %s4, 40
      %v754 = vld [vmem:[%s753] sm:$0xff]
      %755 = vrot.lane.b32.xlu0 %v419, 116
      %v756 = vpop.permute.xlu0 %755
      %757 = vrot.lane.b32.xlu0 %v420, 116
      %v758 = vpop.permute.xlu0 %757
      %vm759 = vcmask 949248
      %v760 = vsel %vm759, %v756, %v758
      %v763 = vsel %vm342, %v754, 0
      %765 = vmatprep.subr.mxu0 0.0
      %766 = vmatpush1.msra.mxu0 %v760
      %767 = vmatprep.subr.mxu0 0.0
      %768 = vmatpush1.msra.mxu0 0.0
      %769 = vmatprep.subr.mxu0 0.0
      %770 = vmatpush1.msra.mxu0 0.0
      %771 = vmatprep.subr.mxu0 0.0
      %772 = vmatpush1.msra.mxu0 0.0
      %773 = vmatprep.subr.mxu0 0.0
      %774 = vmatpush1.msra.mxu0 0.0
      %775 = vmatprep.subr.mxu0 0.0
      %776 = vmatpush1.msra.mxu0 0.0
      %777 = vmatprep.subr.mxu0 0.0
      %778 = vmatpush1.msra.mxu0 0.0
      %779 = vmatprep.subr.mxu0 0.0
      %780 = vmatpush1.msra.mxu0 0.0
      %781 = vmatprep.subr.mxu0 0.0
      %782 = vmatpush1.msra.mxu0 0.0
      %783 = vmatprep.subr.mxu0 0.0
      %784 = vmatpush1.msra.mxu0 0.0
      %785 = vmatprep.subr.mxu0 0.0
      %786 = vmatpush1.msra.mxu0 0.0
      %787 = vmatprep.subr.mxu0 0.0
      %788 = vmatpush1.msra.mxu0 0.0
      %789 = vmatprep.subr.mxu0 0.0
      %790 = vmatpush1.msra.mxu0 0.0
      %791 = vmatprep.subr.mxu0 0.0
      %792 = vmatpush1.msra.mxu0 0.0
      %793 = vmatprep.subr.mxu0 0.0
      %794 = vmatpush1.msra.mxu0 0.0
      %795 = vmatprep.subr.mxu0 0.0
      %796 = vmatpush1.msra.mxu0 0.0
      %797 = vmatprep.subr.mxu0 0.0
      %798 = vmatpush1.msra.mxu0 0.0
      %799 = vmatprep.subr.mxu0 0.0
      %800 = vmatpush1.msra.mxu0 0.0
      %801 = vmatprep.subr.mxu0 0.0
      %802 = vmatpush1.msra.mxu0 0.0
      %803 = vmatprep.subr.mxu0 0.0
      %804 = vmatpush1.msra.mxu0 0.0
      %805 = vmatprep.subr.mxu0 0.0
      %806 = vmatpush1.msra.mxu0 0.0
      %807 = vmatprep.subr.mxu0 0.0
      %808 = vmatpush1.msra.mxu0 0.0
      %809 = vmatprep.subr.mxu0 0.0
      %810 = vmatpush1.msra.mxu0 0.0
      %811 = vmatprep.subr.mxu0 0.0
      %812 = vmatpush1.msra.mxu0 0.0
      %813 = vmatprep.subr.mxu0 0.0
      %814 = vmatpush1.msra.mxu0 0.0
      %815 = vmatprep.subr.mxu0 0.0
      %816 = vmatpush1.msra.mxu0 0.0
      %817 = vmatprep.subr.mxu0 0.0
      %818 = vmatpush1.msra.mxu0 0.0
      %819 = vmatprep.subr.mxu0 0.0
      %820 = vmatpush1.msra.mxu0 0.0
      %821 = vmatprep.subr.mxu0 0.0
      %822 = vmatpush1.msra.mxu0 0.0
      %823 = vmatprep.subr.mxu0 0.0
      %824 = vmatpush1.msra.mxu0 0.0
      %825 = vmatprep.subr.mxu0 0.0
      %826 = vmatpush1.msra.mxu0 0.0
      %827 = vmatprep.subr.mxu0 0.0
      %828 = vmatpush1.msra.mxu0 0.0
      %829 = vmatprep.mubr.f32.mxu0 0.0
      %830 = vmatmul.mubr.f32.gmra.mrb[0].mxu0 %v763
      %v831 = vpop.f32.mrb[0].mxu0
      %v832 = vadd.f32 0.0, %v831
      %v833 = vpop.f32.mrb[0].mxu0
      %834 = vdwg.mxu0
      %v835 = vadd.f32 %v752, %v832
      %s836 = scalar_lea.vmem %s4, 48
      %v837 = vld [vmem:[%s836] sm:$0xff]
      %838 = vrot.lane.b32.xlu0 %v419, 108
      %v839 = vpop.permute.xlu0 %838
      %840 = vrot.lane.b32.xlu0 %v420, 108
      %v841 = vpop.permute.xlu0 %840
      %vm842 = vcmask 883712
      %v843 = vsel %vm842, %v839, %v841
      %v846 = vsel %vm342, %v837, 0
      %848 = vmatprep.subr.mxu0 0.0
      %849 = vmatpush1.msra.mxu0 %v843
      %850 = vmatprep.subr.mxu0 0.0
      %851 = vmatpush1.msra.mxu0 0.0
      %852 = vmatprep.subr.mxu0 0.0
      %853 = vmatpush1.msra.mxu0 0.0
      %854 = vmatprep.subr.mxu0 0.0
      %855 = vmatpush1.msra.mxu0 0.0
      %856 = vmatprep.subr.mxu0 0.0
      %857 = vmatpush1.msra.mxu0 0.0
      %858 = vmatprep.subr.mxu0 0.0
      %859 = vmatpush1.msra.mxu0 0.0
      %860 = vmatprep.subr.mxu0 0.0
      %861 = vmatpush1.msra.mxu0 0.0
      %862 = vmatprep.subr.mxu0 0.0
      %863 = vmatpush1.msra.mxu0 0.0
      %864 = vmatprep.subr.mxu0 0.0
      %865 = vmatpush1.msra.mxu0 0.0
      %866 = vmatprep.subr.mxu0 0.0
      %867 = vmatpush1.msra.mxu0 0.0
      %868 = vmatprep.subr.mxu0 0.0
      %869 = vmatpush1.msra.mxu0 0.0
      %870 = vmatprep.subr.mxu0 0.0
      %871 = vmatpush1.msra.mxu0 0.0
      %872 = vmatprep.subr.mxu0 0.0
      %873 = vmatpush1.msra.mxu0 0.0
      %874 = vmatprep.subr.mxu0 0.0
      %875 = vmatpush1.msra.mxu0 0.0
      %876 = vmatprep.subr.mxu0 0.0
      %877 = vmatpush1.msra.mxu0 0.0
      %878 = vmatprep.subr.mxu0 0.0
      %879 = vmatpush1.msra.mxu0 0.0
      %880 = vmatprep.subr.mxu0 0.0
      %881 = vmatpush1.msra.mxu0 0.0
      %882 = vmatprep.subr.mxu0 0.0
      %883 = vmatpush1.msra.mxu0 0.0
      %884 = vmatprep.subr.mxu0 0.0
      %885 = vmatpush1.msra.mxu0 0.0
      %886 = vmatprep.subr.mxu0 0.0
      %887 = vmatpush1.msra.mxu0 0.0
      %888 = vmatprep.subr.mxu0 0.0
      %889 = vmatpush1.msra.mxu0 0.0
      %890 = vmatprep.subr.mxu0 0.0
      %891 = vmatpush1.msra.mxu0 0.0
      %892 = vmatprep.subr.mxu0 0.0
      %893 = vmatpush1.msra.mxu0 0.0
      %894 = vmatprep.subr.mxu0 0.0
      %895 = vmatpush1.msra.mxu0 0.0
      %896 = vmatprep.subr.mxu0 0.0
      %897 = vmatpush1.msra.mxu0 0.0
      %898 = vmatprep.subr.mxu0 0.0
      %899 = vmatpush1.msra.mxu0 0.0
      %900 = vmatprep.subr.mxu0 0.0
      %901 = vmatpush1.msra.mxu0 0.0
      %902 = vmatprep.subr.mxu0 0.0
      %903 = vmatpush1.msra.mxu0 0.0
      %904 = vmatprep.subr.mxu0 0.0
      %905 = vmatpush1.msra.mxu0 0.0
      %906 = vmatprep.subr.mxu0 0.0
      %907 = vmatpush1.msra.mxu0 0.0
      %908 = vmatprep.subr.mxu0 0.0
      %909 = vmatpush1.msra.mxu0 0.0
      %910 = vmatprep.subr.mxu0 0.0
      %911 = vmatpush1.msra.mxu0 0.0
      %912 = vmatprep.mubr.f32.mxu0 0.0
      %913 = vmatmul.mubr.f32.gmra.mrb[0].mxu0 %v846
      %v914 = vpop.f32.mrb[0].mxu0
      %v915 = vadd.f32 0.0, %v914
      %v916 = vpop.f32.mrb[0].mxu0
      %917 = vdwg.mxu0
      %v918 = vadd.f32 %v835, %v915
      %s919 = scalar_lea.vmem %s4, 56
      %v920 = vld [vmem:[%s919] sm:$0xff]
      %921 = vrot.lane.b32.xlu0 %v419, 107
      %v922 = vpop.permute.xlu0 %921
      %923 = vrot.lane.b32.xlu0 %v420, 107
      %v924 = vpop.permute.xlu0 %923
      %vm925 = vcmask 875520
      %v926 = vsel %vm925, %v922, %v924
      %v929 = vsel %vm342, %v920, 0
      %931 = vmatprep.subr.mxu0 0.0
      %932 = vmatpush1.msra.mxu0 %v926
      %933 = vmatprep.subr.mxu0 0.0
      %934 = vmatpush1.msra.mxu0 0.0
      %935 = vmatprep.subr.mxu0 0.0
      %936 = vmatpush1.msra.mxu0 0.0
      %937 = vmatprep.subr.mxu0 0.0
      %938 = vmatpush1.msra.mxu0 0.0
      %939 = vmatprep.subr.mxu0 0.0
      %940 = vmatpush1.msra.mxu0 0.0
      %941 = vmatprep.subr.mxu0 0.0
      %942 = vmatpush1.msra.mxu0 0.0
      %943 = vmatprep.subr.mxu0 0.0
      %944 = vmatpush1.msra.mxu0 0.0
      %945 = vmatprep.subr.mxu0 0.0
      %946 = vmatpush1.msra.mxu0 0.0
      %947 = vmatprep.subr.mxu0 0.0
      %948 = vmatpush1.msra.mxu0 0.0
      %949 = vmatprep.subr.mxu0 0.0
      %950 = vmatpush1.msra.mxu0 0.0
      %951 = vmatprep.subr.mxu0 0.0
      %952 = vmatpush1.msra.mxu0 0.0
      %953 = vmatprep.subr.mxu0 0.0
      %954 = vmatpush1.msra.mxu0 0.0
      %955 = vmatprep.subr.mxu0 0.0
      %956 = vmatpush1.msra.mxu0 0.0
      %957 = vmatprep.subr.mxu0 0.0
      %958 = vmatpush1.msra.mxu0 0.0
      %959 = vmatprep.subr.mxu0 0.0
      %960 = vmatpush1.msra.mxu0 0.0
      %961 = vmatprep.subr.mxu0 0.0
      %962 = vmatpush1.msra.mxu0 0.0
      %963 = vmatprep.subr.mxu0 0.0
      %964 = vmatpush1.msra.mxu0 0.0
      %965 = vmatprep.subr.mxu0 0.0
      %966 = vmatpush1.msra.mxu0 0.0
      %967 = vmatprep.subr.mxu0 0.0
      %968 = vmatpush1.msra.mxu0 0.0
      %969 = vmatprep.subr.mxu0 0.0
      %970 = vmatpush1.msra.mxu0 0.0
      %971 = vmatprep.subr.mxu0 0.0
      %972 = vmatpush1.msra.mxu0 0.0
      %973 = vmatprep.subr.mxu0 0.0
      %974 = vmatpush1.msra.mxu0 0.0
      %975 = vmatprep.subr.mxu0 0.0
      %976 = vmatpush1.msra.mxu0 0.0
      %977 = vmatprep.subr.mxu0 0.0
      %978 = vmatpush1.msra.mxu0 0.0
      %979 = vmatprep.subr.mxu0 0.0
      %980 = vmatpush1.msra.mxu0 0.0
      %981 = vmatprep.subr.mxu0 0.0
      %982 = vmatpush1.msra.mxu0 0.0
      %983 = vmatprep.subr.mxu0 0.0
      %984 = vmatpush1.msra.mxu0 0.0
      %985 = vmatprep.subr.mxu0 0.0
      %986 = vmatpush1.msra.mxu0 0.0
      %987 = vmatprep.subr.mxu0 0.0
      %988 = vmatpush1.msra.mxu0 0.0
      %989 = vmatprep.subr.mxu0 0.0
      %990 = vmatpush1.msra.mxu0 0.0
      %991 = vmatprep.subr.mxu0 0.0
      %992 = vmatpush1.msra.mxu0 0.0
      %993 = vmatprep.subr.mxu0 0.0
      %994 = vmatpush1.msra.mxu0 0.0
      %995 = vmatprep.mubr.f32.mxu0 0.0
      %996 = vmatmul.mubr.f32.gmra.mrb[0].mxu0 %v929
      %v997 = vpop.f32.mrb[0].mxu0
      %v998 = vadd.f32 0.0, %v997
      %v999 = vpop.f32.mrb[0].mxu0
      %1000 = vdwg.mxu0
      %v1001 = vadd.f32 %v918, %v998
      %s1002 = scalar_lea.vmem %s4, 64
      %v1003 = vld [vmem:[%s1002] sm:$0xff]
      %1004 = vrot.lane.b32.xlu0 %v419, 106
      %v1005 = vpop.permute.xlu0 %1004
      %1006 = vrot.lane.b32.xlu0 %v420, 106
      %v1007 = vpop.permute.xlu0 %1006
      %vm1008 = vcmask 867328
      %v1009 = vsel %vm1008, %v1005, %v1007
      %v1012 = vsel %vm342, %v1003, 0
      %1014 = vmatprep.subr.mxu0 0.0
      %1015 = vmatpush1.msra.mxu0 %v1009
      %1016 = vmatprep.subr.mxu0 0.0
      %1017 = vmatpush1.msra.mxu0 0.0
      %1018 = vmatprep.subr.mxu0 0.0
      %1019 = vmatpush1.msra.mxu0 0.0
      %1020 = vmatprep.subr.mxu0 0.0
      %1021 = vmatpush1.msra.mxu0 0.0
      %1022 = vmatprep.subr.mxu0 0.0
      %1023 = vmatpush1.msra.mxu0 0.0
      %1024 = vmatprep.subr.mxu0 0.0
      %1025 = vmatpush1.msra.mxu0 0.0
      %1026 = vmatprep.subr.mxu0 0.0
      %1027 = vmatpush1.msra.mxu0 0.0
      %1028 = vmatprep.subr.mxu0 0.0
      %1029 = vmatpush1.msra.mxu0 0.0
      %1030 = vmatprep.subr.mxu0 0.0
      %1031 = vmatpush1.msra.mxu0 0.0
      %1032 = vmatprep.subr.mxu0 0.0
      %1033 = vmatpush1.msra.mxu0 0.0
      %1034 = vmatprep.subr.mxu0 0.0
      %1035 = vmatpush1.msra.mxu0 0.0
      %1036 = vmatprep.subr.mxu0 0.0
      %1037 = vmatpush1.msra.mxu0 0.0
      %1038 = vmatprep.subr.mxu0 0.0
      %1039 = vmatpush1.msra.mxu0 0.0
      %1040 = vmatprep.subr.mxu0 0.0
      %1041 = vmatpush1.msra.mxu0 0.0
      %1042 = vmatprep.subr.mxu0 0.0
      %1043 = vmatpush1.msra.mxu0 0.0
      %1044 = vmatprep.subr.mxu0 0.0
      %1045 = vmatpush1.msra.mxu0 0.0
      %1046 = vmatprep.subr.mxu0 0.0
      %1047 = vmatpush1.msra.mxu0 0.0
      %1048 = vmatprep.subr.mxu0 0.0
      %1049 = vmatpush1.msra.mxu0 0.0
      %1050 = vmatprep.subr.mxu0 0.0
      %1051 = vmatpush1.msra.mxu0 0.0
      %1052 = vmatprep.subr.mxu0 0.0
      %1053 = vmatpush1.msra.mxu0 0.0
      %1054 = vmatprep.subr.mxu0 0.0
      %1055 = vmatpush1.msra.mxu0 0.0
      %1056 = vmatprep.subr.mxu0 0.0
      %1057 = vmatpush1.msra.mxu0 0.0
      %1058 = vmatprep.subr.mxu0 0.0
      %1059 = vmatpush1.msra.mxu0 0.0
      %1060 = vmatprep.subr.mxu0 0.0
      %1061 = vmatpush1.msra.mxu0 0.0
      %1062 = vmatprep.subr.mxu0 0.0
      %1063 = vmatpush1.msra.mxu0 0.0
      %1064 = vmatprep.subr.mxu0 0.0
      %1065 = vmatpush1.msra.mxu0 0.0
      %1066 = vmatprep.subr.mxu0 0.0
      %1067 = vmatpush1.msra.mxu0 0.0
      %1068 = vmatprep.subr.mxu0 0.0
      %1069 = vmatpush1.msra.mxu0 0.0
      %1070 = vmatprep.subr.mxu0 0.0
      %1071 = vmatpush1.msra.mxu0 0.0
      %1072 = vmatprep.subr.mxu0 0.0
      %1073 = vmatpush1.msra.mxu0 0.0
      %1074 = vmatprep.subr.mxu0 0.0
      %1075 = vmatpush1.msra.mxu0 0.0
      %1076 = vmatprep.subr.mxu0 0.0
      %1077 = vmatpush1.msra.mxu0 0.0
      %1078 = vmatprep.mubr.f32.mxu0 0.0
      %1079 = vmatmul.mubr.f32.gmra.mrb[0].mxu0 %v1012
      %v1080 = vpop.f32.mrb[0].mxu0
      %v1081 = vadd.f32 0.0, %v1080
      %v1082 = vpop.f32.mrb[0].mxu0
      %1083 = vdwg.mxu0
      %v1084 = vadd.f32 %v1001, %v1081
      %1085 = vst [vmem:[%s295] sm:$0xff] %v1084
      %p1086 = scmp.lt.s32.totalorder %s18, 1
      %s1087 = scalar_select %p1086, %s18, 1
      %s1088 = smul.addr %s1087, 8
      %s1089 = scalar_lea.vmem %s7, %s1088
      // Predicated region
      $region49: #{downsample_block.7} parent=47 // pred_check
        %p1090 = pneg %p193
      $region50: #{downsample_block.7} parent=47 // pred_check_branch
        %1092 = sbr.rel (%p1090) target = $region52
      $region51: #{downsample_block.7} parent=47 // pred_region
        _
      $region52: #{downsample_block.7} parent=47 // pred_fallthru
        _
    $region48: #{downsample_block.7} parent=5 // pred_fallthru
      _
    %p1093 = scmp.le.s32.totalorder 2, %s13
    // Predicated region
    $region53: #{downsample_block.7} parent=5 // pred_check
      %p1094 = pneg %p1093
    $region54: #{downsample_block.7} parent=5 // pred_check_branch
      %1096 = sbr.rel (%p1094) target = $region56
    $region55: #{downsample_block.7} parent=5 // pred_region
      %s1097 = ssub.s32 %s13, 2
      // Predicated region
      $region57: #{downsample_block.7} parent=55 // pred_check
        %p1098 = pneg %p199
      $region58: #{downsample_block.7} parent=55 // pred_check_branch
        %1100 = sbr.rel (%p1098) target = $region60
      $region59: #{downsample_block.7} parent=55 // pred_region
        %p1101 = scmp.lt.s32.totalorder %s19, 1
        %s1102 = scalar_select %p1101, %s19, 1
        %s1103 = smul.addr %s1102, 8
        %s1104 = scalar_lea.vmem %s7, %s1103
      $region60: #{downsample_block.7} parent=55 // pred_fallthru
        _
    $region56: #{downsample_block.7} parent=5 // pred_fallthru
      _
  $region6: #{downsample_block.7} parent=0 // loop_footer
    %s17 = sadd.s32 1, %s13
  $region7: #{downsample_block.7} parent=0 // loop_footer_branch
    %12 = sbr.rel target = $region3
  $region8: #{downsample_block.7} parent=0 // loop_exit
    _

// kernel: downsample_block.5
$region0: #{downsample_block.5}
  #allocation0 [shape = 'u32[]', space=smem, size = 0x4, offset = 0x4, fixed_abs, tag = 'smem constant byte address 0x4 - core index']
  #allocation1 [shape = 'u32[144,128]{1,0:T(1,128)}', space=vmem, size = 0x12000, scoped, tag = 'internal scratch']
  #allocation2 [shape = 'f32[4,384]{1,0:T(4,128)}', space=vmem, size = 0x1800, scoped, tag = 'scratch operand']
  #allocation3 [shape = 'f32[4,384]{1,0:T(4,128)}', space=vmem, size = 0x1800, scoped, tag = 'scratch operand']
  #allocation4 [shape = 'f32[4,384]{1,0:T(4,128)}', space=vmem, size = 0x1800, scoped, tag = 'scratch operand']
  #allocation5 [shape = 'f32[4,384]{1,0:T(4,128)}', space=vmem, size = 0x1800, scoped, tag = 'scratch operand']
  %s0 = inlined_call_operand.vmem [shape: f32[4,768], index: 0, kind: input, shape index: {}]
  %s1 = inlined_call_operand.vmem [shape: f32[4,768], index: 1, kind: input, shape index: {}]
  %s2 = inlined_call_operand.vmem [shape: f32[4,768], index: 2, kind: input, shape index: {}]
  %s3 = inlined_call_operand.vmem [shape: f32[4,768], index: 3, kind: input, shape index: {}]
  %s4 = inlined_call_operand.vmem [shape: f32[1,384], index: 4, kind: input, shape index: {}]
  %s5 = inlined_call_operand.vmem [shape: f32[1,384], index: 5, kind: input, shape index: {}]
  %s6 = inlined_call_operand.vmem [shape: f32[1,384], index: 6, kind: input, shape index: {}]
  %s7 = inlined_call_operand.vmem [shape: f32[1,384], index: 7, kind: input, shape index: {}]
  %s8 = inlined_call_operand.vmem [shape: f32[4,1], index: 8, kind: input, shape index: {}]
  %s9 = inlined_call_operand.vmem [shape: f32[4,1], index: 9, kind: input, shape index: {}]
  %s10 = inlined_call_operand.vmem [shape: f32[9,8,4], index: 10, kind: input, shape index: {}]
  %s11 = inlined_call_operand.vmem [shape: f32[8,1], index: 11, kind: input, shape index: {}]
  %s12 = inlined_call_operand.vmem [shape: f32[9,8,4], index: 12, kind: input, shape index: {}]
  %s13 = inlined_call_operand.vmem [shape: f32[8,1], index: 13, kind: input, shape index: {}]
  %s14 = inlined_call_operand.vmem [shape: f32[8,512], index: 14, kind: output, shape index: {0}]
  %s15 = inlined_call_operand.vmem [shape: f32[8,256], index: 15, kind: output, shape index: {1}]
  %16 = xla_tuple %s14, %s15
  %s17 = sld [smem:[#allocation0]]
  $region97: #{downsample_block.5} parent=0
    _
  %s19 = ssub.s32 1, %s17
  %s20 = scalar_select 0, %s19, %s17
  loop: start=0, step=1, limit=4
  $region2: #{downsample_block.5} parent=0 // loop_pre_header
    _
  $region3: #{downsample_block.5} parent=0 // loop_header
    %s22 = sphi 0, %s26
    %p23 = scmp.ge.s32.totalorder %s22, 4
    %s32 = sphi 0, %s34
    %s35 = sphi 0, %s32
    %s36 = sphi 0, %s35
    %s52 = sphi 0, %s36
    %s58 = sphi 0, %s60
    %s61 = sphi 0, %s58
    %s62 = sphi 0, %s61
    %s78 = sphi 0, %s62
    %s84 = sphi 0, %s86
    %s87 = sphi 0, %s84
    %s88 = sphi 0, %s87
    %s104 = sphi 0, %s88
    %s110 = sphi 0, %s112
    %s113 = sphi 0, %s110
    %s114 = sphi 0, %s113
    %s130 = sphi 0, %s114
    %s134 = sphi 0, %s134
    %s136 = sphi 0, %s134
    %s137 = sphi 0, %s136
    %s151 = sphi 0, %s137
    %s155 = sphi 0, %s155
    %s157 = sphi 0, %s155
    %s158 = sphi 0, %s157
    %s172 = sphi 0, %s158
    %s176 = sphi 0, %s176
    %s178 = sphi 0, %s176
    %s179 = sphi 0, %s178
    %s193 = sphi 0, %s179
    %s197 = sphi 0, %s197
    %s199 = sphi 0, %s197
    %s200 = sphi 0, %s199
    %s214 = sphi 0, %s200
    %s218 = sphi 0, %s218
    %s220 = sphi 0, %s218
    %s221 = sphi 0, %s220
    %s235 = sphi 0, %s221
    %s239 = sphi 0, %s239
    %s241 = sphi 0, %s239
    %s242 = sphi 0, %s241
    %s256 = sphi 0, %s242
    %s260 = sphi 0, %s260
    %s262 = sphi 0, %s260
    %s263 = sphi 0, %s262
    %s277 = sphi 0, %s263
    %s281 = sphi 0, %s281
    %s283 = sphi 0, %s281
    %s284 = sphi 0, %s283
    %s298 = sphi 0, %s284
    %s302 = sphi 0, %s302
    %s304 = sphi 0, %s302
    %s305 = sphi 0, %s304
    %s319 = sphi 0, %s305
    %s323 = sphi 0, %s323
    %s325 = sphi 0, %s323
    %s326 = sphi 0, %s325
    %s340 = sphi 0, %s326
    %s346 = sphi 0, %s348
    %s349 = sphi 0, %s346
    %s350 = sphi 0, %s349
    %s366 = sphi 0, %s350
    %s372 = sphi 0, %s374
    %s375 = sphi 0, %s372
    %s376 = sphi 0, %s375
    %s392 = sphi 0, %s376
  $region4: #{downsample_block.5} parent=0 // loop_header_branch
    %25 = sbr.rel (%p23) target = $region8
  $region5: #{downsample_block.5} parent=0 // loop_body
    %s27 = ssub.s32 %s22, 1
    %s28 = ssub.s32 %s22, 2
    %s29 = sadd.s32 %s22, 1
    %s30 = ssub.s32 %s22, %s29
    %p31 = scmp.eq.s32.totalorder %s30, 0
    %s33 = sadd.s32 %s32, 1
    %s34 = scalar_select %p31, %s32, %s33
    %p37 = pneg %p31
    %p38 = scmp.eq.s32.totalorder %s22, 1
    %p39 = por %p37, %p38
    %p40 = scmp.ne.s32.totalorder %s32, %s35
    %p41 = scmp.eq.s32.totalorder %s22, 0
    %p42 = por %p40, %p41
    %p43 = scmp.ne.s32.totalorder %s32, %s35
    %p44 = scmp.eq.s32.totalorder %s27, 1
    %p45 = por %p43, %p44
    %p46 = scmp.ne.s32.totalorder %s35, %s36
    %p47 = scmp.eq.s32.totalorder %s27, 0
    %p48 = por %p46, %p47
    %p49 = scmp.ne.s32.totalorder %s35, %s36
    %p50 = scmp.eq.s32.totalorder %s28, 1
    %p51 = por %p49, %p50
    %p53 = scmp.ne.s32.totalorder %s36, %s52
    %p54 = scmp.eq.s32.totalorder %s28, 0
    %p55 = por %p53, %p54
    %s56 = ssub.s32 %s22, %s29
    %p57 = scmp.eq.s32.totalorder %s56, 0
    %s59 = sadd.s32 %s58, 1
    %s60 = scalar_select %p57, %s58, %s59
    %p63 = pneg %p57
    %p64 = scmp.eq.s32.totalorder %s22, 1
    %p65 = por %p63, %p64
    %p66 = scmp.ne.s32.totalorder %s58, %s61
    %p67 = scmp.eq.s32.totalorder %s22, 0
    %p68 = por %p66, %p67
    %p69 = scmp.ne.s32.totalorder %s58, %s61
    %p70 = scmp.eq.s32.totalorder %s27, 1
    %p71 = por %p69, %p70
    %p72 = scmp.ne.s32.totalorder %s61, %s62
    %p73 = scmp.eq.s32.totalorder %s27, 0
    %p74 = por %p72, %p73
    %p75 = scmp.ne.s32.totalorder %s61, %s62
    %p76 = scmp.eq.s32.totalorder %s28, 1
    %p77 = por %p75, %p76
    %p79 = scmp.ne.s32.totalorder %s62, %s78
    %p80 = scmp.eq.s32.totalorder %s28, 0
    %p81 = por %p79, %p80
    %s82 = ssub.s32 %s22, %s29
    %p83 = scmp.eq.s32.totalorder %s82, 0
    %s85 = sadd.s32 %s84, 1
    %s86 = scalar_select %p83, %s84, %s85
    %p89 = pneg %p83
    %p90 = scmp.eq.s32.totalorder %s22, 1
    %p91 = por %p89, %p90
    %p92 = scmp.ne.s32.totalorder %s84, %s87
    %p93 = scmp.eq.s32.totalorder %s22, 0
    %p94 = por %p92, %p93
    %p95 = scmp.ne.s32.totalorder %s84, %s87
    %p96 = scmp.eq.s32.totalorder %s27, 1
    %p97 = por %p95, %p96
    %p98 = scmp.ne.s32.totalorder %s87, %s88
    %p99 = scmp.eq.s32.totalorder %s27, 0
    %p100 = por %p98, %p99
    %p101 = scmp.ne.s32.totalorder %s87, %s88
    %p102 = scmp.eq.s32.totalorder %s28, 1
    %p103 = por %p101, %p102
    %p105 = scmp.ne.s32.totalorder %s88, %s104
    %p106 = scmp.eq.s32.totalorder %s28, 0
    %p107 = por %p105, %p106
    %s108 = ssub.s32 %s22, %s29
    %p109 = scmp.eq.s32.totalorder %s108, 0
    %s111 = sadd.s32 %s110, 1
    %s112 = scalar_select %p109, %s110, %s111
    %p115 = pneg %p109
    %p116 = scmp.eq.s32.totalorder %s22, 1
    %p117 = por %p115, %p116
    %p118 = scmp.ne.s32.totalorder %s110, %s113
    %p119 = scmp.eq.s32.totalorder %s22, 0
    %p120 = por %p118, %p119
    %p121 = scmp.ne.s32.totalorder %s110, %s113
    %p122 = scmp.eq.s32.totalorder %s27, 1
    %p123 = por %p121, %p122
    %p124 = scmp.ne.s32.totalorder %s113, %s114
    %p125 = scmp.eq.s32.totalorder %s27, 0
    %p126 = por %p124, %p125
    %p127 = scmp.ne.s32.totalorder %s113, %s114
    %p128 = scmp.eq.s32.totalorder %s28, 1
    %p129 = por %p127, %p128
    %p131 = scmp.ne.s32.totalorder %s114, %s130
    %p132 = scmp.eq.s32.totalorder %s28, 0
    %p133 = por %p131, %p132
    %s135 = sadd.s32 %s134, 1
    %p138 = scmp.eq.s32.totalorder %s22, 1
    %p139 = scmp.ne.s32.totalorder %s134, %s136
    %p140 = scmp.eq.s32.totalorder %s22, 0
    %p141 = por %p139, %p140
    %p142 = scmp.ne.s32.totalorder %s134, %s136
    %p143 = scmp.eq.s32.totalorder %s27, 1
    %p144 = por %p142, %p143
    %p145 = scmp.ne.s32.totalorder %s136, %s137
    %p146 = scmp.eq.s32.totalorder %s27, 0
    %p147 = por %p145, %p146
    %p148 = scmp.ne.s32.totalorder %s136, %s137
    %p149 = scmp.eq.s32.totalorder %s28, 1
    %p150 = por %p148, %p149
    %p152 = scmp.ne.s32.totalorder %s137, %s151
    %p153 = scmp.eq.s32.totalorder %s28, 0
    %p154 = por %p152, %p153
    %s156 = sadd.s32 %s155, 1
    %p159 = scmp.eq.s32.totalorder %s22, 1
    %p160 = scmp.ne.s32.totalorder %s155, %s157
    %p161 = scmp.eq.s32.totalorder %s22, 0
    %p162 = por %p160, %p161
    %p163 = scmp.ne.s32.totalorder %s155, %s157
    %p164 = scmp.eq.s32.totalorder %s27, 1
    %p165 = por %p163, %p164
    %p166 = scmp.ne.s32.totalorder %s157, %s158
    %p167 = scmp.eq.s32.totalorder %s27, 0
    %p168 = por %p166, %p167
    %p169 = scmp.ne.s32.totalorder %s157, %s158
    %p170 = scmp.eq.s32.totalorder %s28, 1
    %p171 = por %p169, %p170
    %p173 = scmp.ne.s32.totalorder %s158, %s172
    %p174 = scmp.eq.s32.totalorder %s28, 0
    %p175 = por %p173, %p174
    %s177 = sadd.s32 %s176, 1
    %p180 = scmp.eq.s32.totalorder %s22, 1
    %p181 = scmp.ne.s32.totalorder %s176, %s178
    %p182 = scmp.eq.s32.totalorder %s22, 0
    %p183 = por %p181, %p182
    %p184 = scmp.ne.s32.totalorder %s176, %s178
    %p185 = scmp.eq.s32.totalorder %s27, 1
    %p186 = por %p184, %p185
    %p187 = scmp.ne.s32.totalorder %s178, %s179
    %p188 = scmp.eq.s32.totalorder %s27, 0
    %p189 = por %p187, %p188
    %p190 = scmp.ne.s32.totalorder %s178, %s179
    %p191 = scmp.eq.s32.totalorder %s28, 1
    %p192 = por %p190, %p191
    %p194 = scmp.ne.s32.totalorder %s179, %s193
    %p195 = scmp.eq.s32.totalorder %s28, 0
    %p196 = por %p194, %p195
    %s198 = sadd.s32 %s197, 1
    %p201 = scmp.eq.s32.totalorder %s22, 1
    %p202 = scmp.ne.s32.totalorder %s197, %s199
    %p203 = scmp.eq.s32.totalorder %s22, 0
    %p204 = por %p202, %p203
    %p205 = scmp.ne.s32.totalorder %s197, %s199
    %p206 = scmp.eq.s32.totalorder %s27, 1
    %p207 = por %p205, %p206
    %p208 = scmp.ne.s32.totalorder %s199, %s200
    %p209 = scmp.eq.s32.totalorder %s27, 0
    %p210 = por %p208, %p209
    %p211 = scmp.ne.s32.totalorder %s199, %s200
    %p212 = scmp.eq.s32.totalorder %s28, 1
    %p213 = por %p211, %p212
    %p215 = scmp.ne.s32.totalorder %s200, %s214
    %p216 = scmp.eq.s32.totalorder %s28, 0
    %p217 = por %p215, %p216
    %s219 = sadd.s32 %s218, 1
    %p222 = scmp.eq.s32.totalorder %s22, 1
    %p223 = scmp.ne.s32.totalorder %s218, %s220
    %p224 = scmp.eq.s32.totalorder %s22, 0
    %p225 = por %p223, %p224
    %p226 = scmp.ne.s32.totalorder %s218, %s220
    %p227 = scmp.eq.s32.totalorder %s27, 1
    %p228 = por %p226, %p227
    %p229 = scmp.ne.s32.totalorder %s220, %s221
    %p230 = scmp.eq.s32.totalorder %s27, 0
    %p231 = por %p229, %p230
    %p232 = scmp.ne.s32.totalorder %s220, %s221
    %p233 = scmp.eq.s32.totalorder %s28, 1
    %p234 = por %p232, %p233
    %p236 = scmp.ne.s32.totalorder %s221, %s235
    %p237 = scmp.eq.s32.totalorder %s28, 0
    %p238 = por %p236, %p237
    %s240 = sadd.s32 %s239, 1
    %p243 = scmp.eq.s32.totalorder %s22, 1
    %p244 = scmp.ne.s32.totalorder %s239, %s241
    %p245 = scmp.eq.s32.totalorder %s22, 0
    %p246 = por %p244, %p245
    %p247 = scmp.ne.s32.totalorder %s239, %s241
    %p248 = scmp.eq.s32.totalorder %s27, 1
    %p249 = por %p247, %p248
    %p250 = scmp.ne.s32.totalorder %s241, %s242
    %p251 = scmp.eq.s32.totalorder %s27, 0
    %p252 = por %p250, %p251
    %p253 = scmp.ne.s32.totalorder %s241, %s242
    %p254 = scmp.eq.s32.totalorder %s28, 1
    %p255 = por %p253, %p254
    %p257 = scmp.ne.s32.totalorder %s242, %s256
    %p258 = scmp.eq.s32.totalorder %s28, 0
    %p259 = por %p257, %p258
    %s261 = sadd.s32 %s260, 1
    %p264 = scmp.eq.s32.totalorder %s22, 1
    %p265 = scmp.ne.s32.totalorder %s260, %s262
    %p266 = scmp.eq.s32.totalorder %s22, 0
    %p267 = por %p265, %p266
    %p268 = scmp.ne.s32.totalorder %s260, %s262
    %p269 = scmp.eq.s32.totalorder %s27, 1
    %p270 = por %p268, %p269
    %p271 = scmp.ne.s32.totalorder %s262, %s263
    %p272 = scmp.eq.s32.totalorder %s27, 0
    %p273 = por %p271, %p272
    %p274 = scmp.ne.s32.totalorder %s262, %s263
    %p275 = scmp.eq.s32.totalorder %s28, 1
    %p276 = por %p274, %p275
    %p278 = scmp.ne.s32.totalorder %s263, %s277
    %p279 = scmp.eq.s32.totalorder %s28, 0
    %p280 = por %p278, %p279
    %s282 = sadd.s32 %s281, 1
    %p285 = scmp.eq.s32.totalorder %s22, 1
    %p286 = scmp.ne.s32.totalorder %s281, %s283
    %p287 = scmp.eq.s32.totalorder %s22, 0
    %p288 = por %p286, %p287
    %p289 = scmp.ne.s32.totalorder %s281, %s283
    %p290 = scmp.eq.s32.totalorder %s27, 1
    %p291 = por %p289, %p290
    %p292 = scmp.ne.s32.totalorder %s283, %s284
    %p293 = scmp.eq.s32.totalorder %s27, 0
    %p294 = por %p292, %p293
    %p295 = scmp.ne.s32.totalorder %s283, %s284
    %p296 = scmp.eq.s32.totalorder %s28, 1
    %p297 = por %p295, %p296
    %p299 = scmp.ne.s32.totalorder %s284, %s298
    %p300 = scmp.eq.s32.totalorder %s28, 0
    %p301 = por %p299, %p300
    %s303 = sadd.s32 %s302, 1
    %p306 = scmp.eq.s32.totalorder %s22, 1
    %p307 = scmp.ne.s32.totalorder %s302, %s304
    %p308 = scmp.eq.s32.totalorder %s22, 0
    %p309 = por %p307, %p308
    %p310 = scmp.ne.s32.totalorder %s302, %s304
    %p311 = scmp.eq.s32.totalorder %s27, 1
    %p312 = por %p310, %p311
    %p313 = scmp.ne.s32.totalorder %s304, %s305
    %p314 = scmp.eq.s32.totalorder %s27, 0
    %p315 = por %p313, %p314
    %p316 = scmp.ne.s32.totalorder %s304, %s305
    %p317 = scmp.eq.s32.totalorder %s28, 1
    %p318 = por %p316, %p317
    %p320 = scmp.ne.s32.totalorder %s305, %s319
    %p321 = scmp.eq.s32.totalorder %s28, 0
    %p322 = por %p320, %p321
    %s324 = sadd.s32 %s323, 1
    %p327 = scmp.eq.s32.totalorder %s22, 1
    %p328 = scmp.ne.s32.totalorder %s323, %s325
    %p329 = scmp.eq.s32.totalorder %s22, 0
    %p330 = por %p328, %p329
    %p331 = scmp.ne.s32.totalorder %s323, %s325
    %p332 = scmp.eq.s32.totalorder %s27, 1
    %p333 = por %p331, %p332
    %p334 = scmp.ne.s32.totalorder %s325, %s326
    %p335 = scmp.eq.s32.totalorder %s27, 0
    %p336 = por %p334, %p335
    %p337 = scmp.ne.s32.totalorder %s325, %s326
    %p338 = scmp.eq.s32.totalorder %s28, 1
    %p339 = por %p337, %p338
    %p341 = scmp.ne.s32.totalorder %s326, %s340
    %p342 = scmp.eq.s32.totalorder %s28, 0
    %p343 = por %p341, %p342
    %s344 = ssub.s32 %s22, %s29
    %p345 = scmp.eq.s32.totalorder %s344, 0
    %s347 = sadd.s32 %s346, 1
    %s348 = scalar_select %p345, %s346, %s347
    %p351 = pneg %p345
    %p352 = scmp.eq.s32.totalorder %s22, 1
    %p353 = por %p351, %p352
    %p354 = scmp.ne.s32.totalorder %s346, %s349
    %p355 = scmp.eq.s32.totalorder %s22, 0
    %p356 = por %p354, %p355
    %p357 = scmp.ne.s32.totalorder %s346, %s349
    %p358 = scmp.eq.s32.totalorder %s27, 1
    %p359 = por %p357, %p358
    %p360 = scmp.ne.s32.totalorder %s349, %s350
    %p361 = scmp.eq.s32.totalorder %s27, 0
    %p362 = por %p360, %p361
    %p363 = scmp.ne.s32.totalorder %s349, %s350
    %p364 = scmp.eq.s32.totalorder %s28, 1
    %p365 = por %p363, %p364
    %p367 = scmp.ne.s32.totalorder %s350, %s366
    %p368 = scmp.eq.s32.totalorder %s28, 0
    %p369 = por %p367, %p368
    %s370 = ssub.s32 %s22, %s29
    %p371 = scmp.eq.s32.totalorder %s370, 0
    %s373 = sadd.s32 %s372, 1
    %s374 = scalar_select %p371, %s372, %s373
    %p377 = pneg %p371
    %p378 = scmp.eq.s32.totalorder %s22, 1
    %p379 = por %p377, %p378
    %p380 = scmp.ne.s32.totalorder %s372, %s375
    %p381 = scmp.eq.s32.totalorder %s22, 0
    %p382 = por %p380, %p381
    %p383 = scmp.ne.s32.totalorder %s372, %s375
    %p384 = scmp.eq.s32.totalorder %s27, 1
    %p385 = por %p383, %p384
    %p386 = scmp.ne.s32.totalorder %s375, %s376
    %p387 = scmp.eq.s32.totalorder %s27, 0
    %p388 = por %p386, %p387
    %p389 = scmp.ne.s32.totalorder %s375, %s376
    %p390 = scmp.eq.s32.totalorder %s28, 1
    %p391 = por %p389, %p390
    %p393 = scmp.ne.s32.totalorder %s376, %s392
    %p394 = scmp.eq.s32.totalorder %s28, 0
    %p395 = por %p393, %p394
    %p396 = scmp.le.s32.totalorder 1, %s22
    %p397 = scmp.lt.s32.totalorder %s22, 3
    %p398 = pnand %p396, %p397
    %p399 = pneg %p398
    // Predicated region
    $region9: #{downsample_block.5} parent=5 // pred_check
      _
    $region10: #{downsample_block.5} parent=5 // pred_check_branch
      %401 = sbr.rel (%p398) target = $region12
    $region11: #{downsample_block.5} parent=5 // pred_region
      %s402 = ssub.s32 %s22, 1
      // Predicated region
      $region13: #{downsample_block.5} parent=11 // pred_check
        %p403 = pneg %p147
      $region14: #{downsample_block.5} parent=11 // pred_check_branch
        %405 = sbr.rel (%p403) target = $region16
      $region15: #{downsample_block.5} parent=11 // pred_region
        _
      $region16: #{downsample_block.5} parent=11 // pred_fallthru
        _
      // Predicated region
      $region17: #{downsample_block.5} parent=11 // pred_check
        %p406 = pneg %p168
      $region18: #{downsample_block.5} parent=11 // pred_check_branch
        %408 = sbr.rel (%p406) target = $region20
      $region19: #{downsample_block.5} parent=11 // pred_region
        _
      $region20: #{downsample_block.5} parent=11 // pred_fallthru
        _
      // Predicated region
      $region21: #{downsample_block.5} parent=11 // pred_check
        %p409 = pneg %p189
      $region22: #{downsample_block.5} parent=11 // pred_check_branch
        %411 = sbr.rel (%p409) target = $region24
      $region23: #{downsample_block.5} parent=11 // pred_region
        _
      $region24: #{downsample_block.5} parent=11 // pred_fallthru
        _
      // Predicated region
      $region25: #{downsample_block.5} parent=11 // pred_check
        %p412 = pneg %p210
      $region26: #{downsample_block.5} parent=11 // pred_check_branch
        %414 = sbr.rel (%p412) target = $region28
      $region27: #{downsample_block.5} parent=11 // pred_region
        _
      $region28: #{downsample_block.5} parent=11 // pred_fallthru
        _
      // Predicated region
      $region29: #{downsample_block.5} parent=11 // pred_check
        %p415 = pneg %p231
      $region30: #{downsample_block.5} parent=11 // pred_check_branch
        %417 = sbr.rel (%p415) target = $region32
      $region31: #{downsample_block.5} parent=11 // pred_region
        _
      $region32: #{downsample_block.5} parent=11 // pred_fallthru
        _
      // Predicated region
      $region33: #{downsample_block.5} parent=11 // pred_check
        %p418 = pneg %p252
      $region34: #{downsample_block.5} parent=11 // pred_check_branch
        %420 = sbr.rel (%p418) target = $region36
      $region35: #{downsample_block.5} parent=11 // pred_region
        _
      $region36: #{downsample_block.5} parent=11 // pred_fallthru
        _
      // Predicated region
      $region37: #{downsample_block.5} parent=11 // pred_check
        %p421 = pneg %p273
      $region38: #{downsample_block.5} parent=11 // pred_check_branch
        %423 = sbr.rel (%p421) target = $region40
      $region39: #{downsample_block.5} parent=11 // pred_region
        _
      $region40: #{downsample_block.5} parent=11 // pred_fallthru
        _
      // Predicated region
      $region41: #{downsample_block.5} parent=11 // pred_check
        %p424 = pneg %p294
      $region42: #{downsample_block.5} parent=11 // pred_check_branch
        %426 = sbr.rel (%p424) target = $region44
      $region43: #{downsample_block.5} parent=11 // pred_region
        _
      $region44: #{downsample_block.5} parent=11 // pred_fallthru
        _
      // Predicated region
      $region45: #{downsample_block.5} parent=11 // pred_check
        %p427 = pneg %p315
      $region46: #{downsample_block.5} parent=11 // pred_check_branch
        %429 = sbr.rel (%p427) target = $region48
      $region47: #{downsample_block.5} parent=11 // pred_region
        _
      $region48: #{downsample_block.5} parent=11 // pred_fallthru
        _
      // Predicated region
      $region49: #{downsample_block.5} parent=11 // pred_check
        %p430 = pneg %p336
      $region50: #{downsample_block.5} parent=11 // pred_check_branch
        %432 = sbr.rel (%p430) target = $region52
      $region51: #{downsample_block.5} parent=11 // pred_region
        _
      $region52: #{downsample_block.5} parent=11 // pred_fallthru
        _
    $region12: #{downsample_block.5} parent=5 // pred_fallthru
      _
    %p433 = scmp.lt.s32.totalorder %s22, 2
    // Predicated region
    $region53: #{downsample_block.5} parent=5 // pred_check
      %p434 = pneg %p433
    $region54: #{downsample_block.5} parent=5 // pred_check_branch
      %436 = sbr.rel (%p434) target = $region56
    $region55: #{downsample_block.5} parent=5 // pred_region
      // Predicated region
      $region57: #{downsample_block.5} parent=55 // pred_check
        %p437 = pneg %p42
      $region58: #{downsample_block.5} parent=55 // pred_check_branch
        %439 = sbr.rel (%p437) target = $region60
      $region59: #{downsample_block.5} parent=55 // pred_region
        %s440 = smul.u32 3, %s22
        %p441 = scmp.lt.s32.totalorder %s440, 5
        %s442 = scalar_select %p441, %s440, 5
        %s443 = smul.addr %s442, 4
        %s444 = scalar_lea.vmem %s0, %s443
        %s445 = smul.u32 3, %s22
      $region60: #{downsample_block.5} parent=55 // pred_fallthru
        _
      // Predicated region
      $region61: #{downsample_block.5} parent=55 // pred_check
        %p446 = pneg %p68
      $region62: #{downsample_block.5} parent=55 // pred_check_branch
        %448 = sbr.rel (%p446) target = $region64
      $region63: #{downsample_block.5} parent=55 // pred_region
        %s449 = smul.u32 3, %s22
        %p450 = scmp.lt.s32.totalorder %s449, 5
        %s451 = scalar_select %p450, %s449, 5
        %s452 = smul.addr %s451, 4
        %s453 = scalar_lea.vmem %s1, %s452
        %s454 = smul.u32 3, %s22
      $region64: #{downsample_block.5} parent=55 // pred_fallthru
        _
      // Predicated region
      $region65: #{downsample_block.5} parent=55 // pred_check
        %p455 = pneg %p94
      $region66: #{downsample_block.5} parent=55 // pred_check_branch
        %457 = sbr.rel (%p455) target = $region68
      $region67: #{downsample_block.5} parent=55 // pred_region
        %s458 = smul.u32 3, %s22
        %p459 = scmp.lt.s32.totalorder %s458, 5
        %s460 = scalar_select %p459, %s458, 5
        %s461 = smul.addr %s460, 4
        %s462 = scalar_lea.vmem %s2, %s461
        %s463 = smul.u32 3, %s22
      $region68: #{downsample_block.5} parent=55 // pred_fallthru
        _
      // Predicated region
      $region69: #{downsample_block.5} parent=55 // pred_check
        %p464 = pneg %p120
      $region70: #{downsample_block.5} parent=55 // pred_check_branch
        %466 = sbr.rel (%p464) target = $region72
      $region71: #{downsample_block.5} parent=55 // pred_region
        %s467 = smul.u32 3, %s22
        %p468 = scmp.lt.s32.totalorder %s467, 5
        %s469 = scalar_select %p468, %s467, 5
        %s470 = smul.addr %s469, 4
        %s471 = scalar_lea.vmem %s3, %s470
        %s472 = smul.u32 3, %s22
      $region72: #{downsample_block.5} parent=55 // pred_fallthru
        _
    $region56: #{downsample_block.5} parent=5 // pred_fallthru
      _
    %p473 = scmp.le.s32.totalorder 1, %s22
    %p474 = scmp.lt.s32.totalorder %s22, 3
    %p475 = pnand %p473, %p474
    %p476 = pneg %p475
    // Predicated region
    $region73: #{downsample_block.5} parent=5 // pred_check
      _
    $region74: #{downsample_block.5} parent=5 // pred_check_branch
      %478 = sbr.rel (%p475) target = $region76
    $region75: #{downsample_block.5} parent=5 // pred_region
      %s479 = ssub.s32 %s22, 1
      %s480 = smul.u32 3, %s27
      %p481 = scmp.lt.s32.totalorder %s480, 5
      %s482 = scalar_select %p481, %s480, 5
      %s483 = smul.addr %s482, 4
      %s484 = scalar_lea.vmem %s0, %s483
      %p485 = pneg %p48
      %p486 = pneg %p45
      %s487 = smul.u32 3, %s27
      %p488 = scmp.lt.s32.totalorder %s487, 5
      %s489 = scalar_select %p488, %s487, 5
      %s490 = smul.addr %s489, 4
      %s491 = scalar_lea.vmem %s1, %s490
      %p492 = pneg %p74
      %p493 = pneg %p71
      %s494 = smul.u32 3, %s27
      %p495 = scmp.lt.s32.totalorder %s494, 5
      %s496 = scalar_select %p495, %s494, 5
      %s497 = smul.addr %s496, 4
      %s498 = scalar_lea.vmem %s2, %s497
      %p499 = pneg %p100
      %p500 = pneg %p97
      %s501 = smul.u32 3, %s27
      %p502 = scmp.lt.s32.totalorder %s501, 5
      %s503 = scalar_select %p502, %s501, 5
      %s504 = smul.addr %s503, 4
      %s505 = scalar_lea.vmem %s3, %s504
      %p506 = pneg %p126
      %p507 = pneg %p123
      %p508 = pneg %p147
      %p509 = pneg %p144
      %p510 = pneg %p168
      %p511 = pneg %p165
      %p512 = pneg %p189
      %p513 = pneg %p186
      %p514 = pneg %p210
      %p515 = pneg %p207
      %p516 = pneg %p231
      %p517 = pneg %p228
      %p518 = pneg %p252
      %p519 = pneg %p249
      %p520 = pneg %p273
      %p521 = pneg %p270
      %p522 = pneg %p294
      %p523 = pneg %p291
      %p524 = pneg %p315
      %p525 = pneg %p312
      %p526 = pneg %p336
      %p527 = pneg %p333
      %p528 = pneg %p362
      %p529 = pneg %p359
      %s530 = smul.u32 2, %s27
      %p531 = scmp.lt.s32.totalorder %s530, 3
      %s532 = scalar_select %p531, %s530, 3
      %s533 = smul.addr %s532, 8
      %s534 = scalar_lea.vmem %s14, %s533
      %p535 = pneg %p388
      %p536 = pneg %p385
      %p537 = scmp.lt.s32.totalorder %s27, 1
      %s538 = scalar_select %p537, %s27, 1
      %s539 = smul.addr %s538, 8
      %s540 = scalar_lea.vmem %s15, %s539
      %s541 = smul.u32 3, %s27
      %p542 = scmp.lt.s32.totalorder %s541, 5
      %s543 = scalar_select %p542, %s541, 5
      %s544 = smul.addr %s543, 4
      %s545 = scalar_lea.vmem %s0, %s544
      %s546 = smul.u32 3, %s27
      %s547 = smul.u32 3, %s27
      %p548 = scmp.lt.s32.totalorder %s547, 5
      %s549 = scalar_select %p548, %s547, 5
      %s550 = smul.addr %s549, 4
      %s551 = scalar_lea.vmem %s1, %s550
      %s552 = smul.u32 3, %s27
      %s553 = smul.u32 3, %s27
      %p554 = scmp.lt.s32.totalorder %s553, 5
      %s555 = scalar_select %p554, %s553, 5
      %s556 = smul.addr %s555, 4
      %s557 = scalar_lea.vmem %s2, %s556
      %s558 = smul.u32 3, %s27
      %s559 = smul.u32 3, %s27
      %p560 = scmp.lt.s32.totalorder %s559, 5
      %s561 = scalar_select %p560, %s559, 5
      %s562 = smul.addr %s561, 4
      %s563 = scalar_lea.vmem %s3, %s562
      %s564 = smul.u32 3, %s27
      %s565 = smul.u32 2, %s27
      %p566 = scmp.lt.s32.totalorder %s565, 3
      %s567 = scalar_select %p566, %s565, 3
      %s568 = smul.addr %s567, 8
      %s569 = scalar_lea.vmem %s14, %s568
      %s570 = smul.u32 2, %s27
      %p571 = scmp.lt.s32.totalorder %s27, 1
      %s572 = scalar_select %p571, %s27, 1
      %s573 = smul.addr %s572, 8
      %s574 = scalar_lea.vmem %s15, %s573
      %v575 = vld [vmem:[%s8] sm:$0xf]
      %v576 = vld [vmem:[%s9] sm:$0xf]
      %v577 = vld [vmem:[%s545] sm:$0xff]
      %v578 = vld [vmem:[%s545 + $0x8] sm:$0xf]
      %580 = vset.pattern.permute.xlu0 0
      %581 = vperm.xlu0 %580, %v575
      %v582 = vpop.permute.xlu0 %581
      %v584 = vunpack.c.l.s4 839922192
      %v585 = vunpack.c.0.s8 %v584
      %v586 = vlaneseq
      %v587 = vshrl.u32 %v586, 7
      %v588 = vsub.s32 %v585, %v587
      %v589 = vrot.slane %v582, %v588
      %v591 = vmul.f32 %v577, %v589
      %v592 = vmul.f32 %v578, %v589
      %594 = vset.pattern.permute.xlu0 0
      %595 = vperm.xlu0 %594, %v576
      %v596 = vpop.permute.xlu0 %595
      %v598 = vunpack.c.l.s4 839922192
      %v599 = vunpack.c.0.s8 %v598
      %v600 = vlaneseq
      %v601 = vshrl.u32 %v600, 7
      %v602 = vsub.s32 %v599, %v601
      %v603 = vrot.slane %v596, %v602
      %v605 = vadd.f32 %v591, %v603
      %v606 = vadd.f32 %v592, %v603
      %v607 = vmax.f32 %v605, 0.0
      %v608 = vmax.f32 %v606, 0.0
      %v609 = vld [vmem:[%s4] sm:$0x7]
      %v611 = vlaneseq
      %v612 = vshrl.u32 %v611, 7
      %v613 = vsub.s32 0, %v612
      %v614 = vrot.slane %v609, %v613
      %v615 = vlaneseq
      %v616 = vshrl.u32 %v615, 7
      %v617 = vsub.s32 1, %v616
      %v618 = vrot.slane %v609, %v617
      %v619 = vlaneseq
      %v620 = vshrl.u32 %v619, 7
      %v621 = vsub.s32 2, %v620
      %v622 = vrot.slane %v609, %v621
      %v624 = vcombine.low %v614, %v618
      %v626 = vmul.f32 %v607, %v624
      %v627 = vmul.f32 %v608, %v622
      %628 = vst [vmem:[#allocation2] sm:$0xff] %v626
      %629 = vst [vmem:[#allocation2 + $0x8] sm:$0xf] %v627
      %v630 = vld [vmem:[%s551] sm:$0xff]
      %v631 = vld [vmem:[%s551 + $0x8] sm:$0xf]
      %v632 = vmul.f32 %v630, %v589
      %v633 = vmul.f32 %v631, %v589
      %v634 = vadd.f32 %v632, %v603
      %v635 = vadd.f32 %v633, %v603
      %v636 = vmax.f32 %v634, 0.0
      %v637 = vmax.f32 %v635, 0.0
      %v638 = vld [vmem:[%s5] sm:$0x7]
      %v640 = vlaneseq
      %v641 = vshrl.u32 %v640, 7
      %v642 = vsub.s32 0, %v641
      %v643 = vrot.slane %v638, %v642
      %v644 = vlaneseq
      %v645 = vshrl.u32 %v644, 7
      %v646 = vsub.s32 1, %v645
      %v647 = vrot.slane %v638, %v646
      %v648 = vlaneseq
      %v649 = vshrl.u32 %v648, 7
      %v650 = vsub.s32 2, %v649
      %v651 = vrot.slane %v638, %v650
      %v653 = vcombine.low %v643, %v647
      %v655 = vmul.f32 %v636, %v653
      %v656 = vmul.f32 %v637, %v651
      %657 = vst [vmem:[#allocation3] sm:$0xff] %v655
      %658 = vst [vmem:[#allocation3 + $0x8] sm:$0xf] %v656
      %v659 = vld [vmem:[%s557] sm:$0xff]
      %v660 = vld [vmem:[%s557 + $0x8] sm:$0xf]
      %v661 = vmul.f32 %v659, %v589
      %v662 = vmul.f32 %v660, %v589
      %v663 = vadd.f32 %v661, %v603
      %v664 = vadd.f32 %v662, %v603
      %v665 = vmax.f32 %v663, 0.0
      %v666 = vmax.f32 %v664, 0.0
      %v667 = vld [vmem:[%s6] sm:$0x7]
      %v669 = vlaneseq
      %v670 = vshrl.u32 %v669, 7
      %v671 = vsub.s32 0, %v670
      %v672 = vrot.slane %v667, %v671
      %v673 = vlaneseq
      %v674 = vshrl.u32 %v673, 7
      %v675 = vsub.s32 1, %v674
      %v676 = vrot.slane %v667, %v675
      %v677 = vlaneseq
      %v678 = vshrl.u32 %v677, 7
      %v679 = vsub.s32 2, %v678
      %v680 = vrot.slane %v667, %v679
      %v682 = vcombine.low %v672, %v676
      %v684 = vmul.f32 %v665, %v682
      %v685 = vmul.f32 %v666, %v680
      %686 = vst [vmem:[#allocation4] sm:$0xff] %v684
      %687 = vst [vmem:[#allocation4 + $0x8] sm:$0xf] %v685
      %v688 = vld [vmem:[%s563] sm:$0xff]
      %v689 = vld [vmem:[%s563 + $0x8] sm:$0xf]
      %v690 = vmul.f32 %v688, %v589
      %v691 = vmul.f32 %v689, %v589
      %v692 = vadd.f32 %v690, %v603
      %v693 = vadd.f32 %v691, %v603
      %v694 = vmax.f32 %v692, 0.0
      %v695 = vmax.f32 %v693, 0.0
      %v696 = vld [vmem:[%s7] sm:$0x7]
      %v698 = vlaneseq
      %v699 = vshrl.u32 %v698, 7
      %v700 = vsub.s32 0, %v699
      %v701 = vrot.slane %v696, %v700
      %v702 = vlaneseq
      %v703 = vshrl.u32 %v702, 7
      %v704 = vsub.s32 1, %v703
      %v705 = vrot.slane %v696, %v704
      %v706 = vlaneseq
      %v707 = vshrl.u32 %v706, 7
      %v708 = vsub.s32 2, %v707
      %v709 = vrot.slane %v696, %v708
      %v711 = vcombine.low %v701, %v705
      %v713 = vmul.f32 %v694, %v711
      %v714 = vmul.f32 %v695, %v709
      %715 = vst [vmem:[#allocation5] sm:$0xff] %v713
      %716 = vst [vmem:[#allocation5 + $0x8] sm:$0xf] %v714
      %v717 = vld [vmem:[%s11] sm:$0xff]
      %719 = vset.pattern.permute.xlu0 0
      %720 = vperm.xlu0 %719, %v717
      %v721 = vpop.permute.xlu0 %720
      %v723 = vld [vmem:[%s10] sm:$0xff]
      %v724 = vld [vmem:[#allocation2] sm:$0xff]
      %v726 = vcombine.high %v724, %v724
      %vm727 = vcmask 31744
      %v729 = vsel %vm727, %v723, 0
      %vm731 = vcmask 1043456
      %v732 = vsel %vm731, %v724, 0
      %v734 = vsel %vm731, %v726, 0
      %736 = vmatprep.subr.mxu0 %v734
      %737 = vmatpush1.msra.mxu0 %v732
      %738 = vmatprep.subr.mxu0 0.0
      %739 = vmatpush1.msra.mxu0 0.0
      %740 = vmatprep.subr.mxu0 0.0
      %741 = vmatpush1.msra.mxu0 0.0
      %742 = vmatprep.subr.mxu0 0.0
      %743 = vmatpush1.msra.mxu0 0.0
      %744 = vmatprep.subr.mxu0 0.0
      %745 = vmatpush1.msra.mxu0 0.0
      %746 = vmatprep.subr.mxu0 0.0
      %747 = vmatpush1.msra.mxu0 0.0
      %748 = vmatprep.subr.mxu0 0.0
      %749 = vmatpush1.msra.mxu0 0.0
      %750 = vmatprep.subr.mxu0 0.0
      %751 = vmatpush1.msra.mxu0 0.0
      %752 = vmatprep.subr.mxu0 0.0
      %753 = vmatpush1.msra.mxu0 0.0
      %754 = vmatprep.subr.mxu0 0.0
      %755 = vmatpush1.msra.mxu0 0.0
      %756 = vmatprep.subr.mxu0 0.0
      %757 = vmatpush1.msra.mxu0 0.0
      %758 = vmatprep.subr.mxu0 0.0
      %759 = vmatpush1.msra.mxu0 0.0
      %760 = vmatprep.subr.mxu0 0.0
      %761 = vmatpush1.msra.mxu0 0.0
      %762 = vmatprep.subr.mxu0 0.0
      %763 = vmatpush1.msra.mxu0 0.0
      %764 = vmatprep.subr.mxu0 0.0
      %765 = vmatpush1.msra.mxu0 0.0
      %766 = vmatprep.subr.mxu0 0.0
      %767 = vmatpush1.msra.mxu0 0.0
      %768 = vmatprep.subr.mxu0 0.0
      %769 = vmatpush1.msra.mxu0 0.0
      %770 = vmatprep.subr.mxu0 0.0
      %771 = vmatpush1.msra.mxu0 0.0
      %772 = vmatprep.subr.mxu0 0.0
      %773 = vmatpush1.msra.mxu0 0.0
      %774 = vmatprep.subr.mxu0 0.0
      %775 = vmatpush1.msra.mxu0 0.0
      %776 = vmatprep.subr.mxu0 0.0
      %777 = vmatpush1.msra.mxu0 0.0
      %778 = vmatprep.subr.mxu0 0.0
      %779 = vmatpush1.msra.mxu0 0.0
      %780 = vmatprep.subr.mxu0 0.0
      %781 = vmatpush1.msra.mxu0 0.0
      %782 = vmatprep.subr.mxu0 0.0
      %783 = vmatpush1.msra.mxu0 0.0
      %784 = vmatprep.subr.mxu0 0.0
      %785 = vmatpush1.msra.mxu0 0.0
      %786 = vmatprep.subr.mxu0 0.0
      %787 = vmatpush1.msra.mxu0 0.0
      %788 = vmatprep.subr.mxu0 0.0
      %789 = vmatpush1.msra.mxu0 0.0
      %790 = vmatprep.subr.mxu0 0.0
      %791 = vmatpush1.msra.mxu0 0.0
      %792 = vmatprep.subr.mxu0 0.0
      %793 = vmatpush1.msra.mxu0 0.0
      %794 = vmatprep.subr.mxu0 0.0
      %795 = vmatpush1.msra.mxu0 0.0
      %796 = vmatprep.subr.mxu0 0.0
      %797 = vmatpush1.msra.mxu0 0.0
      %798 = vmatprep.subr.mxu0 0.0
      %799 = vmatpush1.msra.mxu0 0.0
      %800 = vmatprep.mubr.f32.mxu0 0.0
      %801 = vmatmul.mubr.f32.gmra.mrb[0].mxu0 %v729
      %v802 = vpop.f32.mrb[0].mxu0
      %v803 = vadd.f32 0.0, %v802
      %v804 = vpop.f32.mrb[0].mxu0
      %v805 = vadd.f32 0.0, %v804
      %806 = vdwg.mxu0
      %v807 = vadd.f32 %v721, %v803
      %v808 = vadd.f32 %v721, %v805
      %s809 = scalar_lea.vmem %s10, 8
      %v810 = vld [vmem:[%s809] sm:$0xff]
      %v811 = vld [vmem:[#allocation3] sm:$0xff]
      %v813 = vcombine.high %v811, %v811
      %v815 = vsel %vm727, %v810, 0
      %v817 = vsel %vm731, %v811, 0
      %v819 = vsel %vm731, %v813, 0
      %821 = vmatprep.subr.mxu0 %v819
      %822 = vmatpush1.msra.mxu0 %v817
      %823 = vmatprep.subr.mxu0 0.0
      %824 = vmatpush1.msra.mxu0 0.0
      %825 = vmatprep.subr.mxu0 0.0
      %826 = vmatpush1.msra.mxu0 0.0
      %827 = vmatprep.subr.mxu0 0.0
      %828 = vmatpush1.msra.mxu0 0.0
      %829 = vmatprep.subr.mxu0 0.0
      %830 = vmatpush1.msra.mxu0 0.0
      %831 = vmatprep.subr.mxu0 0.0
      %832 = vmatpush1.msra.mxu0 0.0
      %833 = vmatprep.subr.mxu0 0.0
      %834 = vmatpush1.msra.mxu0 0.0
      %835 = vmatprep.subr.mxu0 0.0
      %836 = vmatpush1.msra.mxu0 0.0
      %837 = vmatprep.subr.mxu0 0.0
      %838 = vmatpush1.msra.mxu0 0.0
      %839 = vmatprep.subr.mxu0 0.0
      %840 = vmatpush1.msra.mxu0 0.0
      %841 = vmatprep.subr.mxu0 0.0
      %842 = vmatpush1.msra.mxu0 0.0
      %843 = vmatprep.subr.mxu0 0.0
      %844 = vmatpush1.msra.mxu0 0.0
      %845 = vmatprep.subr.mxu0 0.0
      %846 = vmatpush1.msra.mxu0 0.0
      %847 = vmatprep.subr.mxu0 0.0
      %848 = vmatpush1.msra.mxu0 0.0
      %849 = vmatprep.subr.mxu0 0.0
      %850 = vmatpush1.msra.mxu0 0.0
      %851 = vmatprep.subr.mxu0 0.0
      %852 = vmatpush1.msra.mxu0 0.0
      %853 = vmatprep.subr.mxu0 0.0
      %854 = vmatpush1.msra.mxu0 0.0
      %855 = vmatprep.subr.mxu0 0.0
      %856 = vmatpush1.msra.mxu0 0.0
      %857 = vmatprep.subr.mxu0 0.0
      %858 = vmatpush1.msra.mxu0 0.0
      %859 = vmatprep.subr.mxu0 0.0
      %860 = vmatpush1.msra.mxu0 0.0
      %861 = vmatprep.subr.mxu0 0.0
      %862 = vmatpush1.msra.mxu0 0.0
      %863 = vmatprep.subr.mxu0 0.0
      %864 = vmatpush1.msra.mxu0 0.0
      %865 = vmatprep.subr.mxu0 0.0
      %866 = vmatpush1.msra.mxu0 0.0
      %867 = vmatprep.subr.mxu0 0.0
      %868 = vmatpush1.msra.mxu0 0.0
      %869 = vmatprep.subr.mxu0 0.0
      %870 = vmatpush1.msra.mxu0 0.0
      %871 = vmatprep.subr.mxu0 0.0
      %872 = vmatpush1.msra.mxu0 0.0
      %873 = vmatprep.subr.mxu0 0.0
      %874 = vmatpush1.msra.mxu0 0.0
      %875 = vmatprep.subr.mxu0 0.0
      %876 = vmatpush1.msra.mxu0 0.0
      %877 = vmatprep.subr.mxu0 0.0
      %878 = vmatpush1.msra.mxu0 0.0
      %879 = vmatprep.subr.mxu0 0.0
      %880 = vmatpush1.msra.mxu0 0.0
      %881 = vmatprep.subr.mxu0 0.0
      %882 = vmatpush1.msra.mxu0 0.0
      %883 = vmatprep.subr.mxu0 0.0
      %884 = vmatpush1.msra.mxu0 0.0
      %885 = vmatprep.mubr.f32.mxu0 0.0
      %886 = vmatmul.mubr.f32.gmra.mrb[0].mxu0 %v815
      %v887 = vpop.f32.mrb[0].mxu0
      %v888 = vadd.f32 0.0, %v887
      %v889 = vpop.f32.mrb[0].mxu0
      %v890 = vadd.f32 0.0, %v889
      %891 = vdwg.mxu0
      %v892 = vadd.f32 %v807, %v888
      %v893 = vadd.f32 %v808, %v890
      %s894 = scalar_lea.vmem %s10, 16
      %v895 = vld [vmem:[%s894] sm:$0xff]
      %v896 = vld [vmem:[#allocation2] sm:$0xff]
      %v897 = vld [vmem:[#allocation2 + $0x8] sm:$0xf]
      %v900 = vcombine.high %v896, %v896
      %901 = vrot.lane.b32.xlu0 %v896, 127
      %v902 = vpop.permute.xlu0 %901
      %903 = vrot.lane.b32.xlu0 %v900, 127
      %v904 = vpop.permute.xlu0 %903
      %905 = vrot.lane.b32.xlu0 %v897, 127
      %v906 = vpop.permute.xlu0 %905
      %vm907 = vcmask 1039360
      %v908 = vsel %vm907, %v902, %v904
      %v909 = vsel %vm907, %v904, %v906
      %v911 = vsel %vm727, %v895, 0
      %v913 = vsel %vm731, %v908, 0
      %v915 = vsel %vm731, %v909, 0
      %917 = vmatprep.subr.mxu0 %v915
      %918 = vmatpush1.msra.mxu0 %v913
      %919 = vmatprep.subr.mxu0 0.0
      %920 = vmatpush1.msra.mxu0 0.0
      %921 = vmatprep.subr.mxu0 0.0
      %922 = vmatpush1.msra.mxu0 0.0
      %923 = vmatprep.subr.mxu0 0.0
      %924 = vmatpush1.msra.mxu0 0.0
      %925 = vmatprep.subr.mxu0 0.0
      %926 = vmatpush1.msra.mxu0 0.0
      %927 = vmatprep.subr.mxu0 0.0
      %928 = vmatpush1.msra.mxu0 0.0
      %929 = vmatprep.subr.mxu0 0.0
      %930 = vmatpush1.msra.mxu0 0.0
      %931 = vmatprep.subr.mxu0 0.0
      %932 = vmatpush1.msra.mxu0 0.0
      %933 = vmatprep.subr.mxu0 0.0
      %934 = vmatpush1.msra.mxu0 0.0
      %935 = vmatprep.subr.mxu0 0.0
      %936 = vmatpush1.msra.mxu0 0.0
      %937 = vmatprep.subr.mxu0 0.0
      %938 = vmatpush1.msra.mxu0 0.0
      %939 = vmatprep.subr.mxu0 0.0
      %940 = vmatpush1.msra.mxu0 0.0
      %941 = vmatprep.subr.mxu0 0.0
      %942 = vmatpush1.msra.mxu0 0.0
      %943 = vmatprep.subr.mxu0 0.0
      %944 = vmatpush1.msra.mxu0 0.0
      %945 = vmatprep.subr.mxu0 0.0
      %946 = vmatpush1.msra.mxu0 0.0
      %947 = vmatprep.subr.mxu0 0.0
      %948 = vmatpush1.msra.mxu0 0.0
      %949 = vmatprep.subr.mxu0 0.0
      %950 = vmatpush1.msra.mxu0 0.0
      %951 = vmatprep.subr.mxu0 0.0
      %952 = vmatpush1.msra.mxu0 0.0
      %953 = vmatprep.subr.mxu0 0.0
      %954 = vmatpush1.msra.mxu0 0.0
      %955 = vmatprep.subr.mxu0 0.0
      %956 = vmatpush1.msra.mxu0 0.0
      %957 = vmatprep.subr.mxu0 0.0
      %958 = vmatpush1.msra.mxu0 0.0
      %959 = vmatprep.subr.mxu0 0.0
      %960 = vmatpush1.msra.mxu0 0.0
      %961 = vmatprep.subr.mxu0 0.0
      %962 = vmatpush1.msra.mxu0 0.0
      %963 = vmatprep.subr.mxu0 0.0
      %964 = vmatpush1.msra.mxu0 0.0
      %965 = vmatprep.subr.mxu0 0.0
      %966 = vmatpush1.msra.mxu0 0.0
      %967 = vmatprep.subr.mxu0 0.0
      %968 = vmatpush1.msra.mxu0 0.0
      %969 = vmatprep.subr.mxu0 0.0
      %970 = vmatpush1.msra.mxu0 0.0
      %971 = vmatprep.subr.mxu0 0.0
      %972 = vmatpush1.msra.mxu0 0.0
      %973 = vmatprep.subr.mxu0 0.0
      %974 = vmatpush1.msra.mxu0 0.0
      %975 = vmatprep.subr.mxu0 0.0
      %976 = vmatpush1.msra.mxu0 0.0
      %977 = vmatprep.subr.mxu0 0.0
      %978 = vmatpush1.msra.mxu0 0.0
      %979 = vmatprep.subr.mxu0 0.0
      %980 = vmatpush1.msra.mxu0 0.0
      %981 = vmatprep.mubr.f32.mxu0 0.0
      %982 = vmatmul.mubr.f32.gmra.mrb[0].mxu0 %v911
      %v983 = vpop.f32.mrb[0].mxu0
      %v984 = vadd.f32 0.0, %v983
      %v985 = vpop.f32.mrb[0].mxu0
      %v986 = vadd.f32 0.0, %v985
      %987 = vdwg.mxu0
      %v988 = vadd.f32 %v892, %v984
      %v989 = vadd.f32 %v893, %v986
      %s990 = scalar_lea.vmem %s10, 24
      %v991 = vld [vmem:[%s990] sm:$0xff]
      %v992 = vld [vmem:[#allocation4] sm:$0xff]
      %v994 = vcombine.high %v992, %v992
      %v996 = vsel %vm727, %v991, 0
      %v998 = vsel %vm731, %v992, 0
      %v1000 = vsel %vm731, %v994, 0
      %1002 = vmatprep.subr.mxu0 %v1000
      %1003 = vmatpush1.msra.mxu0 %v998
      %1004 = vmatprep.subr.mxu0 0.0
      %1005 = vmatpush1.msra.mxu0 0.0
      %1006 = vmatprep.subr.mxu0 0.0
      %1007 = vmatpush1.msra.mxu0 0.0
      %1008 = vmatprep.subr.mxu0 0.0
      %1009 = vmatpush1.msra.mxu0 0.0
      %1010 = vmatprep.subr.mxu0 0.0
      %1011 = vmatpush1.msra.mxu0 0.0
      %1012 = vmatprep.subr.mxu0 0.0
      %1013 = vmatpush1.msra.mxu0 0.0
      %1014 = vmatprep.subr.mxu0 0.0
      %1015 = vmatpush1.msra.mxu0 0.0
      %1016 = vmatprep.subr.mxu0 0.0
      %1017 = vmatpush1.msra.mxu0 0.0
      %1018 = vmatprep.subr.mxu0 0.0
      %1019 = vmatpush1.msra.mxu0 0.0
      %1020 = vmatprep.subr.mxu0 0.0
      %1021 = vmatpush1.msra.mxu0 0.0
      %1022 = vmatprep.subr.mxu0 0.0
      %1023 = vmatpush1.msra.mxu0 0.0
      %1024 = vmatprep.subr.mxu0 0.0
      %1025 = vmatpush1.msra.mxu0 0.0
      %1026 = vmatprep.subr.mxu0 0.0
      %1027 = vmatpush1.msra.mxu0 0.0
      %1028 = vmatprep.subr.mxu0 0.0
      %1029 = vmatpush1.msra.mxu0 0.0
      %1030 = vmatprep.subr.mxu0 0.0
      %1031 = vmatpush1.msra.mxu0 0.0
      %1032 = vmatprep.subr.mxu0 0.0
      %1033 = vmatpush1.msra.mxu0 0.0
      %1034 = vmatprep.subr.mxu0 0.0
      %1035 = vmatpush1.msra.mxu0 0.0
      %1036 = vmatprep.subr.mxu0 0.0
      %1037 = vmatpush1.msra.mxu0 0.0
      %1038 = vmatprep.subr.mxu0 0.0
      %1039 = vmatpush1.msra.mxu0 0.0
      %1040 = vmatprep.subr.mxu0 0.0
      %1041 = vmatpush1.msra.mxu0 0.0
      %1042 = vmatprep.subr.mxu0 0.0
      %1043 = vmatpush1.msra.mxu0 0.0
      %1044 = vmatprep.subr.mxu0 0.0
      %1045 = vmatpush1.msra.mxu0 0.0
      %1046 = vmatprep.subr.mxu0 0.0
      %1047 = vmatpush1.msra.mxu0 0.0
      %1048 = vmatprep.subr.mxu0 0.0
      %1049 = vmatpush1.msra.mxu0 0.0
      %1050 = vmatprep.subr.mxu0 0.0
      %1051 = vmatpush1.msra.mxu0 0.0
      %1052 = vmatprep.subr.mxu0 0.0
      %1053 = vmatpush1.msra.mxu0 0.0
      %1054 = vmatprep.subr.mxu0 0.0
      %1055 = vmatpush1.msra.mxu0 0.0
      %1056 = vmatprep.subr.mxu0 0.0
      %1057 = vmatpush1.msra.mxu0 0.0
      %1058 = vmatprep.subr.mxu0 0.0
      %1059 = vmatpush1.msra.mxu0 0.0
      %1060 = vmatprep.subr.mxu0 0.0
      %1061 = vmatpush1.msra.mxu0 0.0
      %1062 = vmatprep.subr.mxu0 0.0
      %1063 = vmatpush1.msra.mxu0 0.0
      %1064 = vmatprep.subr.mxu0 0.0
      %1065 = vmatpush1.msra.mxu0 0.0
      %1066 = vmatprep.mubr.f32.mxu0 0.0
      %1067 = vmatmul.mubr.f32.gmra.mrb[0].mxu0 %v996
      %v1068 = vpop.f32.mrb[0].mxu0
      %v1069 = vadd.f32 0.0, %v1068
      %v1070 = vpop.f32.mrb[0].mxu0
      %v1071 = vadd.f32 0.0, %v1070
      %1072 = vdwg.mxu0
      %v1073 = vadd.f32 %v988, %v1069
      %v1074 = vadd.f32 %v989, %v1071
      %s1075 = scalar_lea.vmem %s10, 32
      %v1076 = vld [vmem:[%s1075] sm:$0xff]
      %v1077 = vld [vmem:[#allocation5] sm:$0xff]
      %v1079 = vcombine.high %v1077, %v1077
      %v1081 = vsel %vm727, %v1076, 0
      %v1083 = vsel %vm731, %v1077, 0
      %v1085 = vsel %vm731, %v1079, 0
      %1087 = vmatprep.subr.mxu0 %v1085
      %1088 = vmatpush1.msra.mxu0 %v1083
      %1089 = vmatprep.subr.mxu0 0.0
      %1090 = vmatpush1.msra.mxu0 0.0
      %1091 = vmatprep.subr.mxu0 0.0
      %1092 = vmatpush1.msra.mxu0 0.0
      %1093 = vmatprep.subr.mxu0 0.0
      %1094 = vmatpush1.msra.mxu0 0.0
      %1095 = vmatprep.subr.mxu0 0.0
      %1096 = vmatpush1.msra.mxu0 0.0
      %1097 = vmatprep.subr.mxu0 0.0
      %1098 = vmatpush1.msra.mxu0 0.0
      %1099 = vmatprep.subr.mxu0 0.0
      %1100 = vmatpush1.msra.mxu0 0.0
      %1101 = vmatprep.subr.mxu0 0.0
      %1102 = vmatpush1.msra.mxu0 0.0
      %1103 = vmatprep.subr.mxu0 0.0
      %1104 = vmatpush1.msra.mxu0 0.0
      %1105 = vmatprep.subr.mxu0 0.0
      %1106 = vmatpush1.msra.mxu0 0.0
      %1107 = vmatprep.subr.mxu0 0.0
      %1108 = vmatpush1.msra.mxu0 0.0
      %1109 = vmatprep.subr.mxu0 0.0
      %1110 = vmatpush1.msra.mxu0 0.0
      %1111 = vmatprep.subr.mxu0 0.0
      %1112 = vmatpush1.msra.mxu0 0.0
      %1113 = vmatprep.subr.mxu0 0.0
      %1114 = vmatpush1.msra.mxu0 0.0
      %1115 = vmatprep.subr.mxu0 0.0
      %1116 = vmatpush1.msra.mxu0 0.0
      %1117 = vmatprep.subr.mxu0 0.0
      %1118 = vmatpush1.msra.mxu0 0.0
      %1119 = vmatprep.subr.mxu0 0.0
      %1120 = vmatpush1.msra.mxu0 0.0
      %1121 = vmatprep.subr.mxu0 0.0
      %1122 = vmatpush1.msra.mxu0 0.0
      %1123 = vmatprep.subr.mxu0 0.0
      %1124 = vmatpush1.msra.mxu0 0.0
      %1125 = vmatprep.subr.mxu0 0.0
      %1126 = vmatpush1.msra.mxu0 0.0
      %1127 = vmatprep.subr.mxu0 0.0
      %1128 = vmatpush1.msra.mxu0 0.0
      %1129 = vmatprep.subr.mxu0 0.0
      %1130 = vmatpush1.msra.mxu0 0.0
      %1131 = vmatprep.subr.mxu0 0.0
      %1132 = vmatpush1.msra.mxu0 0.0
      %1133 = vmatprep.subr.mxu0 0.0
      %1134 = vmatpush1.msra.mxu0 0.0
      %1135 = vmatprep.subr.mxu0 0.0
      %1136 = vmatpush1.msra.mxu0 0.0
      %1137 = vmatprep.subr.mxu0 0.0
      %1138 = vmatpush1.msra.mxu0 0.0
      %1139 = vmatprep.subr.mxu0 0.0
      %1140 = vmatpush1.msra.mxu0 0.0
      %1141 = vmatprep.subr.mxu0 0.0
      %1142 = vmatpush1.msra.mxu0 0.0
      %1143 = vmatprep.subr.mxu0 0.0
      %1144 = vmatpush1.msra.mxu0 0.0
      %1145 = vmatprep.subr.mxu0 0.0
      %1146 = vmatpush1.msra.mxu0 0.0
      %1147 = vmatprep.subr.mxu0 0.0
      %1148 = vmatpush1.msra.mxu0 0.0
      %1149 = vmatprep.subr.mxu0 0.0
      %1150 = vmatpush1.msra.mxu0 0.0
      %1151 = vmatprep.mubr.f32.mxu0 0.0
      %1152 = vmatmul.mubr.f32.gmra.mrb[0].mxu0 %v1081
      %v1153 = vpop.f32.mrb[0].mxu0
      %v1154 = vadd.f32 0.0, %v1153
      %v1155 = vpop.f32.mrb[0].mxu0
      %v1156 = vadd.f32 0.0, %v1155
      %1157 = vdwg.mxu0
      %v1158 = vadd.f32 %v1073, %v1154
      %v1159 = vadd.f32 %v1074, %v1156
      %s1160 = scalar_lea.vmem %s10, 40
      %v1161 = vld [vmem:[%s1160] sm:$0xff]
      %v1162 = vld [vmem:[#allocation4] sm:$0xff]
      %v1163 = vld [vmem:[#allocation4 + $0x8] sm:$0xf]
      %v1166 = vcombine.high %v1162, %v1162
      %1167 = vrot.lane.b32.xlu0 %v1162, 127
      %v1168 = vpop.permute.xlu0 %1167
      %1169 = vrot.lane.b32.xlu0 %v1166, 127
      %v1170 = vpop.permute.xlu0 %1169
      %1171 = vrot.lane.b32.xlu0 %v1163, 127
      %v1172 = vpop.permute.xlu0 %1171
      %v1173 = vsel %vm907, %v1168, %v1170
      %v1174 = vsel %vm907, %v1170, %v1172
      %v1176 = vsel %vm727, %v1161, 0
      %v1178 = vsel %vm731, %v1173, 0
      %v1180 = vsel %vm731, %v1174, 0
      %1182 = vmatprep.subr.mxu0 %v1180
      %1183 = vmatpush1.msra.mxu0 %v1178
      %1184 = vmatprep.subr.mxu0 0.0
      %1185 = vmatpush1.msra.mxu0 0.0
      %1186 = vmatprep.subr.mxu0 0.0
      %1187 = vmatpush1.msra.mxu0 0.0
      %1188 = vmatprep.subr.mxu0 0.0
      %1189 = vmatpush1.msra.mxu0 0.0
      %1190 = vmatprep.subr.mxu0 0.0
      %1191 = vmatpush1.msra.mxu0 0.0
      %1192 = vmatprep.subr.mxu0 0.0
      %1193 = vmatpush1.msra.mxu0 0.0
      %1194 = vmatprep.subr.mxu0 0.0
      %1195 = vmatpush1.msra.mxu0 0.0
      %1196 = vmatprep.subr.mxu0 0.0
      %1197 = vmatpush1.msra.mxu0 0.0
      %1198 = vmatprep.subr.mxu0 0.0
      %1199 = vmatpush1.msra.mxu0 0.0
      %1200 = vmatprep.subr.mxu0 0.0
      %1201 = vmatpush1.msra.mxu0 0.0
      %1202 = vmatprep.subr.mxu0 0.0
      %1203 = vmatpush1.msra.mxu0 0.0
      %1204 = vmatprep.subr.mxu0 0.0
      %1205 = vmatpush1.msra.mxu0 0.0
      %1206 = vmatprep.subr.mxu0 0.0
      %1207 = vmatpush1.msra.mxu0 0.0
      %1208 = vmatprep.subr.mxu0 0.0
      %1209 = vmatpush1.msra.mxu0 0.0
      %1210 = vmatprep.subr.mxu0 0.0
      %1211 = vmatpush1.msra.mxu0 0.0
      %1212 = vmatprep.subr.mxu0 0.0
      %1213 = vmatpush1.msra.mxu0 0.0
      %1214 = vmatprep.subr.mxu0 0.0
      %1215 = vmatpush1.msra.mxu0 0.0
      %1216 = vmatprep.subr.mxu0 0.0
      %1217 = vmatpush1.msra.mxu0 0.0
      %1218 = vmatprep.subr.mxu0 0.0
      %1219 = vmatpush1.msra.mxu0 0.0
      %1220 = vmatprep.subr.mxu0 0.0
      %1221 = vmatpush1.msra.mxu0 0.0
      %1222 = vmatprep.subr.mxu0 0.0
      %1223 = vmatpush1.msra.mxu0 0.0
      %1224 = vmatprep.subr.mxu0 0.0
      %1225 = vmatpush1.msra.mxu0 0.0
      %1226 = vmatprep.subr.mxu0 0.0
      %1227 = vmatpush1.msra.mxu0 0.0
      %1228 = vmatprep.subr.mxu0 0.0
      %1229 = vmatpush1.msra.mxu0 0.0
      %1230 = vmatprep.subr.mxu0 0.0
      %1231 = vmatpush1.msra.mxu0 0.0
      %1232 = vmatprep.subr.mxu0 0.0
      %1233 = vmatpush1.msra.mxu0 0.0
      %1234 = vmatprep.subr.mxu0 0.0
      %1235 = vmatpush1.msra.mxu0 0.0
      %1236 = vmatprep.subr.mxu0 0.0
      %1237 = vmatpush1.msra.mxu0 0.0
      %1238 = vmatprep.subr.mxu0 0.0
      %1239 = vmatpush1.msra.mxu0 0.0
      %1240 = vmatprep.subr.mxu0 0.0
      %1241 = vmatpush1.msra.mxu0 0.0
      %1242 = vmatprep.subr.mxu0 0.0
      %1243 = vmatpush1.msra.mxu0 0.0
      %1244 = vmatprep.subr.mxu0 0.0
      %1245 = vmatpush1.msra.mxu0 0.0
      %1246 = vmatprep.mubr.f32.mxu0 0.0
      %1247 = vmatmul.mubr.f32.gmra.mrb[0].mxu0 %v1176
      %v1248 = vpop.f32.mrb[0].mxu0
      %v1249 = vadd.f32 0.0, %v1248
      %v1250 = vpop.f32.mrb[0].mxu0
      %v1251 = vadd.f32 0.0, %v1250
      %1252 = vdwg.mxu0
      %v1253 = vadd.f32 %v1158, %v1249
      %v1254 = vadd.f32 %v1159, %v1251
      %s1255 = scalar_lea.vmem %s10, 48
      %v1256 = vld [vmem:[%s1255] sm:$0xff]
      %v1257 = vld [vmem:[#allocation2] sm:$0xff]
      %v1258 = vld [vmem:[#allocation2 + $0x8] sm:$0xf]
      %v1261 = vcombine.high %v1257, %v1257
      %1262 = vrot.lane.b32.xlu0 %v1257, 118
      %v1263 = vpop.permute.xlu0 %1262
      %1264 = vrot.lane.b32.xlu0 %v1261, 118
      %v1265 = vpop.permute.xlu0 %1264
      %1266 = vrot.lane.b32.xlu0 %v1258, 118
      %v1267 = vpop.permute.xlu0 %1266
      %vm1268 = vcmask 965632
      %v1269 = vsel %vm1268, %v1263, %v1265
      %v1270 = vsel %vm1268, %v1265, %v1267
      %v1272 = vsel %vm727, %v1256, 0
      %v1274 = vsel %vm731, %v1269, 0
      %v1276 = vsel %vm731, %v1270, 0
      %1278 = vmatprep.subr.mxu0 %v1276
      %1279 = vmatpush1.msra.mxu0 %v1274
      %1280 = vmatprep.subr.mxu0 0.0
      %1281 = vmatpush1.msra.mxu0 0.0
      %1282 = vmatprep.subr.mxu0 0.0
      %1283 = vmatpush1.msra.mxu0 0.0
      %1284 = vmatprep.subr.mxu0 0.0
      %1285 = vmatpush1.msra.mxu0 0.0
      %1286 = vmatprep.subr.mxu0 0.0
      %1287 = vmatpush1.msra.mxu0 0.0
      %1288 = vmatprep.subr.mxu0 0.0
      %1289 = vmatpush1.msra.mxu0 0.0
      %1290 = vmatprep.subr.mxu0 0.0
      %1291 = vmatpush1.msra.mxu0 0.0
      %1292 = vmatprep.subr.mxu0 0.0
      %1293 = vmatpush1.msra.mxu0 0.0
      %1294 = vmatprep.subr.mxu0 0.0
      %1295 = vmatpush1.msra.mxu0 0.0
      %1296 = vmatprep.subr.mxu0 0.0
      %1297 = vmatpush1.msra.mxu0 0.0
      %1298 = vmatprep.subr.mxu0 0.0
      %1299 = vmatpush1.msra.mxu0 0.0
      %1300 = vmatprep.subr.mxu0 0.0
      %1301 = vmatpush1.msra.mxu0 0.0
      %1302 = vmatprep.subr.mxu0 0.0
      %1303 = vmatpush1.msra.mxu0 0.0
      %1304 = vmatprep.subr.mxu0 0.0
      %1305 = vmatpush1.msra.mxu0 0.0
      %1306 = vmatprep.subr.mxu0 0.0
      %1307 = vmatpush1.msra.mxu0 0.0
      %1308 = vmatprep.subr.mxu0 0.0
      %1309 = vmatpush1.msra.mxu0 0.0
      %1310 = vmatprep.subr.mxu0 0.0
      %1311 = vmatpush1.msra.mxu0 0.0
      %1312 = vmatprep.subr.mxu0 0.0
      %1313 = vmatpush1.msra.mxu0 0.0
      %1314 = vmatprep.subr.mxu0 0.0
      %1315 = vmatpush1.msra.mxu0 0.0
      %1316 = vmatprep.subr.mxu0 0.0
      %1317 = vmatpush1.msra.mxu0 0.0
      %1318 = vmatprep.subr.mxu0 0.0
      %1319 = vmatpush1.msra.mxu0 0.0
      %1320 = vmatprep.subr.mxu0 0.0
      %1321 = vmatpush1.msra.mxu0 0.0
      %1322 = vmatprep.subr.mxu0 0.0
      %1323 = vmatpush1.msra.mxu0 0.0
      %1324 = vmatprep.subr.mxu0 0.0
      %1325 = vmatpush1.msra.mxu0 0.0
      %1326 = vmatprep.subr.mxu0 0.0
      %1327 = vmatpush1.msra.mxu0 0.0
      %1328 = vmatprep.subr.mxu0 0.0
      %1329 = vmatpush1.msra.mxu0 0.0
      %1330 = vmatprep.subr.mxu0 0.0
      %1331 = vmatpush1.msra.mxu0 0.0
      %1332 = vmatprep.subr.mxu0 0.0
      %1333 = vmatpush1.msra.mxu0 0.0
      %1334 = vmatprep.subr.mxu0 0.0
      %1335 = vmatpush1.msra.mxu0 0.0
      %1336 = vmatprep.subr.mxu0 0.0
      %1337 = vmatpush1.msra.mxu0 0.0
      %1338 = vmatprep.subr.mxu0 0.0
      %1339 = vmatpush1.msra.mxu0 0.0
      %1340 = vmatprep.subr.mxu0 0.0
      %1341 = vmatpush1.msra.mxu0 0.0
      %1342 = vmatprep.mubr.f32.mxu0 0.0
      %1343 = vmatmul.mubr.f32.gmra.mrb[0].mxu0 %v1272
      %v1344 = vpop.f32.mrb[0].mxu0
      %v1345 = vadd.f32 0.0, %v1344
      %v1346 = vpop.f32.mrb[0].mxu0
      %v1347 = vadd.f32 0.0, %v1346
      %1348 = vdwg.mxu0
      %v1349 = vadd.f32 %v1253, %v1345
      %v1350 = vadd.f32 %v1254, %v1347
      %s1351 = scalar_lea.vmem %s10, 56
      %v1352 = vld [vmem:[%s1351] sm:$0xff]
      %v1353 = vld [vmem:[#allocation3] sm:$0xff]
      %v1354 = vld [vmem:[#allocation3 + $0x8] sm:$0xf]
      %v1357 = vcombine.high %v1353, %v1353
      %1358 = vrot.lane.b32.xlu0 %v1353, 118
      %v1359 = vpop.permute.xlu0 %1358
      %1360 = vrot.lane.b32.xlu0 %v1357, 118
      %v1361 = vpop.permute.xlu0 %1360
      %1362 = vrot.lane.b32.xlu0 %v1354, 118
      %v1363 = vpop.permute.xlu0 %1362
      %v1364 = vsel %vm1268, %v1359, %v1361
      %v1365 = vsel %vm1268, %v1361, %v1363
      %v1367 = vsel %vm727, %v1352, 0
      %v1369 = vsel %vm731, %v1364, 0
      %v1371 = vsel %vm731, %v1365, 0
      %1373 = vmatprep.subr.mxu0 %v1371
      %1374 = vmatpush1.msra.mxu0 %v1369
      %1375 = vmatprep.subr.mxu0 0.0
      %1376 = vmatpush1.msra.mxu0 0.0
      %1377 = vmatprep.subr.mxu0 0.0
      %1378 = vmatpush1.msra.mxu0 0.0
      %1379 = vmatprep.subr.mxu0 0.0
      %1380 = vmatpush1.msra.mxu0 0.0
      %1381 = vmatprep.subr.mxu0 0.0
      %1382 = vmatpush1.msra.mxu0 0.0
      %1383 = vmatprep.subr.mxu0 0.0
      %1384 = vmatpush1.msra.mxu0 0.0
      %1385 = vmatprep.subr.mxu0 0.0
      %1386 = vmatpush1.msra.mxu0 0.0
      %1387 = vmatprep.subr.mxu0 0.0
      %1388 = vmatpush1.msra.mxu0 0.0
      %1389 = vmatprep.subr.mxu0 0.0
      %1390 = vmatpush1.msra.mxu0 0.0
      %1391 = vmatprep.subr.mxu0 0.0
      %1392 = vmatpush1.msra.mxu0 0.0
      %1393 = vmatprep.subr.mxu0 0.0
      %1394 = vmatpush1.msra.mxu0 0.0
      %1395 = vmatprep.subr.mxu0 0.0
      %1396 = vmatpush1.msra.mxu0 0.0
      %1397 = vmatprep.subr.mxu0 0.0
      %1398 = vmatpush1.msra.mxu0 0.0
      %1399 = vmatprep.subr.mxu0 0.0
      %1400 = vmatpush1.msra.mxu0 0.0
      %1401 = vmatprep.subr.mxu0 0.0
      %1402 = vmatpush1.msra.mxu0 0.0
      %1403 = vmatprep.subr.mxu0 0.0
      %1404 = vmatpush1.msra.mxu0 0.0
      %1405 = vmatprep.subr.mxu0 0.0
      %1406 = vmatpush1.msra.mxu0 0.0
      %1407 = vmatprep.subr.mxu0 0.0
      %1408 = vmatpush1.msra.mxu0 0.0
      %1409 = vmatprep.subr.mxu0 0.0
      %1410 = vmatpush1.msra.mxu0 0.0
      %1411 = vmatprep.subr.mxu0 0.0
      %1412 = vmatpush1.msra.mxu0 0.0
      %1413 = vmatprep.subr.mxu0 0.0
      %1414 = vmatpush1.msra.mxu0 0.0
      %1415 = vmatprep.subr.mxu0 0.0
      %1416 = vmatpush1.msra.mxu0 0.0
      %1417 = vmatprep.subr.mxu0 0.0
      %1418 = vmatpush1.msra.mxu0 0.0
      %1419 = vmatprep.subr.mxu0 0.0
      %1420 = vmatpush1.msra.mxu0 0.0
      %1421 = vmatprep.subr.mxu0 0.0
      %1422 = vmatpush1.msra.mxu0 0.0
      %1423 = vmatprep.subr.mxu0 0.0
      %1424 = vmatpush1.msra.mxu0 0.0
      %1425 = vmatprep.subr.mxu0 0.0
      %1426 = vmatpush1.msra.mxu0 0.0
      %1427 = vmatprep.subr.mxu0 0.0
      %1428 = vmatpush1.msra.mxu0 0.0
      %1429 = vmatprep.subr.mxu0 0.0
      %1430 = vmatpush1.msra.mxu0 0.0
      %1431 = vmatprep.subr.mxu0 0.0
      %1432 = vmatpush1.msra.mxu0 0.0
      %1433 = vmatprep.subr.mxu0 0.0
      %1434 = vmatpush1.msra.mxu0 0.0
      %1435 = vmatprep.subr.mxu0 0.0
      %1436 = vmatpush1.msra.mxu0 0.0
      %1437 = vmatprep.mubr.f32.mxu0 0.0
      %1438 = vmatmul.mubr.f32.gmra.mrb[0].mxu0 %v1367
      %v1439 = vpop.f32.mrb[0].mxu0
      %v1440 = vadd.f32 0.0, %v1439
      %v1441 = vpop.f32.mrb[0].mxu0
      %v1442 = vadd.f32 0.0, %v1441
      %1443 = vdwg.mxu0
      %v1444 = vadd.f32 %v1349, %v1440
      %v1445 = vadd.f32 %v1350, %v1442
      %s1446 = scalar_lea.vmem %s10, 64
      %v1447 = vld [vmem:[%s1446] sm:$0xff]
      %v1448 = vld [vmem:[#allocation2] sm:$0xff]
      %v1449 = vld [vmem:[#allocation2 + $0x8] sm:$0xf]
      %v1452 = vcombine.high %v1448, %v1448
      %1453 = vrot.lane.b32.xlu0 %v1448, 117
      %v1454 = vpop.permute.xlu0 %1453
      %1455 = vrot.lane.b32.xlu0 %v1452, 117
      %v1456 = vpop.permute.xlu0 %1455
      %1457 = vrot.lane.b32.xlu0 %v1449, 117
      %v1458 = vpop.permute.xlu0 %1457
      %vm1459 = vcmask 957440
      %v1460 = vsel %vm1459, %v1454, %v1456
      %v1461 = vsel %vm1459, %v1456, %v1458
      %v1463 = vsel %vm727, %v1447, 0
      %v1465 = vsel %vm731, %v1460, 0
      %v1467 = vsel %vm731, %v1461, 0
      %1469 = vmatprep.subr.mxu0 %v1467
      %1470 = vmatpush1.msra.mxu0 %v1465
      %1471 = vmatprep.subr.mxu0 0.0
      %1472 = vmatpush1.msra.mxu0 0.0
      %1473 = vmatprep.subr.mxu0 0.0
      %1474 = vmatpush1.msra.mxu0 0.0
      %1475 = vmatprep.subr.mxu0 0.0
      %1476 = vmatpush1.msra.mxu0 0.0
      %1477 = vmatprep.subr.mxu0 0.0
      %1478 = vmatpush1.msra.mxu0 0.0
      %1479 = vmatprep.subr.mxu0 0.0
      %1480 = vmatpush1.msra.mxu0 0.0
      %1481 = vmatprep.subr.mxu0 0.0
      %1482 = vmatpush1.msra.mxu0 0.0
      %1483 = vmatprep.subr.mxu0 0.0
      %1484 = vmatpush1.msra.mxu0 0.0
      %1485 = vmatprep.subr.mxu0 0.0
      %1486 = vmatpush1.msra.mxu0 0.0
      %1487 = vmatprep.subr.mxu0 0.0
      %1488 = vmatpush1.msra.mxu0 0.0
      %1489 = vmatprep.subr.mxu0 0.0
      %1490 = vmatpush1.msra.mxu0 0.0
      %1491 = vmatprep.subr.mxu0 0.0
      %1492 = vmatpush1.msra.mxu0 0.0
      %1493 = vmatprep.subr.mxu0 0.0
      %1494 = vmatpush1.msra.mxu0 0.0
      %1495 = vmatprep.subr.mxu0 0.0
      %1496 = vmatpush1.msra.mxu0 0.0
      %1497 = vmatprep.subr.mxu0 0.0
      %1498 = vmatpush1.msra.mxu0 0.0
      %1499 = vmatprep.subr.mxu0 0.0
      %1500 = vmatpush1.msra.mxu0 0.0
      %1501 = vmatprep.subr.mxu0 0.0
      %1502 = vmatpush1.msra.mxu0 0.0
      %1503 = vmatprep.subr.mxu0 0.0
      %1504 = vmatpush1.msra.mxu0 0.0
      %1505 = vmatprep.subr.mxu0 0.0
      %1506 = vmatpush1.msra.mxu0 0.0
      %1507 = vmatprep.subr.mxu0 0.0
      %1508 = vmatpush1.msra.mxu0 0.0
      %1509 = vmatprep.subr.mxu0 0.0
      %1510 = vmatpush1.msra.mxu0 0.0
      %1511 = vmatprep.subr.mxu0 0.0
      %1512 = vmatpush1.msra.mxu0 0.0
      %1513 = vmatprep.subr.mxu0 0.0
      %1514 = vmatpush1.msra.mxu0 0.0
      %1515 = vmatprep.subr.mxu0 0.0
      %1516 = vmatpush1.msra.mxu0 0.0
      %1517 = vmatprep.subr.mxu0 0.0
      %1518 = vmatpush1.msra.mxu0 0.0
      %1519 = vmatprep.subr.mxu0 0.0
      %1520 = vmatpush1.msra.mxu0 0.0
      %1521 = vmatprep.subr.mxu0 0.0
      %1522 = vmatpush1.msra.mxu0 0.0
      %1523 = vmatprep.subr.mxu0 0.0
      %1524 = vmatpush1.msra.mxu0 0.0
      %1525 = vmatprep.subr.mxu0 0.0
      %1526 = vmatpush1.msra.mxu0 0.0
      %1527 = vmatprep.subr.mxu0 0.0
      %1528 = vmatpush1.msra.mxu0 0.0
      %1529 = vmatprep.subr.mxu0 0.0
      %1530 = vmatpush1.msra.mxu0 0.0
      %1531 = vmatprep.subr.mxu0 0.0
      %1532 = vmatpush1.msra.mxu0 0.0
      %1533 = vmatprep.mubr.f32.mxu0 0.0
      %1534 = vmatmul.mubr.f32.gmra.mrb[0].mxu0 %v1463
      %v1535 = vpop.f32.mrb[0].mxu0
      %v1536 = vadd.f32 0.0, %v1535
      %v1537 = vpop.f32.mrb[0].mxu0
      %v1538 = vadd.f32 0.0, %v1537
      %1539 = vdwg.mxu0
      %v1540 = vadd.f32 %v1444, %v1536
      %v1541 = vadd.f32 %v1445, %v1538
      %1542 = vst [vmem:[%s569] sm:$0xff] %v1540
      %1543 = vst [vmem:[%s569 + $0x8] sm:$0xff] %v1541
      %v1544 = vld [vmem:[%s13] sm:$0xff]
      %1546 = vset.pattern.permute.xlu0 0
      %1547 = vperm.xlu0 %1546, %v1544
      %v1548 = vpop.permute.xlu0 %1547
      %v1550 = vld [vmem:[%s12] sm:$0xff]
      %v1551 = vld [vmem:[%s545] sm:$0xff]
      %v1553 = vcombine.high %v1551, %v1551
      %1554 = vrot.lane.b32.xlu0 %v1551, 117
      %v1555 = vpop.permute.xlu0 %1554
      %1556 = vrot.lane.b32.xlu0 %v1553, 117
      %v1557 = vpop.permute.xlu0 %1556
      %v1558 = vsel %vm1459, %v1555, %v1557
      %v1560 = vsel %vm727, %v1550, 0
      %v1562 = vsel %vm731, %v1558, 0
      %1564 = vmatprep.subr.mxu0 0.0
      %1565 = vmatpush1.msra.mxu0 %v1562
      %1566 = vmatprep.subr.mxu0 0.0
      %1567 = vmatpush1.msra.mxu0 0.0
      %1568 = vmatprep.subr.mxu0 0.0
      %1569 = vmatpush1.msra.mxu0 0.0
      %1570 = vmatprep.subr.mxu0 0.0
      %1571 = vmatpush1.msra.mxu0 0.0
      %1572 = vmatprep.subr.mxu0 0.0
      %1573 = vmatpush1.msra.mxu0 0.0
      %1574 = vmatprep.subr.mxu0 0.0
      %1575 = vmatpush1.msra.mxu0 0.0
      %1576 = vmatprep.subr.mxu0 0.0
      %1577 = vmatpush1.msra.mxu0 0.0
      %1578 = vmatprep.subr.mxu0 0.0
      %1579 = vmatpush1.msra.mxu0 0.0
      %1580 = vmatprep.subr.mxu0 0.0
      %1581 = vmatpush1.msra.mxu0 0.0
      %1582 = vmatprep.subr.mxu0 0.0
      %1583 = vmatpush1.msra.mxu0 0.0
      %1584 = vmatprep.subr.mxu0 0.0
      %1585 = vmatpush1.msra.mxu0 0.0
      %1586 = vmatprep.subr.mxu0 0.0
      %1587 = vmatpush1.msra.mxu0 0.0
      %1588 = vmatprep.subr.mxu0 0.0
      %1589 = vmatpush1.msra.mxu0 0.0
      %1590 = vmatprep.subr.mxu0 0.0
      %1591 = vmatpush1.msra.mxu0 0.0
      %1592 = vmatprep.subr.mxu0 0.0
      %1593 = vmatpush1.msra.mxu0 0.0
      %1594 = vmatprep.subr.mxu0 0.0
      %1595 = vmatpush1.msra.mxu0 0.0
      %1596 = vmatprep.subr.mxu0 0.0
      %1597 = vmatpush1.msra.mxu0 0.0
      %1598 = vmatprep.subr.mxu0 0.0
      %1599 = vmatpush1.msra.mxu0 0.0
      %1600 = vmatprep.subr.mxu0 0.0
      %1601 = vmatpush1.msra.mxu0 0.0
      %1602 = vmatprep.subr.mxu0 0.0
      %1603 = vmatpush1.msra.mxu0 0.0
      %1604 = vmatprep.subr.mxu0 0.0
      %1605 = vmatpush1.msra.mxu0 0.0
      %1606 = vmatprep.subr.mxu0 0.0
      %1607 = vmatpush1.msra.mxu0 0.0
      %1608 = vmatprep.subr.mxu0 0.0
      %1609 = vmatpush1.msra.mxu0 0.0
      %1610 = vmatprep.subr.mxu0 0.0
      %1611 = vmatpush1.msra.mxu0 0.0
      %1612 = vmatprep.subr.mxu0 0.0
      %1613 = vmatpush1.msra.mxu0 0.0
      %1614 = vmatprep.subr.mxu0 0.0
      %1615 = vmatpush1.msra.mxu0 0.0
      %1616 = vmatprep.subr.mxu0 0.0
      %1617 = vmatpush1.msra.mxu0 0.0
      %1618 = vmatprep.subr.mxu0 0.0
      %1619 = vmatpush1.msra.mxu0 0.0
      %1620 = vmatprep.subr.mxu0 0.0
      %1621 = vmatpush1.msra.mxu0 0.0
      %1622 = vmatprep.subr.mxu0 0.0
      %1623 = vmatpush1.msra.mxu0 0.0
      %1624 = vmatprep.subr.mxu0 0.0
      %1625 = vmatpush1.msra.mxu0 0.0
      %1626 = vmatprep.subr.mxu0 0.0
      %1627 = vmatpush1.msra.mxu0 0.0
      %1628 = vmatprep.mubr.f32.mxu0 0.0
      %1629 = vmatmul.mubr.f32.gmra.mrb[0].mxu0 %v1560
      %v1630 = vpop.f32.mrb[0].mxu0
      %v1631 = vadd.f32 0.0, %v1630
      %v1632 = vpop.f32.mrb[0].mxu0
      %1633 = vdwg.mxu0
      %v1634 = vadd.f32 %v1548, %v1631
      %s1635 = scalar_lea.vmem %s12, 8
      %v1636 = vld [vmem:[%s1635] sm:$0xff]
      %v1637 = vld [vmem:[%s551] sm:$0xff]
      %v1639 = vcombine.high %v1637, %v1637
      %1640 = vrot.lane.b32.xlu0 %v1637, 117
      %v1641 = vpop.permute.xlu0 %1640
      %1642 = vrot.lane.b32.xlu0 %v1639, 117
      %v1643 = vpop.permute.xlu0 %1642
      %v1644 = vsel %vm1459, %v1641, %v1643
      %v1646 = vsel %vm727, %v1636, 0
      %v1648 = vsel %vm731, %v1644, 0
      %1650 = vmatprep.subr.mxu0 0.0
      %1651 = vmatpush1.msra.mxu0 %v1648
      %1652 = vmatprep.subr.mxu0 0.0
      %1653 = vmatpush1.msra.mxu0 0.0
      %1654 = vmatprep.subr.mxu0 0.0
      %1655 = vmatpush1.msra.mxu0 0.0
      %1656 = vmatprep.subr.mxu0 0.0
      %1657 = vmatpush1.msra.mxu0 0.0
      %1658 = vmatprep.subr.mxu0 0.0
      %1659 = vmatpush1.msra.mxu0 0.0
      %1660 = vmatprep.subr.mxu0 0.0
      %1661 = vmatpush1.msra.mxu0 0.0
      %1662 = vmatprep.subr.mxu0 0.0
      %1663 = vmatpush1.msra.mxu0 0.0
      %1664 = vmatprep.subr.mxu0 0.0
      %1665 = vmatpush1.msra.mxu0 0.0
      %1666 = vmatprep.subr.mxu0 0.0
      %1667 = vmatpush1.msra.mxu0 0.0
      %1668 = vmatprep.subr.mxu0 0.0
      %1669 = vmatpush1.msra.mxu0 0.0
      %1670 = vmatprep.subr.mxu0 0.0
      %1671 = vmatpush1.msra.mxu0 0.0
      %1672 = vmatprep.subr.mxu0 0.0
      %1673 = vmatpush1.msra.mxu0 0.0
      %1674 = vmatprep.subr.mxu0 0.0
      %1675 = vmatpush1.msra.mxu0 0.0
      %1676 = vmatprep.subr.mxu0 0.0
      %1677 = vmatpush1.msra.mxu0 0.0
      %1678 = vmatprep.subr.mxu0 0.0
      %1679 = vmatpush1.msra.mxu0 0.0
      %1680 = vmatprep.subr.mxu0 0.0
      %1681 = vmatpush1.msra.mxu0 0.0
      %1682 = vmatprep.subr.mxu0 0.0
      %1683 = vmatpush1.msra.mxu0 0.0
      %1684 = vmatprep.subr.mxu0 0.0
      %1685 = vmatpush1.msra.mxu0 0.0
      %1686 = vmatprep.subr.mxu0 0.0
      %1687 = vmatpush1.msra.mxu0 0.0
      %1688 = vmatprep.subr.mxu0 0.0
      %1689 = vmatpush1.msra.mxu0 0.0
      %1690 = vmatprep.subr.mxu0 0.0
      %1691 = vmatpush1.msra.mxu0 0.0
      %1692 = vmatprep.subr.mxu0 0.0
      %1693 = vmatpush1.msra.mxu0 0.0
      %1694 = vmatprep.subr.mxu0 0.0
      %1695 = vmatpush1.msra.mxu0 0.0
      %1696 = vmatprep.subr.mxu0 0.0
      %1697 = vmatpush1.msra.mxu0 0.0
      %1698 = vmatprep.subr.mxu0 0.0
      %1699 = vmatpush1.msra.mxu0 0.0
      %1700 = vmatprep.subr.mxu0 0.0
      %1701 = vmatpush1.msra.mxu0 0.0
      %1702 = vmatprep.subr.mxu0 0.0
      %1703 = vmatpush1.msra.mxu0 0.0
      %1704 = vmatprep.subr.mxu0 0.0
      %1705 = vmatpush1.msra.mxu0 0.0
      %1706 = vmatprep.subr.mxu0 0.0
      %1707 = vmatpush1.msra.mxu0 0.0
      %1708 = vmatprep.subr.mxu0 0.0
      %1709 = vmatpush1.msra.mxu0 0.0
      %1710 = vmatprep.subr.mxu0 0.0
      %1711 = vmatpush1.msra.mxu0 0.0
      %1712 = vmatprep.subr.mxu0 0.0
      %1713 = vmatpush1.msra.mxu0 0.0
      %1714 = vmatprep.mubr.f32.mxu0 0.0
      %1715 = vmatmul.mubr.f32.gmra.mrb[0].mxu0 %v1646
      %v1716 = vpop.f32.mrb[0].mxu0
      %v1717 = vadd.f32 0.0, %v1716
      %v1718 = vpop.f32.mrb[0].mxu0
      %1719 = vdwg.mxu0
      %v1720 = vadd.f32 %v1634, %v1717
      %s1721 = scalar_lea.vmem %s12, 16
      %v1722 = vld [vmem:[%s1721] sm:$0xff]
      %v1723 = vld [vmem:[%s545] sm:$0xff]
      %v1725 = vcombine.high %v1723, %v1723
      %1726 = vrot.lane.b32.xlu0 %v1723, 116
      %v1727 = vpop.permute.xlu0 %1726
      %1728 = vrot.lane.b32.xlu0 %v1725, 116
      %v1729 = vpop.permute.xlu0 %1728
      %vm1730 = vcmask 949248
      %v1731 = vsel %vm1730, %v1727, %v1729
      %v1733 = vsel %vm727, %v1722, 0
      %v1735 = vsel %vm731, %v1731, 0
      %1737 = vmatprep.subr.mxu0 0.0
      %1738 = vmatpush1.msra.mxu0 %v1735
      %1739 = vmatprep.subr.mxu0 0.0
      %1740 = vmatpush1.msra.mxu0 0.0
      %1741 = vmatprep.subr.mxu0 0.0
      %1742 = vmatpush1.msra.mxu0 0.0
      %1743 = vmatprep.subr.mxu0 0.0
      %1744 = vmatpush1.msra.mxu0 0.0
      %1745 = vmatprep.subr.mxu0 0.0
      %1746 = vmatpush1.msra.mxu0 0.0
      %1747 = vmatprep.subr.mxu0 0.0
      %1748 = vmatpush1.msra.mxu0 0.0
      %1749 = vmatprep.subr.mxu0 0.0
      %1750 = vmatpush1.msra.mxu0 0.0
      %1751 = vmatprep.subr.mxu0 0.0
      %1752 = vmatpush1.msra.mxu0 0.0
      %1753 = vmatprep.subr.mxu0 0.0
      %1754 = vmatpush1.msra.mxu0 0.0
      %1755 = vmatprep.subr.mxu0 0.0
      %1756 = vmatpush1.msra.mxu0 0.0
      %1757 = vmatprep.subr.mxu0 0.0
      %1758 = vmatpush1.msra.mxu0 0.0
      %1759 = vmatprep.subr.mxu0 0.0
      %1760 = vmatpush1.msra.mxu0 0.0
      %1761 = vmatprep.subr.mxu0 0.0
      %1762 = vmatpush1.msra.mxu0 0.0
      %1763 = vmatprep.subr.mxu0 0.0
      %1764 = vmatpush1.msra.mxu0 0.0
      %1765 = vmatprep.subr.mxu0 0.0
      %1766 = vmatpush1.msra.mxu0 0.0
      %1767 = vmatprep.subr.mxu0 0.0
      %1768 = vmatpush1.msra.mxu0 0.0
      %1769 = vmatprep.subr.mxu0 0.0
      %1770 = vmatpush1.msra.mxu0 0.0
      %1771 = vmatprep.subr.mxu0 0.0
      %1772 = vmatpush1.msra.mxu0 0.0
      %1773 = vmatprep.subr.mxu0 0.0
      %1774 = vmatpush1.msra.mxu0 0.0
      %1775 = vmatprep.subr.mxu0 0.0
      %1776 = vmatpush1.msra.mxu0 0.0
      %1777 = vmatprep.subr.mxu0 0.0
      %1778 = vmatpush1.msra.mxu0 0.0
      %1779 = vmatprep.subr.mxu0 0.0
      %1780 = vmatpush1.msra.mxu0 0.0
      %1781 = vmatprep.subr.mxu0 0.0
      %1782 = vmatpush1.msra.mxu0 0.0
      %1783 = vmatprep.subr.mxu0 0.0
      %1784 = vmatpush1.msra.mxu0 0.0
      %1785 = vmatprep.subr.mxu0 0.0
      %1786 = vmatpush1.msra.mxu0 0.0
      %1787 = vmatprep.subr.mxu0 0.0
      %1788 = vmatpush1.msra.mxu0 0.0
      %1789 = vmatprep.subr.mxu0 0.0
      %1790 = vmatpush1.msra.mxu0 0.0
      %1791 = vmatprep.subr.mxu0 0.0
      %1792 = vmatpush1.msra.mxu0 0.0
      %1793 = vmatprep.subr.mxu0 0.0
      %1794 = vmatpush1.msra.mxu0 0.0
      %1795 = vmatprep.subr.mxu0 0.0
      %1796 = vmatpush1.msra.mxu0 0.0
      %1797 = vmatprep.subr.mxu0 0.0
      %1798 = vmatpush1.msra.mxu0 0.0
      %1799 = vmatprep.subr.mxu0 0.0
      %1800 = vmatpush1.msra.mxu0 0.0
      %1801 = vmatprep.mubr.f32.mxu0 0.0
      %1802 = vmatmul.mubr.f32.gmra.mrb[0].mxu0 %v1733
      %v1803 = vpop.f32.mrb[0].mxu0
      %v1804 = vadd.f32 0.0, %v1803
      %v1805 = vpop.f32.mrb[0].mxu0
      %1806 = vdwg.mxu0
      %v1807 = vadd.f32 %v1720, %v1804
      %s1808 = scalar_lea.vmem %s12, 24
      %v1809 = vld [vmem:[%s1808] sm:$0xff]
      %v1810 = vld [vmem:[%s557] sm:$0xff]
      %v1812 = vcombine.high %v1810, %v1810
      %1813 = vrot.lane.b32.xlu0 %v1810, 117
      %v1814 = vpop.permute.xlu0 %1813
      %1815 = vrot.lane.b32.xlu0 %v1812, 117
      %v1816 = vpop.permute.xlu0 %1815
      %v1817 = vsel %vm1459, %v1814, %v1816
      %v1819 = vsel %vm727, %v1809, 0
      %v1821 = vsel %vm731, %v1817, 0
      %1823 = vmatprep.subr.mxu0 0.0
      %1824 = vmatpush1.msra.mxu0 %v1821
      %1825 = vmatprep.subr.mxu0 0.0
      %1826 = vmatpush1.msra.mxu0 0.0
      %1827 = vmatprep.subr.mxu0 0.0
      %1828 = vmatpush1.msra.mxu0 0.0
      %1829 = vmatprep.subr.mxu0 0.0
      %1830 = vmatpush1.msra.mxu0 0.0
      %1831 = vmatprep.subr.mxu0 0.0
      %1832 = vmatpush1.msra.mxu0 0.0
      %1833 = vmatprep.subr.mxu0 0.0
      %1834 = vmatpush1.msra.mxu0 0.0
      %1835 = vmatprep.subr.mxu0 0.0
      %1836 = vmatpush1.msra.mxu0 0.0
      %1837 = vmatprep.subr.mxu0 0.0
      %1838 = vmatpush1.msra.mxu0 0.0
      %1839 = vmatprep.subr.mxu0 0.0
      %1840 = vmatpush1.msra.mxu0 0.0
      %1841 = vmatprep.subr.mxu0 0.0
      %1842 = vmatpush1.msra.mxu0 0.0
      %1843 = vmatprep.subr.mxu0 0.0
      %1844 = vmatpush1.msra.mxu0 0.0
      %1845 = vmatprep.subr.mxu0 0.0
      %1846 = vmatpush1.msra.mxu0 0.0
      %1847 = vmatprep.subr.mxu0 0.0
      %1848 = vmatpush1.msra.mxu0 0.0
      %1849 = vmatprep.subr.mxu0 0.0
      %1850 = vmatpush1.msra.mxu0 0.0
      %1851 = vmatprep.subr.mxu0 0.0
      %1852 = vmatpush1.msra.mxu0 0.0
      %1853 = vmatprep.subr.mxu0 0.0
      %1854 = vmatpush1.msra.mxu0 0.0
      %1855 = vmatprep.subr.mxu0 0.0
      %1856 = vmatpush1.msra.mxu0 0.0
      %1857 = vmatprep.subr.mxu0 0.0
      %1858 = vmatpush1.msra.mxu0 0.0
      %1859 = vmatprep.subr.mxu0 0.0
      %1860 = vmatpush1.msra.mxu0 0.0
      %1861 = vmatprep.subr.mxu0 0.0
      %1862 = vmatpush1.msra.mxu0 0.0
      %1863 = vmatprep.subr.mxu0 0.0
      %1864 = vmatpush1.msra.mxu0 0.0
      %1865 = vmatprep.subr.mxu0 0.0
      %1866 = vmatpush1.msra.mxu0 0.0
      %1867 = vmatprep.subr.mxu0 0.0
      %1868 = vmatpush1.msra.mxu0 0.0
      %1869 = vmatprep.subr.mxu0 0.0
      %1870 = vmatpush1.msra.mxu0 0.0
      %1871 = vmatprep.subr.mxu0 0.0
      %1872 = vmatpush1.msra.mxu0 0.0
      %1873 = vmatprep.subr.mxu0 0.0
      %1874 = vmatpush1.msra.mxu0 0.0
      %1875 = vmatprep.subr.mxu0 0.0
      %1876 = vmatpush1.msra.mxu0 0.0
      %1877 = vmatprep.subr.mxu0 0.0
      %1878 = vmatpush1.msra.mxu0 0.0
      %1879 = vmatprep.subr.mxu0 0.0
      %1880 = vmatpush1.msra.mxu0 0.0
      %1881 = vmatprep.subr.mxu0 0.0
      %1882 = vmatpush1.msra.mxu0 0.0
      %1883 = vmatprep.subr.mxu0 0.0
      %1884 = vmatpush1.msra.mxu0 0.0
      %1885 = vmatprep.subr.mxu0 0.0
      %1886 = vmatpush1.msra.mxu0 0.0
      %1887 = vmatprep.mubr.f32.mxu0 0.0
      %1888 = vmatmul.mubr.f32.gmra.mrb[0].mxu0 %v1819
      %v1889 = vpop.f32.mrb[0].mxu0
      %v1890 = vadd.f32 0.0, %v1889
      %v1891 = vpop.f32.mrb[0].mxu0
      %1892 = vdwg.mxu0
      %v1893 = vadd.f32 %v1807, %v1890
      %s1894 = scalar_lea.vmem %s12, 32
      %v1895 = vld [vmem:[%s1894] sm:$0xff]
      %v1896 = vld [vmem:[%s563] sm:$0xff]
      %v1898 = vcombine.high %v1896, %v1896
      %1899 = vrot.lane.b32.xlu0 %v1896, 117
      %v1900 = vpop.permute.xlu0 %1899
      %1901 = vrot.lane.b32.xlu0 %v1898, 117
      %v1902 = vpop.permute.xlu0 %1901
      %v1903 = vsel %vm1459, %v1900, %v1902
      %v1905 = vsel %vm727, %v1895, 0
      %v1907 = vsel %vm731, %v1903, 0
      %1909 = vmatprep.subr.mxu0 0.0
      %1910 = vmatpush1.msra.mxu0 %v1907
      %1911 = vmatprep.subr.mxu0 0.0
      %1912 = vmatpush1.msra.mxu0 0.0
      %1913 = vmatprep.subr.mxu0 0.0
      %1914 = vmatpush1.msra.mxu0 0.0
      %1915 = vmatprep.subr.mxu0 0.0
      %1916 = vmatpush1.msra.mxu0 0.0
      %1917 = vmatprep.subr.mxu0 0.0
      %1918 = vmatpush1.msra.mxu0 0.0
      %1919 = vmatprep.subr.mxu0 0.0
      %1920 = vmatpush1.msra.mxu0 0.0
      %1921 = vmatprep.subr.mxu0 0.0
      %1922 = vmatpush1.msra.mxu0 0.0
      %1923 = vmatprep.subr.mxu0 0.0
      %1924 = vmatpush1.msra.mxu0 0.0
      %1925 = vmatprep.subr.mxu0 0.0
      %1926 = vmatpush1.msra.mxu0 0.0
      %1927 = vmatprep.subr.mxu0 0.0
      %1928 = vmatpush1.msra.mxu0 0.0
      %1929 = vmatprep.subr.mxu0 0.0
      %1930 = vmatpush1.msra.mxu0 0.0
      %1931 = vmatprep.subr.mxu0 0.0
      %1932 = vmatpush1.msra.mxu0 0.0
      %1933 = vmatprep.subr.mxu0 0.0
      %1934 = vmatpush1.msra.mxu0 0.0
      %1935 = vmatprep.subr.mxu0 0.0
      %1936 = vmatpush1.msra.mxu0 0.0
      %1937 = vmatprep.subr.mxu0 0.0
      %1938 = vmatpush1.msra.mxu0 0.0
      %1939 = vmatprep.subr.mxu0 0.0
      %1940 = vmatpush1.msra.mxu0 0.0
      %1941 = vmatprep.subr.mxu0 0.0
      %1942 = vmatpush1.msra.mxu0 0.0
      %1943 = vmatprep.subr.mxu0 0.0
      %1944 = vmatpush1.msra.mxu0 0.0
      %1945 = vmatprep.subr.mxu0 0.0
      %1946 = vmatpush1.msra.mxu0 0.0
      %1947 = vmatprep.subr.mxu0 0.0
      %1948 = vmatpush1.msra.mxu0 0.0
      %1949 = vmatprep.subr.mxu0 0.0
      %1950 = vmatpush1.msra.mxu0 0.0
      %1951 = vmatprep.subr.mxu0 0.0
      %1952 = vmatpush1.msra.mxu0 0.0
      %1953 = vmatprep.subr.mxu0 0.0
      %1954 = vmatpush1.msra.mxu0 0.0
      %1955 = vmatprep.subr.mxu0 0.0
      %1956 = vmatpush1.msra.mxu0 0.0
      %1957 = vmatprep.subr.mxu0 0.0
      %1958 = vmatpush1.msra.mxu0 0.0
      %1959 = vmatprep.subr.mxu0 0.0
      %1960 = vmatpush1.msra.mxu0 0.0
      %1961 = vmatprep.subr.mxu0 0.0
      %1962 = vmatpush1.msra.mxu0 0.0
      %1963 = vmatprep.subr.mxu0 0.0
      %1964 = vmatpush1.msra.mxu0 0.0
      %1965 = vmatprep.subr.mxu0 0.0
      %1966 = vmatpush1.msra.mxu0 0.0
      %1967 = vmatprep.subr.mxu0 0.0
      %1968 = vmatpush1.msra.mxu0 0.0
      %1969 = vmatprep.subr.mxu0 0.0
      %1970 = vmatpush1.msra.mxu0 0.0
      %1971 = vmatprep.subr.mxu0 0.0
      %1972 = vmatpush1.msra.mxu0 0.0
      %1973 = vmatprep.mubr.f32.mxu0 0.0
      %1974 = vmatmul.mubr.f32.gmra.mrb[0].mxu0 %v1905
      %v1975 = vpop.f32.mrb[0].mxu0
      %v1976 = vadd.f32 0.0, %v1975
      %v1977 = vpop.f32.mrb[0].mxu0
      %1978 = vdwg.mxu0
      %v1979 = vadd.f32 %v1893, %v1976
      %s1980 = scalar_lea.vmem %s12, 40
      %v1981 = vld [vmem:[%s1980] sm:$0xff]
      %v1982 = vld [vmem:[%s557] sm:$0xff]
      %v1984 = vcombine.high %v1982, %v1982
      %1985 = vrot.lane.b32.xlu0 %v1982, 116
      %v1986 = vpop.permute.xlu0 %1985
      %1987 = vrot.lane.b32.xlu0 %v1984, 116
      %v1988 = vpop.permute.xlu0 %1987
      %v1989 = vsel %vm1730, %v1986, %v1988
      %v1991 = vsel %vm727, %v1981, 0
      %v1993 = vsel %vm731, %v1989, 0
      %1995 = vmatprep.subr.mxu0 0.0
      %1996 = vmatpush1.msra.mxu0 %v1993
      %1997 = vmatprep.subr.mxu0 0.0
      %1998 = vmatpush1.msra.mxu0 0.0
      %1999 = vmatprep.subr.mxu0 0.0
      %2000 = vmatpush1.msra.mxu0 0.0
      %2001 = vmatprep.subr.mxu0 0.0
      %2002 = vmatpush1.msra.mxu0 0.0
      %2003 = vmatprep.subr.mxu0 0.0
      %2004 = vmatpush1.msra.mxu0 0.0
      %2005 = vmatprep.subr.mxu0 0.0
      %2006 = vmatpush1.msra.mxu0 0.0
      %2007 = vmatprep.subr.mxu0 0.0
      %2008 = vmatpush1.msra.mxu0 0.0
      %2009 = vmatprep.subr.mxu0 0.0
      %2010 = vmatpush1.msra.mxu0 0.0
      %2011 = vmatprep.subr.mxu0 0.0
      %2012 = vmatpush1.msra.mxu0 0.0
      %2013 = vmatprep.subr.mxu0 0.0
      %2014 = vmatpush1.msra.mxu0 0.0
      %2015 = vmatprep.subr.mxu0 0.0
      %2016 = vmatpush1.msra.mxu0 0.0
      %2017 = vmatprep.subr.mxu0 0.0
      %2018 = vmatpush1.msra.mxu0 0.0
      %2019 = vmatprep.subr.mxu0 0.0
      %2020 = vmatpush1.msra.mxu0 0.0
      %2021 = vmatprep.subr.mxu0 0.0
      %2022 = vmatpush1.msra.mxu0 0.0
      %2023 = vmatprep.subr.mxu0 0.0
      %2024 = vmatpush1.msra.mxu0 0.0
      %2025 = vmatprep.subr.mxu0 0.0
      %2026 = vmatpush1.msra.mxu0 0.0
      %2027 = vmatprep.subr.mxu0 0.0
      %2028 = vmatpush1.msra.mxu0 0.0
      %2029 = vmatprep.subr.mxu0 0.0
      %2030 = vmatpush1.msra.mxu0 0.0
      %2031 = vmatprep.subr.mxu0 0.0
      %2032 = vmatpush1.msra.mxu0 0.0
      %2033 = vmatprep.subr.mxu0 0.0
      %2034 = vmatpush1.msra.mxu0 0.0
      %2035 = vmatprep.subr.mxu0 0.0
      %2036 = vmatpush1.msra.mxu0 0.0
      %2037 = vmatprep.subr.mxu0 0.0
      %2038 = vmatpush1.msra.mxu0 0.0
      %2039 = vmatprep.subr.mxu0 0.0
      %2040 = vmatpush1.msra.mxu0 0.0
      %2041 = vmatprep.subr.mxu0 0.0
      %2042 = vmatpush1.msra.mxu0 0.0
      %2043 = vmatprep.subr.mxu0 0.0
      %2044 = vmatpush1.msra.mxu0 0.0
      %2045 = vmatprep.subr.mxu0 0.0
      %2046 = vmatpush1.msra.mxu0 0.0
      %2047 = vmatprep.subr.mxu0 0.0
      %2048 = vmatpush1.msra.mxu0 0.0
      %2049 = vmatprep.subr.mxu0 0.0
      %2050 = vmatpush1.msra.mxu0 0.0
      %2051 = vmatprep.subr.mxu0 0.0
      %2052 = vmatpush1.msra.mxu0 0.0
      %2053 = vmatprep.subr.mxu0 0.0
      %2054 = vmatpush1.msra.mxu0 0.0
      %2055 = vmatprep.subr.mxu0 0.0
      %2056 = vmatpush1.msra.mxu0 0.0
      %2057 = vmatprep.subr.mxu0 0.0
      %2058 = vmatpush1.msra.mxu0 0.0
      %2059 = vmatprep.mubr.f32.mxu0 0.0
      %2060 = vmatmul.mubr.f32.gmra.mrb[0].mxu0 %v1991
      %v2061 = vpop.f32.mrb[0].mxu0
      %v2062 = vadd.f32 0.0, %v2061
      %v2063 = vpop.f32.mrb[0].mxu0
      %2064 = vdwg.mxu0
      %v2065 = vadd.f32 %v1979, %v2062
      %s2066 = scalar_lea.vmem %s12, 48
      %v2067 = vld [vmem:[%s2066] sm:$0xff]
      %v2068 = vld [vmem:[%s545] sm:$0xff]
      %v2070 = vcombine.high %v2068, %v2068
      %2071 = vrot.lane.b32.xlu0 %v2068, 107
      %v2072 = vpop.permute.xlu0 %2071
      %2073 = vrot.lane.b32.xlu0 %v2070, 107
      %v2074 = vpop.permute.xlu0 %2073
      %vm2075 = vcmask 875520
      %v2076 = vsel %vm2075, %v2072, %v2074
      %v2078 = vsel %vm727, %v2067, 0
      %v2080 = vsel %vm731, %v2076, 0
      %2082 = vmatprep.subr.mxu0 0.0
      %2083 = vmatpush1.msra.mxu0 %v2080
      %2084 = vmatprep.subr.mxu0 0.0
      %2085 = vmatpush1.msra.mxu0 0.0
      %2086 = vmatprep.subr.mxu0 0.0
      %2087 = vmatpush1.msra.mxu0 0.0
      %2088 = vmatprep.subr.mxu0 0.0
      %2089 = vmatpush1.msra.mxu0 0.0
      %2090 = vmatprep.subr.mxu0 0.0
      %2091 = vmatpush1.msra.mxu0 0.0
      %2092 = vmatprep.subr.mxu0 0.0
      %2093 = vmatpush1.msra.mxu0 0.0
      %2094 = vmatprep.subr.mxu0 0.0
      %2095 = vmatpush1.msra.mxu0 0.0
      %2096 = vmatprep.subr.mxu0 0.0
      %2097 = vmatpush1.msra.mxu0 0.0
      %2098 = vmatprep.subr.mxu0 0.0
      %2099 = vmatpush1.msra.mxu0 0.0
      %2100 = vmatprep.subr.mxu0 0.0
      %2101 = vmatpush1.msra.mxu0 0.0
      %2102 = vmatprep.subr.mxu0 0.0
      %2103 = vmatpush1.msra.mxu0 0.0
      %2104 = vmatprep.subr.mxu0 0.0
      %2105 = vmatpush1.msra.mxu0 0.0
      %2106 = vmatprep.subr.mxu0 0.0
      %2107 = vmatpush1.msra.mxu0 0.0
      %2108 = vmatprep.subr.mxu0 0.0
      %2109 = vmatpush1.msra.mxu0 0.0
      %2110 = vmatprep.subr.mxu0 0.0
      %2111 = vmatpush1.msra.mxu0 0.0
      %2112 = vmatprep.subr.mxu0 0.0
      %2113 = vmatpush1.msra.mxu0 0.0
      %2114 = vmatprep.subr.mxu0 0.0
      %2115 = vmatpush1.msra.mxu0 0.0
      %2116 = vmatprep.subr.mxu0 0.0
      %2117 = vmatpush1.msra.mxu0 0.0
      %2118 = vmatprep.subr.mxu0 0.0
      %2119 = vmatpush1.msra.mxu0 0.0
      %2120 = vmatprep.subr.mxu0 0.0
      %2121 = vmatpush1.msra.mxu0 0.0
      %2122 = vmatprep.subr.mxu0 0.0
      %2123 = vmatpush1.msra.mxu0 0.0
      %2124 = vmatprep.subr.mxu0 0.0
      %2125 = vmatpush1.msra.mxu0 0.0
      %2126 = vmatprep.subr.mxu0 0.0
      %2127 = vmatpush1.msra.mxu0 0.0
      %2128 = vmatprep.subr.mxu0 0.0
      %2129 = vmatpush1.msra.mxu0 0.0
      %2130 = vmatprep.subr.mxu0 0.0
      %2131 = vmatpush1.msra.mxu0 0.0
      %2132 = vmatprep.subr.mxu0 0.0
      %2133 = vmatpush1.msra.mxu0 0.0
      %2134 = vmatprep.subr.mxu0 0.0
      %2135 = vmatpush1.msra.mxu0 0.0
      %2136 = vmatprep.subr.mxu0 0.0
      %2137 = vmatpush1.msra.mxu0 0.0
      %2138 = vmatprep.subr.mxu0 0.0
      %2139 = vmatpush1.msra.mxu0 0.0
      %2140 = vmatprep.subr.mxu0 0.0
      %2141 = vmatpush1.msra.mxu0 0.0
      %2142 = vmatprep.subr.mxu0 0.0
      %2143 = vmatpush1.msra.mxu0 0.0
      %2144 = vmatprep.subr.mxu0 0.0
      %2145 = vmatpush1.msra.mxu0 0.0
      %2146 = vmatprep.mubr.f32.mxu0 0.0
      %2147 = vmatmul.mubr.f32.gmra.mrb[0].mxu0 %v2078
      %v2148 = vpop.f32.mrb[0].mxu0
      %v2149 = vadd.f32 0.0, %v2148
      %v2150 = vpop.f32.mrb[0].mxu0
      %2151 = vdwg.mxu0
      %v2152 = vadd.f32 %v2065, %v2149
      %s2153 = scalar_lea.vmem %s12, 56
      %v2154 = vld [vmem:[%s2153] sm:$0xff]
      %v2155 = vld [vmem:[%s551] sm:$0xff]
      %v2157 = vcombine.high %v2155, %v2155
      %2158 = vrot.lane.b32.xlu0 %v2155, 107
      %v2159 = vpop.permute.xlu0 %2158
      %2160 = vrot.lane.b32.xlu0 %v2157, 107
      %v2161 = vpop.permute.xlu0 %2160
      %v2162 = vsel %vm2075, %v2159, %v2161
      %v2164 = vsel %vm727, %v2154, 0
      %v2166 = vsel %vm731, %v2162, 0
      %2168 = vmatprep.subr.mxu0 0.0
      %2169 = vmatpush1.msra.mxu0 %v2166
      %2170 = vmatprep.subr.mxu0 0.0
      %2171 = vmatpush1.msra.mxu0 0.0
      %2172 = vmatprep.subr.mxu0 0.0
      %2173 = vmatpush1.msra.mxu0 0.0
      %2174 = vmatprep.subr.mxu0 0.0
      %2175 = vmatpush1.msra.mxu0 0.0
      %2176 = vmatprep.subr.mxu0 0.0
      %2177 = vmatpush1.msra.mxu0 0.0
      %2178 = vmatprep.subr.mxu0 0.0
      %2179 = vmatpush1.msra.mxu0 0.0
      %2180 = vmatprep.subr.mxu0 0.0
      %2181 = vmatpush1.msra.mxu0 0.0
      %2182 = vmatprep.subr.mxu0 0.0
      %2183 = vmatpush1.msra.mxu0 0.0
      %2184 = vmatprep.subr.mxu0 0.0
      %2185 = vmatpush1.msra.mxu0 0.0
      %2186 = vmatprep.subr.mxu0 0.0
      %2187 = vmatpush1.msra.mxu0 0.0
      %2188 = vmatprep.subr.mxu0 0.0
      %2189 = vmatpush1.msra.mxu0 0.0
      %2190 = vmatprep.subr.mxu0 0.0
      %2191 = vmatpush1.msra.mxu0 0.0
      %2192 = vmatprep.subr.mxu0 0.0
      %2193 = vmatpush1.msra.mxu0 0.0
      %2194 = vmatprep.subr.mxu0 0.0
      %2195 = vmatpush1.msra.mxu0 0.0
      %2196 = vmatprep.subr.mxu0 0.0
      %2197 = vmatpush1.msra.mxu0 0.0
      %2198 = vmatprep.subr.mxu0 0.0
      %2199 = vmatpush1.msra.mxu0 0.0
      %2200 = vmatprep.subr.mxu0 0.0
      %2201 = vmatpush1.msra.mxu0 0.0
      %2202 = vmatprep.subr.mxu0 0.0
      %2203 = vmatpush1.msra.mxu0 0.0
      %2204 = vmatprep.subr.mxu0 0.0
      %2205 = vmatpush1.msra.mxu0 0.0
      %2206 = vmatprep.subr.mxu0 0.0
      %2207 = vmatpush1.msra.mxu0 0.0
      %2208 = vmatprep.subr.mxu0 0.0
      %2209 = vmatpush1.msra.mxu0 0.0
      %2210 = vmatprep.subr.mxu0 0.0
      %2211 = vmatpush1.msra.mxu0 0.0
      %2212 = vmatprep.subr.mxu0 0.0
      %2213 = vmatpush1.msra.mxu0 0.0
      %2214 = vmatprep.subr.mxu0 0.0
      %2215 = vmatpush1.msra.mxu0 0.0
      %2216 = vmatprep.subr.mxu0 0.0
      %2217 = vmatpush1.msra.mxu0 0.0
      %2218 = vmatprep.subr.mxu0 0.0
      %2219 = vmatpush1.msra.mxu0 0.0
      %2220 = vmatprep.subr.mxu0 0.0
      %2221 = vmatpush1.msra.mxu0 0.0
      %2222 = vmatprep.subr.mxu0 0.0
      %2223 = vmatpush1.msra.mxu0 0.0
      %2224 = vmatprep.subr.mxu0 0.0
      %2225 = vmatpush1.msra.mxu0 0.0
      %2226 = vmatprep.subr.mxu0 0.0
      %2227 = vmatpush1.msra.mxu0 0.0
      %2228 = vmatprep.subr.mxu0 0.0
      %2229 = vmatpush1.msra.mxu0 0.0
      %2230 = vmatprep.subr.mxu0 0.0
      %2231 = vmatpush1.msra.mxu0 0.0
      %2232 = vmatprep.mubr.f32.mxu0 0.0
      %2233 = vmatmul.mubr.f32.gmra.mrb[0].mxu0 %v2164
      %v2234 = vpop.f32.mrb[0].mxu0
      %v2235 = vadd.f32 0.0, %v2234
      %v2236 = vpop.f32.mrb[0].mxu0
      %2237 = vdwg.mxu0
      %v2238 = vadd.f32 %v2152, %v2235
      %s2239 = scalar_lea.vmem %s12, 64
      %v2240 = vld [vmem:[%s2239] sm:$0xff]
      %v2241 = vld [vmem:[%s545] sm:$0xff]
      %v2243 = vcombine.high %v2241, %v2241
      %2244 = vrot.lane.b32.xlu0 %v2241, 106
      %v2245 = vpop.permute.xlu0 %2244
      %2246 = vrot.lane.b32.xlu0 %v2243, 106
      %v2247 = vpop.permute.xlu0 %2246
      %vm2248 = vcmask 867328
      %v2249 = vsel %vm2248, %v2245, %v2247
      %v2251 = vsel %vm727, %v2240, 0
      %v2253 = vsel %vm731, %v2249, 0
      %2255 = vmatprep.subr.mxu0 0.0
      %2256 = vmatpush1.msra.mxu0 %v2253
      %2257 = vmatprep.subr.mxu0 0.0
      %2258 = vmatpush1.msra.mxu0 0.0
      %2259 = vmatprep.subr.mxu0 0.0
      %2260 = vmatpush1.msra.mxu0 0.0
      %2261 = vmatprep.subr.mxu0 0.0
      %2262 = vmatpush1.msra.mxu0 0.0
      %2263 = vmatprep.subr.mxu0 0.0
      %2264 = vmatpush1.msra.mxu0 0.0
      %2265 = vmatprep.subr.mxu0 0.0
      %2266 = vmatpush1.msra.mxu0 0.0
      %2267 = vmatprep.subr.mxu0 0.0
      %2268 = vmatpush1.msra.mxu0 0.0
      %2269 = vmatprep.subr.mxu0 0.0
      %2270 = vmatpush1.msra.mxu0 0.0
      %2271 = vmatprep.subr.mxu0 0.0
      %2272 = vmatpush1.msra.mxu0 0.0
      %2273 = vmatprep.subr.mxu0 0.0
      %2274 = vmatpush1.msra.mxu0 0.0
      %2275 = vmatprep.subr.mxu0 0.0
      %2276 = vmatpush1.msra.mxu0 0.0
      %2277 = vmatprep.subr.mxu0 0.0
      %2278 = vmatpush1.msra.mxu0 0.0
      %2279 = vmatprep.subr.mxu0 0.0
      %2280 = vmatpush1.msra.mxu0 0.0
      %2281 = vmatprep.subr.mxu0 0.0
      %2282 = vmatpush1.msra.mxu0 0.0
      %2283 = vmatprep.subr.mxu0 0.0
      %2284 = vmatpush1.msra.mxu0 0.0
      %2285 = vmatprep.subr.mxu0 0.0
      %2286 = vmatpush1.msra.mxu0 0.0
      %2287 = vmatprep.subr.mxu0 0.0
      %2288 = vmatpush1.msra.mxu0 0.0
      %2289 = vmatprep.subr.mxu0 0.0
      %2290 = vmatpush1.msra.mxu0 0.0
      %2291 = vmatprep.subr.mxu0 0.0
      %2292 = vmatpush1.msra.mxu0 0.0
      %2293 = vmatprep.subr.mxu0 0.0
      %2294 = vmatpush1.msra.mxu0 0.0
      %2295 = vmatprep.subr.mxu0 0.0
      %2296 = vmatpush1.msra.mxu0 0.0
      %2297 = vmatprep.subr.mxu0 0.0
      %2298 = vmatpush1.msra.mxu0 0.0
      %2299 = vmatprep.subr.mxu0 0.0
      %2300 = vmatpush1.msra.mxu0 0.0
      %2301 = vmatprep.subr.mxu0 0.0
      %2302 = vmatpush1.msra.mxu0 0.0
      %2303 = vmatprep.subr.mxu0 0.0
      %2304 = vmatpush1.msra.mxu0 0.0
      %2305 = vmatprep.subr.mxu0 0.0
      %2306 = vmatpush1.msra.mxu0 0.0
      %2307 = vmatprep.subr.mxu0 0.0
      %2308 = vmatpush1.msra.mxu0 0.0
      %2309 = vmatprep.subr.mxu0 0.0
      %2310 = vmatpush1.msra.mxu0 0.0
      %2311 = vmatprep.subr.mxu0 0.0
      %2312 = vmatpush1.msra.mxu0 0.0
      %2313 = vmatprep.subr.mxu0 0.0
      %2314 = vmatpush1.msra.mxu0 0.0
      %2315 = vmatprep.subr.mxu0 0.0
      %2316 = vmatpush1.msra.mxu0 0.0
      %2317 = vmatprep.subr.mxu0 0.0
      %2318 = vmatpush1.msra.mxu0 0.0
      %2319 = vmatprep.mubr.f32.mxu0 0.0
      %2320 = vmatmul.mubr.f32.gmra.mrb[0].mxu0 %v2251
      %v2321 = vpop.f32.mrb[0].mxu0
      %v2322 = vadd.f32 0.0, %v2321
      %v2323 = vpop.f32.mrb[0].mxu0
      %2324 = vdwg.mxu0
      %v2325 = vadd.f32 %v2238, %v2322
      %2326 = vst [vmem:[%s574] sm:$0xff] %v2325
      %s2327 = smul.u32 2, %s27
      %p2328 = scmp.lt.s32.totalorder %s2327, 3
      %s2329 = scalar_select %p2328, %s2327, 3
      %s2330 = smul.addr %s2329, 8
      %s2331 = scalar_lea.vmem %s14, %s2330
      %p2332 = scmp.lt.s32.totalorder %s27, 1
      %s2333 = scalar_select %p2332, %s27, 1
      %s2334 = smul.addr %s2333, 8
      %s2335 = scalar_lea.vmem %s15, %s2334
      // Predicated region
      $region77: #{downsample_block.5} parent=75 // pred_check
        %p2336 = pneg %p359
      $region78: #{downsample_block.5} parent=75 // pred_check_branch
        %2338 = sbr.rel (%p2336) target = $region80
      $region79: #{downsample_block.5} parent=75 // pred_region
        %s2339 = smul.u32 2, %s27
      $region80: #{downsample_block.5} parent=75 // pred_fallthru
        _
      // Predicated region
      $region81: #{downsample_block.5} parent=75 // pred_check
        %p2340 = pneg %p385
      $region82: #{downsample_block.5} parent=75 // pred_check_branch
        %2342 = sbr.rel (%p2340) target = $region84
      $region83: #{downsample_block.5} parent=75 // pred_region
        _
      $region84: #{downsample_block.5} parent=75 // pred_fallthru
        _
    $region76: #{downsample_block.5} parent=5 // pred_fallthru
      _
    %p2343 = scmp.le.s32.totalorder 2, %s22
    // Predicated region
    $region85: #{downsample_block.5} parent=5 // pred_check
      %p2344 = pneg %p2343
    $region86: #{downsample_block.5} parent=5 // pred_check_branch
      %2346 = sbr.rel (%p2344) target = $region88
    $region87: #{downsample_block.5} parent=5 // pred_region
      %s2347 = ssub.s32 %s22, 2
      // Predicated region
      $region89: #{downsample_block.5} parent=87 // pred_check
        %p2348 = pneg %p365
      $region90: #{downsample_block.5} parent=87 // pred_check_branch
        %2350 = sbr.rel (%p2348) target = $region92
      $region91: #{downsample_block.5} parent=87 // pred_region
        %s2351 = smul.u32 2, %s28
        %p2352 = scmp.lt.s32.totalorder %s2351, 3
        %s2353 = scalar_select %p2352, %s2351, 3
        %s2354 = smul.addr %s2353, 8
        %s2355 = scalar_lea.vmem %s14, %s2354
      $region92: #{downsample_block.5} parent=87 // pred_fallthru
        _
      // Predicated region
      $region93: #{downsample_block.5} parent=87 // pred_check
        %p2356 = pneg %p391
      $region94: #{downsample_block.5} parent=87 // pred_check_branch
        %2358 = sbr.rel (%p2356) target = $region96
      $region95: #{downsample_block.5} parent=87 // pred_region
        %p2359 = scmp.lt.s32.totalorder %s28, 1
        %s2360 = scalar_select %p2359, %s28, 1
        %s2361 = smul.addr %s2360, 8
        %s2362 = scalar_lea.vmem %s15, %s2361
      $region96: #{downsample_block.5} parent=87 // pred_fallthru
        _
    $region88: #{downsample_block.5} parent=5 // pred_fallthru
      _
  $region6: #{downsample_block.5} parent=0 // loop_footer
    %s26 = sadd.s32 1, %s22
  $region7: #{downsample_block.5} parent=0 // loop_footer_branch
    %21 = sbr.rel target = $region3
  $region8: #{downsample_block.5} parent=0 // loop_exit
    _

</llo_original>
